<compile_context>
chip_gen: v7x
topology: tpu7x:2x2x1
jax: 0.10.0
libtpu: 0.0.40
codegen_flags: <defaults>
</compile_context>

<pallas_src>
import functools

import jax
import jax.numpy as jnp
from jax.experimental import pallas as pl
from jax.experimental.pallas import tpu as pltpu


def _gat_attention_kernel(nnz_ref, f1_ref, f2t_ref, hext_ref, mask_ref, adj_ref,
                          out_ref, acc_ref, *, alpha, num_heads, head_dim, mode):
    """One (row_tile, col_tile) step of the fused multi-head attention.

    Streams precomputed per-node attention logits (f1, f2^T) and projected
    features h_ext = [h | ones(H)]; accumulates sum_j e_h[i,j] * h_ext_masked
    into a (row_tile, H*D + H) scratch (last H lanes = per-head row-sums).
    mode: 'concat' -> elu at finalize; 'out' -> elu + log_softmax at finalize.
    """
    i = pl.program_id(0)
    j = pl.program_id(1)
    nj = pl.num_programs(1)
    H = num_heads
    D = head_dim
    HD = H * D

    # ---- init running state at the first column tile of each row tile ----
    @pl.when(j == 0)
    def _init():
        acc_ref[...] = jnp.zeros_like(acc_ref)

    # ---- accumulate this column tile, skipping fully empty adjacency blocks ----
    @pl.when(nnz_ref[i, j] > 0)
    def _accumulate():
        adj_mask = adj_ref[...] != 0                                   # (tr, tc)
        f1 = f1_ref[...]                                               # (tr, H)
        f2t = f2t_ref[...]                                             # (H, tc)
        hext = hext_ref[...]                                           # (tc, HD+H)

        contrib = None
        for hh in range(H):                                            # static unroll
            pre = f1[:, hh:hh + 1] + f2t[hh:hh + 1, :]                 # (tr, tc)
            lrelu = jnp.where(pre > 0.0, pre, alpha * pre)
            e = jnp.where(adj_mask, jnp.exp(-lrelu), 0.0)              # masked edge_e
            # Masked-wide RHS: head hh's D columns of h plus its ones column.
            rhs = hext * mask_ref[hh:hh + 1, :]                        # (tc, HD+H)
            d = jnp.dot(e.astype(jnp.bfloat16), rhs.astype(jnp.bfloat16),
                        preferred_element_type=jnp.float32)            # (tr, HD+H)
            contrib = d if contrib is None else contrib + d
        acc_ref[...] += contrib

    # ---- finalize after the last column tile ----
    @pl.when(j == nj - 1)
    def _finalize():
        accw = acc_ref[...]                                            # (tr, HD+H)
        # Per-head row-sums live in the last H lanes. Clamp so rows with no
        # support (e.g. padded rows) produce 0, not NaN.
        rsum = jnp.maximum(accw[:, HD:], 1e-30)                        # (tr, H)
        inv = pl.reciprocal(rsum, approx=True)
        inv = inv * (2.0 - rsum * inv)                                 # Newton step
        # Broadcast each head's 1/rowsum across its D output lanes.
        scale = inv[:, 0:1] * mask_ref[0:1, :HD]
        for hh in range(1, H):
            scale = scale + inv[:, hh:hh + 1] * mask_ref[hh:hh + 1, :HD]
        out = accw[:, :HD] * scale                                     # (tr, HD)
        out = jnp.where(out > 0.0, out, jnp.exp(out) - 1.0)            # ELU
        if mode == "out":
            m = jnp.max(out, axis=1, keepdims=True)
            s = out - m
            out = s - jnp.log(jnp.sum(jnp.exp(s), axis=1, keepdims=True))
        out_ref[...] = out.astype(out_ref.dtype)


def gat_attention(h, f1, f2t, adj_i8, block_nnz, *, alpha, num_heads, head_dim,
                  mode, row_tile, col_tile):
    """Fused multi-head attention aggregation. Returns (N_pad, num_heads*head_dim)."""
    Np = h.shape[0]
    H, D = num_heads, head_dim
    HD = H * D

    # h_ext = [h | ones(H)]: the ones columns make the per-head row-sum fall
    # out of the same MXU matmul as the contribution (built once, outside grid).
    h_ext = jnp.concatenate([h, jnp.ones((Np, H), h.dtype)], axis=1)   # (Np, HD+H)
    eye = jnp.eye(H, dtype=jnp.float32)
    head_mask = jnp.concatenate([jnp.repeat(eye, D, axis=1), eye], axis=1)  # (H, HD+H)

    grid = (Np // row_tile, Np // col_tile)
    kernel = functools.partial(_gat_attention_kernel, alpha=alpha,
                               num_heads=H, head_dim=D, mode=mode)
    return pl.pallas_call(
        kernel,
        out_shape=jax.ShapeDtypeStruct((Np, HD), jnp.float32),
        grid_spec=pltpu.PrefetchScalarGridSpec(
            num_scalar_prefetch=1,                       # block_nnz table -> SMEM
            grid=grid,
            in_specs=[
                pl.BlockSpec((row_tile, H), lambda i, j, nnz: (i, 0)),        # f1
                pl.BlockSpec((H, col_tile), lambda i, j, nnz: (0, j)),        # f2^T
                pl.BlockSpec((col_tile, HD + H), lambda i, j, nnz: (j, 0)),   # h_ext
                pl.BlockSpec((H, HD + H), lambda i, j, nnz: (0, 0)),          # head mask (resident)
                pl.BlockSpec((row_tile, col_tile), lambda i, j, nnz: (i, j)),  # adj int8
            ],
            out_specs=pl.BlockSpec((row_tile, HD), lambda i, j, nnz: (i, 0)),
            scratch_shapes=[
                pltpu.VMEM((row_tile, HD + H), jnp.float32),   # running [e@h | rowsum]
            ],
        ),
        compiler_params=pltpu.CompilerParams(
            dimension_semantics=("parallel", "arbitrary")),
    )(block_nnz, f1, f2t, h_ext, head_mask, adj_i8)


def spgat_forward(x, adj, params, *, alpha):
    """SpGAT.forward (inference): fused heads -> out_att -> elu -> log_softmax."""
    N, _ = x.shape

    # ---- pad N so tiles are (8,128)/(32,128)-aligned; never full-array fallback ----
    Np = ((N + 127) // 128) * 128
    row_tile = 256 if Np % 256 == 0 else 128        # multiple of 32 (int8 sublane tile)
    col_tile = 512 if Np % 512 == 0 else (256 if Np % 256 == 0 else 128)

    x_p = jnp.pad(x, ((0, Np - N), (0, 0)))
    adj_bool = jnp.pad(adj != 0, ((0, Np - N), (0, Np - N)))
    adj_i8 = adj_bool.astype(jnp.int8)              # 4x less HBM than f32 adjacency
    R, C = Np // row_tile, Np // col_tile
    block_nnz = adj_bool.reshape(R, row_tile, C, col_tile).sum(
        axis=(1, 3)).astype(jnp.int32)              # (R, C) block-sparsity table

    # x = F.dropout(x, p, training=False) -> identity

    # ---- Layer 1: all heads fused; output is already torch.cat(dim=1) ----
    H, fin, D = params["W1"].shape
    w1_all = jnp.transpose(params["W1"], (1, 0, 2)).reshape(fin, H * D)
    # h / f1 / f2 hoisted OUT of the attention grid (review item 1).
    h1 = jnp.dot(x_p, w1_all, preferred_element_type=jnp.float32)       # (Np, H*D)
    h1_heads = h1.reshape(Np, H, D)
    f1_1 = jnp.einsum('nhd,hd->nh', h1_heads, params["a1"][:, :, 0])    # (Np, H)
    f2t_1 = jnp.einsum('nhd,hd->hn', h1_heads, params["a1"][:, :, 1])   # (H, Np)
    x1 = gat_attention(h1, f1_1, f2t_1, adj_i8, block_nnz,
                       alpha=alpha, num_heads=H, head_dim=D, mode="concat",
                       row_tile=row_tile, col_tile=col_tile)            # (Np, H*nhid)

    # x = F.dropout(x, p, training=False) -> identity

    # ---- Layer 2: out_att (single head) + elu + log_softmax fused in kernel tail ----
    nclass = params["W2"].shape[2]
    h2 = jnp.dot(x1, params["W2"][0], preferred_element_type=jnp.float32)  # (Np, nclass)
    f1_2 = jnp.dot(h2, params["a2"][0][:, 0:1])                            # (Np, 1)
    f2t_2 = jnp.transpose(jnp.dot(h2, params["a2"][0][:, 1:2]))            # (1, Np)
    out = gat_attention(h2, f1_2, f2t_2, adj_i8, block_nnz,
                        alpha=alpha, num_heads=1, head_dim=nclass, mode="out",
                        row_tile=row_tile, col_tile=col_tile)              # (Np, nclass)
    return out[:N]


# ----------------------------- pure-JAX reference -----------------------------
def _ref_layer(x, W, a, adj, alpha, concat):
    h = x @ W
    pre = (h @ a[:, 0:1]) + (h @ a[:, 1:2]).T
    lrelu = jnp.where(pre > 0, pre, alpha * pre)
    e = jnp.where(adj != 0, jnp.exp(-lrelu), 0.0)
    hp = (e @ h) / e.sum(axis=1, keepdims=True)
    return jax.nn.elu(hp) if concat else hp


def _ref_forward(x, adj, params, alpha):
    H = params["W1"].shape[0]
    heads = [_ref_layer(x, params["W1"][i], params["a1"][i], adj, alpha, True)
             for i in range(H)]
    x1 = jnp.concatenate(heads, axis=1)
    out = jax.nn.elu(_ref_layer(x1, params["W2"][0], params["a2"][0], adj, alpha, False))
    return jax.nn.log_softmax(out, axis=1)


# ----------------------------------- main -------------------------------------
if __name__ == "__main__":
    N, nfeat, nhid, nclass, nheads = 16, 32, 8, 4, 4
    alpha = 0.2   # LeakyReLU negative slope
    # dropout = 0.2  (inference -> identity)

    key = jax.random.PRNGKey(0)
    kx, kadj, kw1, ka1, kw2, ka2 = jax.random.split(key, 6)

    x = jax.random.normal(kx, (N, nfeat), dtype=jnp.float32)

    # adjacency: random edges + self loops (so every row has nonzero support)
    adj = (jax.random.uniform(kadj, (N, N)) < 0.4).astype(jnp.float32)
    adj = jnp.maximum(adj, jnp.eye(N, dtype=jnp.float32))

    params = {
        "W1": 0.1 * jax.random.normal(kw1, (nheads, nfeat, nhid), dtype=jnp.float32),
        "a1": 0.1 * jax.random.normal(ka1, (nheads, nhid, 2), dtype=jnp.float32),
        "W2": 0.1 * jax.random.normal(kw2, (1, nheads * nhid, nclass), dtype=jnp.float32),
        "a2": 0.1 * jax.random.normal(ka2, (1, nclass, 2), dtype=jnp.float32),
    }

    fwd = jax.jit(functools.partial(spgat_forward, alpha=alpha))
    out = fwd(x, adj, params)
    out = jax.block_until_ready(out)
    assert out.shape == (N, nclass), out.shape

    ref = _ref_forward(x, adj, params, alpha)
    # Tolerance loosened from 1e-4 because the e@h matmuls use bf16 operands
    # (f32 accumulation) per the perf review.
    assert jnp.allclose(out, ref, rtol=2e-2, atol=2e-2), (
        float(jnp.max(jnp.abs(out - ref))))

    print("KERNEL_OK")
</pallas_src>

<mosaic_0001>
module attributes {stable_mosaic.version = 11 : i64} {
  func.func @_gat_attention_kernel(%arg0: i32, %arg1: i32, %arg2: memref<1x1xi32, #tpu.memory_space<smem>>, %arg3: memref<128x4xf32, #tpu.memory_space<vmem>>, %arg4: memref<4x128xf32, #tpu.memory_space<vmem>>, %arg5: memref<128x36xf32, #tpu.memory_space<vmem>>, %arg6: memref<4x36xf32, #tpu.memory_space<vmem>>, %arg7: memref<128x128xi8, #tpu.memory_space<vmem>>, %arg8: memref<128x32xf32, #tpu.memory_space<vmem>>, %arg9: memref<128x36xf32, #tpu.memory_space<vmem>>) attributes {dimension_semantics = [#tpu.dimension_semantics<parallel>, #tpu.dimension_semantics<arbitrary>], iteration_bounds = array<i64: 1, 1>, scalar_prefetch = 1 : i64, scratch_operands = 1 : i64, tpu.core_type = #tpu.core_type<tc>, window_params = [{transform_indices = @transform_0, window_bounds = array<i64: 128, 4>}, {transform_indices = @transform_1, window_bounds = array<i64: 4, 128>}, {transform_indices = @transform_2, window_bounds = array<i64: 128, 36>}, {pipeline_mode = #tpu.pipeline_mode<synchronous>, transform_indices = @transform_3, window_bounds = array<i64: 4, 36>}, {transform_indices = @transform_4, window_bounds = array<i64: 128, 128>}, {transform_indices = @transform_5, window_bounds = array<i64: 128, 32>}]} {
    %c0_i32 = arith.constant 0 : i32
    %0 = arith.cmpi eq, %arg1, %c0_i32 : i32
    %1 = arith.extui %0 : i1 to i32
    %c0_i32_0 = arith.constant 0 : i32
    %2 = arith.cmpi ne, %1, %c0_i32_0 : i32
    scf.if %2 {
      %cst = arith.constant 0.000000e+00 : f32
      %12 = vector.broadcast %cst : f32 to vector<128x36xf32>
      %c0 = arith.constant 0 : index
      %c0_5 = arith.constant 0 : index
      %13 = vector.load %arg9[%c0, %c0_5] : memref<128x36xf32, #tpu.memory_space<vmem>>, vector<128x36xf32>
      tpu.vector_store %arg9[%c0, %c0_5], %12 {strides = array<i32>} : memref<128x36xf32, #tpu.memory_space<vmem>>, vector<128x36xf32>,
    } else {
    }
    %3 = arith.index_cast %arg0 : i32 to index
    %4 = arith.index_cast %arg1 : i32 to index
    %5 = memref.load %arg2[%3, %4] : memref<1x1xi32, #tpu.memory_space<smem>>
    %c0_i32_1 = arith.constant 0 : i32
    %6 = arith.cmpi sgt, %5, %c0_i32_1 : i32
    %7 = arith.extui %6 : i1 to i32
    %c0_i32_2 = arith.constant 0 : i32
    %8 = arith.cmpi ne, %7, %c0_i32_2 : i32
    scf.if %8 {
      %c0 = arith.constant 0 : index
      %c0_5 = arith.constant 0 : index
      %12 = vector.load %arg7[%c0, %c0_5] : memref<128x128xi8, #tpu.memory_space<vmem>>, vector<128x128xi8>
      %c0_i8 = arith.constant 0 : i8
      %13 = vector.broadcast %c0_i8 : i8 to vector<128x128xi8>
      %14 = arith.cmpi ne, %12, %13 : vector<128x128xi8>
      %c0_6 = arith.constant 0 : index
      %c0_7 = arith.constant 0 : index
      %15 = vector.load %arg3[%c0_6, %c0_7] : memref<128x4xf32, #tpu.memory_space<vmem>>, vector<128x4xf32>
      %c0_8 = arith.constant 0 : index
      %c0_9 = arith.constant 0 : index
      %16 = vector.load %arg4[%c0_8, %c0_9] : memref<4x128xf32, #tpu.memory_space<vmem>>, vector<4x128xf32>
      %c0_10 = arith.constant 0 : index
      %c0_11 = arith.constant 0 : index
      %17 = vector.load %arg5[%c0_10, %c0_11] : memref<128x36xf32, #tpu.memory_space<vmem>>, vector<128x36xf32>
      %18 = vector.extract_strided_slice %15 {offsets = [0, 0], sizes = [128, 1], strides = [1, 1]} : vector<128x4xf32> to vector<128x1xf32>
      %19 = vector.extract_strided_slice %16 {offsets = [0, 0], sizes = [1, 128], strides = [1, 1]} : vector<4x128xf32> to vector<1x128xf32>
      %20 = vector.broadcast %18 : vector<128x1xf32> to vector<128x128xf32>
      %21 = vector.broadcast %19 : vector<1x128xf32> to vector<128x128xf32>
      %22 = arith.addf %20, %21 : vector<128x128xf32>
      %cst = arith.constant 0.000000e+00 : f32
      %23 = vector.broadcast %cst : f32 to vector<128x128xf32>
      %24 = arith.cmpf ogt, %22, %23 : vector<128x128xf32>
      %cst_12 = arith.constant 2.000000e-01 : f32
      %25 = vector.broadcast %cst_12 : f32 to vector<128x128xf32>
      %26 = arith.mulf %25, %22 : vector<128x128xf32>
      %27 = arith.select %24, %22, %26 : vector<128x128xi1>, vector<128x128xf32>
      %cst_13 = arith.constant 0.000000e+00 : f32
      %28 = vector.broadcast %cst_13 : f32 to vector<128x128xf32>
      %29 = arith.subf %28, %27 : vector<128x128xf32>
      %30 = math.exp %29 : vector<128x128xf32>
      %cst_14 = arith.constant 0.000000e+00 : f32
      %31 = vector.broadcast %cst_14 : f32 to vector<128x128xf32>
      %32 = arith.select %14, %30, %31 : vector<128x128xi1>, vector<128x128xf32>
      %c0_15 = arith.constant 0 : index
      %c0_16 = arith.constant 0 : index
      %33 = vector.load %arg6[%c0_15, %c0_16] : memref<4x36xf32, #tpu.memory_space<vmem>>, vector<1x36xf32>
      %34 = vector.broadcast %33 : vector<1x36xf32> to vector<128x36xf32>
      %35 = arith.mulf %17, %34 : vector<128x36xf32>
      %36 = arith.truncf %32 : vector<128x128xf32> to vector<128x128xbf16>
      %37 = arith.truncf %35 : vector<128x36xf32> to vector<128x36xbf16>
      %cst_17 = arith.constant dense<0.000000e+00> : vector<128x36xf32>
      %38 = tpu.matmul %36, %37, %cst_17 {dimension_numbers = #tpu.dot_dimension_numbers<[1], [0], [0], [1], [0, 0, 1, 1], [], []>} : vector<128x128xbf16>, vector<128x36xbf16>, vector<128x36xf32> -> vector<128x36xf32>
      %39 = vector.extract_strided_slice %15 {offsets = [0, 1], sizes = [128, 1], strides = [1, 1]} : vector<128x4xf32> to vector<128x1xf32>
      %40 = vector.extract_strided_slice %16 {offsets = [1, 0], sizes = [1, 128], strides = [1, 1]} : vector<4x128xf32> to vector<1x128xf32>
      %41 = vector.broadcast %39 : vector<128x1xf32> to vector<128x128xf32>
      %42 = vector.broadcast %40 : vector<1x128xf32> to vector<128x128xf32>
      %43 = arith.addf %41, %42 : vector<128x128xf32>
      %cst_18 = arith.constant 0.000000e+00 : f32
      %44 = vector.broadcast %cst_18 : f32 to vector<128x128xf32>
      %45 = arith.cmpf ogt, %43, %44 : vector<128x128xf32>
      %cst_19 = arith.constant 2.000000e-01 : f32
      %46 = vector.broadcast %cst_19 : f32 to vector<128x128xf32>
      %47 = arith.mulf %46, %43 : vector<128x128xf32>
      %48 = arith.select %45, %43, %47 : vector<128x128xi1>, vector<128x128xf32>
      %cst_20 = arith.constant 0.000000e+00 : f32
      %49 = vector.broadcast %cst_20 : f32 to vector<128x128xf32>
      %50 = arith.subf %49, %48 : vector<128x128xf32>
      %51 = math.exp %50 : vector<128x128xf32>
      %cst_21 = arith.constant 0.000000e+00 : f32
      %52 = vector.broadcast %cst_21 : f32 to vector<128x128xf32>
      %53 = arith.select %14, %51, %52 : vector<128x128xi1>, vector<128x128xf32>
      %c1 = arith.constant 1 : index
      %c0_22 = arith.constant 0 : index
      %54 = vector.load %arg6[%c1, %c0_22] : memref<4x36xf32, #tpu.memory_space<vmem>>, vector<1x36xf32>
      %55 = vector.broadcast %54 : vector<1x36xf32> to vector<128x36xf32>
      %56 = arith.mulf %17, %55 : vector<128x36xf32>
      %57 = arith.truncf %53 : vector<128x128xf32> to vector<128x128xbf16>
      %58 = arith.truncf %56 : vector<128x36xf32> to vector<128x36xbf16>
      %cst_23 = arith.constant dense<0.000000e+00> : vector<128x36xf32>
      %59 = tpu.matmul %57, %58, %cst_23 {dimension_numbers = #tpu.dot_dimension_numbers<[1], [0], [0], [1], [0, 0, 1, 1], [], []>} : vector<128x128xbf16>, vector<128x36xbf16>, vector<128x36xf32> -> vector<128x36xf32>
      %60 = arith.addf %38, %59 : vector<128x36xf32>
      %61 = vector.extract_strided_slice %15 {offsets = [0, 2], sizes = [128, 1], strides = [1, 1]} : vector<128x4xf32> to vector<128x1xf32>
      %62 = vector.extract_strided_slice %16 {offsets = [2, 0], sizes = [1, 128], strides = [1, 1]} : vector<4x128xf32> to vector<1x128xf32>
      %63 = vector.broadcast %61 : vector<128x1xf32> to vector<128x128xf32>
      %64 = vector.broadcast %62 : vector<1x128xf32> to vector<128x128xf32>
      %65 = arith.addf %63, %64 : vector<128x128xf32>
      %cst_24 = arith.constant 0.000000e+00 : f32
      %66 = vector.broadcast %cst_24 : f32 to vector<128x128xf32>
      %67 = arith.cmpf ogt, %65, %66 : vector<128x128xf32>
      %cst_25 = arith.constant 2.000000e-01 : f32
      %68 = vector.broadcast %cst_25 : f32 to vector<128x128xf32>
      %69 = arith.mulf %68, %65 : vector<128x128xf32>
      %70 = arith.select %67, %65, %69 : vector<128x128xi1>, vector<128x128xf32>
      %cst_26 = arith.constant 0.000000e+00 : f32
      %71 = vector.broadcast %cst_26 : f32 to vector<128x128xf32>
      %72 = arith.subf %71, %70 : vector<128x128xf32>
      %73 = math.exp %72 : vector<128x128xf32>
      %cst_27 = arith.constant 0.000000e+00 : f32
      %74 = vector.broadcast %cst_27 : f32 to vector<128x128xf32>
      %75 = arith.select %14, %73, %74 : vector<128x128xi1>, vector<128x128xf32>
      %c2 = arith.constant 2 : index
      %c0_28 = arith.constant 0 : index
      %76 = vector.load %arg6[%c2, %c0_28] : memref<4x36xf32, #tpu.memory_space<vmem>>, vector<1x36xf32>
      %77 = vector.broadcast %76 : vector<1x36xf32> to vector<128x36xf32>
      %78 = arith.mulf %17, %77 : vector<128x36xf32>
      %79 = arith.truncf %75 : vector<128x128xf32> to vector<128x128xbf16>
      %80 = arith.truncf %78 : vector<128x36xf32> to vector<128x36xbf16>
      %cst_29 = arith.constant dense<0.000000e+00> : vector<128x36xf32>
      %81 = tpu.matmul %79, %80, %cst_29 {dimension_numbers = #tpu.dot_dimension_numbers<[1], [0], [0], [1], [0, 0, 1, 1], [], []>} : vector<128x128xbf16>, vector<128x36xbf16>, vector<128x36xf32> -> vector<128x36xf32>
      %82 = arith.addf %60, %81 : vector<128x36xf32>
      %83 = vector.extract_strided_slice %15 {offsets = [0, 3], sizes = [128, 1], strides = [1, 1]} : vector<128x4xf32> to vector<128x1xf32>
      %84 = vector.extract_strided_slice %16 {offsets = [3, 0], sizes = [1, 128], strides = [1, 1]} : vector<4x128xf32> to vector<1x128xf32>
      %85 = vector.broadcast %83 : vector<128x1xf32> to vector<128x128xf32>
      %86 = vector.broadcast %84 : vector<1x128xf32> to vector<128x128xf32>
      %87 = arith.addf %85, %86 : vector<128x128xf32>
      %cst_30 = arith.constant 0.000000e+00 : f32
      %88 = vector.broadcast %cst_30 : f32 to vector<128x128xf32>
      %89 = arith.cmpf ogt, %87, %88 : vector<128x128xf32>
      %cst_31 = arith.constant 2.000000e-01 : f32
      %90 = vector.broadcast %cst_31 : f32 to vector<128x128xf32>
      %91 = arith.mulf %90, %87 : vector<128x128xf32>
      %92 = arith.select %89, %87, %91 : vector<128x128xi1>, vector<128x128xf32>
      %cst_32 = arith.constant 0.000000e+00 : f32
      %93 = vector.broadcast %cst_32 : f32 to vector<128x128xf32>
      %94 = arith.subf %93, %92 : vector<128x128xf32>
      %95 = math.exp %94 : vector<128x128xf32>
      %cst_33 = arith.constant 0.000000e+00 : f32
      %96 = vector.broadcast %cst_33 : f32 to vector<128x128xf32>
      %97 = arith.select %14, %95, %96 : vector<128x128xi1>, vector<128x128xf32>
      %c3 = arith.constant 3 : index
      %c0_34 = arith.constant 0 : index
      %98 = vector.load %arg6[%c3, %c0_34] : memref<4x36xf32, #tpu.memory_space<vmem>>, vector<1x36xf32>
      %99 = vector.broadcast %98 : vector<1x36xf32> to vector<128x36xf32>
      %100 = arith.mulf %17, %99 : vector<128x36xf32>
      %101 = arith.truncf %97 : vector<128x128xf32> to vector<128x128xbf16>
      %102 = arith.truncf %100 : vector<128x36xf32> to vector<128x36xbf16>
      %cst_35 = arith.constant dense<0.000000e+00> : vector<128x36xf32>
      %103 = tpu.matmul %101, %102, %cst_35 {dimension_numbers = #tpu.dot_dimension_numbers<[1], [0], [0], [1], [0, 0, 1, 1], [], []>} : vector<128x128xbf16>, vector<128x36xbf16>, vector<128x36xf32> -> vector<128x36xf32>
      %104 = arith.addf %82, %103 : vector<128x36xf32>
      %c0_36 = arith.constant 0 : index
      %c0_37 = arith.constant 0 : index
      %105 = vector.load %arg9[%c0_36, %c0_37] : memref<128x36xf32, #tpu.memory_space<vmem>>, vector<128x36xf32>
      %106 = arith.addf %105, %104 : vector<128x36xf32>
      %c0_38 = arith.constant 0 : index
      %c0_39 = arith.constant 0 : index
      %107 = vector.load %arg9[%c0_38, %c0_39] : memref<128x36xf32, #tpu.memory_space<vmem>>, vector<128x36xf32>
      tpu.vector_store %arg9[%c0_38, %c0_39], %106 {strides = array<i32>} : memref<128x36xf32, #tpu.memory_space<vmem>>, vector<128x36xf32>,
    } else {
    }
    %c0_i32_3 = arith.constant 0 : i32
    %9 = arith.cmpi eq, %arg1, %c0_i32_3 : i32
    %10 = arith.extui %9 : i1 to i32
    %c0_i32_4 = arith.constant 0 : i32
    %11 = arith.cmpi ne, %10, %c0_i32_4 : i32
    scf.if %11 {
      %c0 = arith.constant 0 : index
      %c0_5 = arith.constant 0 : index
      %12 = vector.load %arg9[%c0, %c0_5] : memref<128x36xf32, #tpu.memory_space<vmem>>, vector<128x36xf32>
      %13 = vector.extract_strided_slice %12 {offsets = [0, 32], sizes = [128, 4], strides = [1, 1]} : vector<128x36xf32> to vector<128x4xf32>
      %cst = arith.constant 1.000000e-30 : f32
      %14 = vector.broadcast %cst : f32 to vector<128x4xf32>
      %15 = arith.maximumf %13, %14 : vector<128x4xf32>
      %16 = tpu.reciprocal %15 {approx = true} : vector<128x4xf32> -> vector<128x4xf32>
      %17 = arith.mulf %15, %16 : vector<128x4xf32>
      %cst_6 = arith.constant 2.000000e+00 : f32
      %18 = vector.broadcast %cst_6 : f32 to vector<128x4xf32>
      %19 = arith.subf %18, %17 : vector<128x4xf32>
      %20 = arith.mulf %16, %19 : vector<128x4xf32>
      %21 = vector.extract_strided_slice %20 {offsets = [0, 0], sizes = [128, 1], strides = [1, 1]} : vector<128x4xf32> to vector<128x1xf32>
      %c0_7 = arith.constant 0 : index
      %c0_8 = arith.constant 0 : index
      %22 = vector.load %arg6[%c0_7, %c0_8] : memref<4x36xf32, #tpu.memory_space<vmem>>, vector<1x32xf32>
      %23 = vector.broadcast %21 : vector<128x1xf32> to vector<128x32xf32>
      %24 = vector.broadcast %22 : vector<1x32xf32> to vector<128x32xf32>
      %25 = arith.mulf %23, %24 : vector<128x32xf32>
      %26 = vector.extract_strided_slice %20 {offsets = [0, 1], sizes = [128, 1], strides = [1, 1]} : vector<128x4xf32> to vector<128x1xf32>
      %c1 = arith.constant 1 : index
      %c0_9 = arith.constant 0 : index
      %27 = vector.load %arg6[%c1, %c0_9] : memref<4x36xf32, #tpu.memory_space<vmem>>, vector<1x32xf32>
      %28 = vector.broadcast %26 : vector<128x1xf32> to vector<128x32xf32>
      %29 = vector.broadcast %27 : vector<1x32xf32> to vector<128x32xf32>
      %30 = arith.mulf %28, %29 : vector<128x32xf32>
      %31 = arith.addf %25, %30 : vector<128x32xf32>
      %32 = vector.extract_strided_slice %20 {offsets = [0, 2], sizes = [128, 1], strides = [1, 1]} : vector<128x4xf32> to vector<128x1xf32>
      %c2 = arith.constant 2 : index
      %c0_10 = arith.constant 0 : index
      %33 = vector.load %arg6[%c2, %c0_10] : memref<4x36xf32, #tpu.memory_space<vmem>>, vector<1x32xf32>
      %34 = vector.broadcast %32 : vector<128x1xf32> to vector<128x32xf32>
      %35 = vector.broadcast %33 : vector<1x32xf32> to vector<128x32xf32>
      %36 = arith.mulf %34, %35 : vector<128x32xf32>
      %37 = arith.addf %31, %36 : vector<128x32xf32>
      %38 = vector.extract_strided_slice %20 {offsets = [0, 3], sizes = [128, 1], strides = [1, 1]} : vector<128x4xf32> to vector<128x1xf32>
      %c3 = arith.constant 3 : index
      %c0_11 = arith.constant 0 : index
      %39 = vector.load %arg6[%c3, %c0_11] : memref<4x36xf32, #tpu.memory_space<vmem>>, vector<1x32xf32>
      %40 = vector.broadcast %38 : vector<128x1xf32> to vector<128x32xf32>
      %41 = vector.broadcast %39 : vector<1x32xf32> to vector<128x32xf32>
      %42 = arith.mulf %40, %41 : vector<128x32xf32>
      %43 = arith.addf %37, %42 : vector<128x32xf32>
      %44 = vector.extract_strided_slice %12 {offsets = [0, 0], sizes = [128, 32], strides = [1, 1]} : vector<128x36xf32> to vector<128x32xf32>
      %45 = arith.mulf %44, %43 : vector<128x32xf32>
      %cst_12 = arith.constant 0.000000e+00 : f32
      %46 = vector.broadcast %cst_12 : f32 to vector<128x32xf32>
      %47 = arith.cmpf ogt, %45, %46 : vector<128x32xf32>
      %48 = math.exp %45 : vector<128x32xf32>
      %cst_13 = arith.constant 1.000000e+00 : f32
      %49 = vector.broadcast %cst_13 : f32 to vector<128x32xf32>
      %50 = arith.subf %48, %49 : vector<128x32xf32>
      %51 = arith.select %47, %45, %50 : vector<128x32xi1>, vector<128x32xf32>
      %c0_14 = arith.constant 0 : index
      %c0_15 = arith.constant 0 : index
      %52 = vector.load %arg8[%c0_14, %c0_15] : memref<128x32xf32, #tpu.memory_space<vmem>>, vector<128x32xf32>
      tpu.vector_store %arg8[%c0_14, %c0_15], %51 {strides = array<i32>} : memref<128x32xf32, #tpu.memory_space<vmem>>, vector<128x32xf32>,
    } else {
    }
    return
  }
  func.func @transform_0(%arg0: i32, %arg1: i32, %arg2: memref<1x1xi32, #tpu.memory_space<smem>>) -> (i32, i32) {
    %c0_i32 = arith.constant 0 : i32
    %c0_i32_0 = arith.constant 0 : i32
    return %arg0, %c0_i32 : i32, i32
  }
  func.func @transform_1(%arg0: i32, %arg1: i32, %arg2: memref<1x1xi32, #tpu.memory_space<smem>>) -> (i32, i32) {
    %c0_i32 = arith.constant 0 : i32
    %c0_i32_0 = arith.constant 0 : i32
    return %c0_i32, %arg1 : i32, i32
  }
  func.func @transform_2(%arg0: i32, %arg1: i32, %arg2: memref<1x1xi32, #tpu.memory_space<smem>>) -> (i32, i32) {
    %c0_i32 = arith.constant 0 : i32
    %c0_i32_0 = arith.constant 0 : i32
    return %arg1, %c0_i32 : i32, i32
  }
  func.func @transform_3(%arg0: i32, %arg1: i32, %arg2: memref<1x1xi32, #tpu.memory_space<smem>>) -> (i32, i32) {
    %c0_i32 = arith.constant 0 : i32
    %c0_i32_0 = arith.constant 0 : i32
    %c0_i32_1 = arith.constant 0 : i32
    return %c0_i32, %c0_i32_0 : i32, i32
  }
  func.func @transform_4(%arg0: i32, %arg1: i32, %arg2: memref<1x1xi32, #tpu.memory_space<smem>>) -> (i32, i32) {
    %c0_i32 = arith.constant 0 : i32
    return %arg0, %arg1 : i32, i32
  }
  func.func @transform_5(%arg0: i32, %arg1: i32, %arg2: memref<1x1xi32, #tpu.memory_space<smem>>) -> (i32, i32) {
    %c0_i32 = arith.constant 0 : i32
    %c0_i32_0 = arith.constant 0 : i32
    return %arg0, %c0_i32 : i32, i32
  }
}

module attributes {stable_mosaic.version = 11 : i64} {
  func.func @_gat_attention_kernel(%arg0: i32, %arg1: i32, %arg2: memref<1x1xi32, #tpu.memory_space<smem>>, %arg3: memref<128x1xf32, #tpu.memory_space<vmem>>, %arg4: memref<1x128xf32, #tpu.memory_space<vmem>>, %arg5: memref<128x5xf32, #tpu.memory_space<vmem>>, %arg6: memref<1x5xf32, #tpu.memory_space<vmem>>, %arg7: memref<128x128xi8, #tpu.memory_space<vmem>>, %arg8: memref<128x4xf32, #tpu.memory_space<vmem>>, %arg9: memref<128x5xf32, #tpu.memory_space<vmem>>) attributes {dimension_semantics = [#tpu.dimension_semantics<parallel>, #tpu.dimension_semantics<arbitrary>], iteration_bounds = array<i64: 1, 1>, scalar_prefetch = 1 : i64, scratch_operands = 1 : i64, tpu.core_type = #tpu.core_type<tc>, window_params = [{transform_indices = @transform_0, window_bounds = array<i64: 128, 1>}, {transform_indices = @transform_1, window_bounds = array<i64: 1, 128>}, {transform_indices = @transform_2, window_bounds = array<i64: 128, 5>}, {pipeline_mode = #tpu.pipeline_mode<synchronous>, transform_indices = @transform_3, window_bounds = array<i64: 1, 5>}, {transform_indices = @transform_4, window_bounds = array<i64: 128, 128>}, {transform_indices = @transform_5, window_bounds = array<i64: 128, 4>}]} {
    %c0_i32 = arith.constant 0 : i32
    %0 = arith.cmpi eq, %arg1, %c0_i32 : i32
    %1 = arith.extui %0 : i1 to i32
    %c0_i32_0 = arith.constant 0 : i32
    %2 = arith.cmpi ne, %1, %c0_i32_0 : i32
    scf.if %2 {
      %cst = arith.constant 0.000000e+00 : f32
      %12 = vector.broadcast %cst : f32 to vector<128x5xf32>
      %c0 = arith.constant 0 : index
      %c0_5 = arith.constant 0 : index
      %13 = vector.load %arg9[%c0, %c0_5] : memref<128x5xf32, #tpu.memory_space<vmem>>, vector<128x5xf32>
      tpu.vector_store %arg9[%c0, %c0_5], %12 {strides = array<i32>} : memref<128x5xf32, #tpu.memory_space<vmem>>, vector<128x5xf32>,
    } else {
    }
    %3 = arith.index_cast %arg0 : i32 to index
    %4 = arith.index_cast %arg1 : i32 to index
    %5 = memref.load %arg2[%3, %4] : memref<1x1xi32, #tpu.memory_space<smem>>
    %c0_i32_1 = arith.constant 0 : i32
    %6 = arith.cmpi sgt, %5, %c0_i32_1 : i32
    %7 = arith.extui %6 : i1 to i32
    %c0_i32_2 = arith.constant 0 : i32
    %8 = arith.cmpi ne, %7, %c0_i32_2 : i32
    scf.if %8 {
      %c0 = arith.constant 0 : index
      %c0_5 = arith.constant 0 : index
      %12 = vector.load %arg7[%c0, %c0_5] : memref<128x128xi8, #tpu.memory_space<vmem>>, vector<128x128xi8>
      %c0_i8 = arith.constant 0 : i8
      %13 = vector.broadcast %c0_i8 : i8 to vector<128x128xi8>
      %14 = arith.cmpi ne, %12, %13 : vector<128x128xi8>
      %c0_6 = arith.constant 0 : index
      %c0_7 = arith.constant 0 : index
      %15 = vector.load %arg3[%c0_6, %c0_7] : memref<128x1xf32, #tpu.memory_space<vmem>>, vector<128x1xf32>
      %c0_8 = arith.constant 0 : index
      %c0_9 = arith.constant 0 : index
      %16 = vector.load %arg4[%c0_8, %c0_9] : memref<1x128xf32, #tpu.memory_space<vmem>>, vector<1x128xf32>
      %c0_10 = arith.constant 0 : index
      %c0_11 = arith.constant 0 : index
      %17 = vector.load %arg5[%c0_10, %c0_11] : memref<128x5xf32, #tpu.memory_space<vmem>>, vector<128x5xf32>
      %18 = vector.broadcast %15 : vector<128x1xf32> to vector<128x128xf32>
      %19 = vector.broadcast %16 : vector<1x128xf32> to vector<128x128xf32>
      %20 = arith.addf %18, %19 : vector<128x128xf32>
      %cst = arith.constant 0.000000e+00 : f32
      %21 = vector.broadcast %cst : f32 to vector<128x128xf32>
      %22 = arith.cmpf ogt, %20, %21 : vector<128x128xf32>
      %cst_12 = arith.constant 2.000000e-01 : f32
      %23 = vector.broadcast %cst_12 : f32 to vector<128x128xf32>
      %24 = arith.mulf %23, %20 : vector<128x128xf32>
      %25 = arith.select %22, %20, %24 : vector<128x128xi1>, vector<128x128xf32>
      %cst_13 = arith.constant 0.000000e+00 : f32
      %26 = vector.broadcast %cst_13 : f32 to vector<128x128xf32>
      %27 = arith.subf %26, %25 : vector<128x128xf32>
      %28 = math.exp %27 : vector<128x128xf32>
      %cst_14 = arith.constant 0.000000e+00 : f32
      %29 = vector.broadcast %cst_14 : f32 to vector<128x128xf32>
      %30 = arith.select %14, %28, %29 : vector<128x128xi1>, vector<128x128xf32>
      %c0_15 = arith.constant 0 : index
      %c0_16 = arith.constant 0 : index
      %31 = vector.load %arg6[%c0_15, %c0_16] : memref<1x5xf32, #tpu.memory_space<vmem>>, vector<1x5xf32>
      %32 = vector.broadcast %31 : vector<1x5xf32> to vector<128x5xf32>
      %33 = arith.mulf %17, %32 : vector<128x5xf32>
      %34 = arith.truncf %30 : vector<128x128xf32> to vector<128x128xbf16>
      %35 = arith.truncf %33 : vector<128x5xf32> to vector<128x5xbf16>
      %cst_17 = arith.constant dense<0.000000e+00> : vector<128x5xf32>
      %36 = tpu.matmul %34, %35, %cst_17 {dimension_numbers = #tpu.dot_dimension_numbers<[1], [0], [0], [1], [0, 0, 1, 1], [], []>} : vector<128x128xbf16>, vector<128x5xbf16>, vector<128x5xf32> -> vector<128x5xf32>
      %c0_18 = arith.constant 0 : index
      %c0_19 = arith.constant 0 : index
      %37 = vector.load %arg9[%c0_18, %c0_19] : memref<128x5xf32, #tpu.memory_space<vmem>>, vector<128x5xf32>
      %38 = arith.addf %37, %36 : vector<128x5xf32>
      %c0_20 = arith.constant 0 : index
      %c0_21 = arith.constant 0 : index
      %39 = vector.load %arg9[%c0_20, %c0_21] : memref<128x5xf32, #tpu.memory_space<vmem>>, vector<128x5xf32>
      tpu.vector_store %arg9[%c0_20, %c0_21], %38 {strides = array<i32>} : memref<128x5xf32, #tpu.memory_space<vmem>>, vector<128x5xf32>,
    } else {
    }
    %c0_i32_3 = arith.constant 0 : i32
    %9 = arith.cmpi eq, %arg1, %c0_i32_3 : i32
    %10 = arith.extui %9 : i1 to i32
    %c0_i32_4 = arith.constant 0 : i32
    %11 = arith.cmpi ne, %10, %c0_i32_4 : i32
    scf.if %11 {
      %c0 = arith.constant 0 : index
      %c0_5 = arith.constant 0 : index
      %12 = vector.load %arg9[%c0, %c0_5] : memref<128x5xf32, #tpu.memory_space<vmem>>, vector<128x5xf32>
      %13 = vector.extract_strided_slice %12 {offsets = [0, 4], sizes = [128, 1], strides = [1, 1]} : vector<128x5xf32> to vector<128x1xf32>
      %cst = arith.constant 1.000000e-30 : f32
      %14 = vector.broadcast %cst : f32 to vector<128x1xf32>
      %15 = arith.maximumf %13, %14 : vector<128x1xf32>
      %16 = tpu.reciprocal %15 {approx = true} : vector<128x1xf32> -> vector<128x1xf32>
      %17 = arith.mulf %15, %16 : vector<128x1xf32>
      %cst_6 = arith.constant 2.000000e+00 : f32
      %18 = vector.broadcast %cst_6 : f32 to vector<128x1xf32>
      %19 = arith.subf %18, %17 : vector<128x1xf32>
      %20 = arith.mulf %16, %19 : vector<128x1xf32>
      %c0_7 = arith.constant 0 : index
      %c0_8 = arith.constant 0 : index
      %21 = vector.load %arg6[%c0_7, %c0_8] : memref<1x5xf32, #tpu.memory_space<vmem>>, vector<1x4xf32>
      %22 = vector.broadcast %20 : vector<128x1xf32> to vector<128x4xf32>
      %23 = vector.broadcast %21 : vector<1x4xf32> to vector<128x4xf32>
      %24 = arith.mulf %22, %23 : vector<128x4xf32>
      %25 = vector.extract_strided_slice %12 {offsets = [0, 0], sizes = [128, 4], strides = [1, 1]} : vector<128x5xf32> to vector<128x4xf32>
      %26 = arith.mulf %25, %24 : vector<128x4xf32>
      %cst_9 = arith.constant 0.000000e+00 : f32
      %27 = vector.broadcast %cst_9 : f32 to vector<128x4xf32>
      %28 = arith.cmpf ogt, %26, %27 : vector<128x4xf32>
      %29 = math.exp %26 : vector<128x4xf32>
      %cst_10 = arith.constant 1.000000e+00 : f32
      %30 = vector.broadcast %cst_10 : f32 to vector<128x4xf32>
      %31 = arith.subf %29, %30 : vector<128x4xf32>
      %32 = arith.select %28, %26, %31 : vector<128x4xi1>, vector<128x4xf32>
      %cst_11 = arith.constant dense<0xFF800000> : vector<128xf32>
      %33 = vector.multi_reduction <maximumf>, %32, %cst_11 [1] : vector<128x4xf32> to vector<128xf32>
      %34 = vector.shape_cast %33 : vector<128xf32> to vector<128x1xf32>
      %35 = vector.broadcast %34 : vector<128x1xf32> to vector<128x4xf32>
      %36 = arith.subf %32, %35 : vector<128x4xf32>
      %37 = math.exp %36 : vector<128x4xf32>
      %cst_12 = arith.constant dense<0.000000e+00> : vector<128xf32>
      %38 = vector.multi_reduction <add>, %37, %cst_12 [1] : vector<128x4xf32> to vector<128xf32>
      %39 = vector.shape_cast %38 : vector<128xf32> to vector<128x1xf32>
      %40 = math.log %39 : vector<128x1xf32>
      %41 = vector.broadcast %40 : vector<128x1xf32> to vector<128x4xf32>
      %42 = arith.subf %36, %41 : vector<128x4xf32>
      %c0_13 = arith.constant 0 : index
      %c0_14 = arith.constant 0 : index
      %43 = vector.load %arg8[%c0_13, %c0_14] : memref<128x4xf32, #tpu.memory_space<vmem>>, vector<128x4xf32>
      tpu.vector_store %arg8[%c0_13, %c0_14], %42 {strides = array<i32>} : memref<128x4xf32, #tpu.memory_space<vmem>>, vector<128x4xf32>,
    } else {
    }
    return
  }
  func.func @transform_0(%arg0: i32, %arg1: i32, %arg2: memref<1x1xi32, #tpu.memory_space<smem>>) -> (i32, i32) {
    %c0_i32 = arith.constant 0 : i32
    %c0_i32_0 = arith.constant 0 : i32
    return %arg0, %c0_i32 : i32, i32
  }
  func.func @transform_1(%arg0: i32, %arg1: i32, %arg2: memref<1x1xi32, #tpu.memory_space<smem>>) -> (i32, i32) {
    %c0_i32 = arith.constant 0 : i32
    %c0_i32_0 = arith.constant 0 : i32
    return %c0_i32, %arg1 : i32, i32
  }
  func.func @transform_2(%arg0: i32, %arg1: i32, %arg2: memref<1x1xi32, #tpu.memory_space<smem>>) -> (i32, i32) {
    %c0_i32 = arith.constant 0 : i32
    %c0_i32_0 = arith.constant 0 : i32
    return %arg1, %c0_i32 : i32, i32
  }
  func.func @transform_3(%arg0: i32, %arg1: i32, %arg2: memref<1x1xi32, #tpu.memory_space<smem>>) -> (i32, i32) {
    %c0_i32 = arith.constant 0 : i32
    %c0_i32_0 = arith.constant 0 : i32
    %c0_i32_1 = arith.constant 0 : i32
    return %c0_i32, %c0_i32_0 : i32, i32
  }
  func.func @transform_4(%arg0: i32, %arg1: i32, %arg2: memref<1x1xi32, #tpu.memory_space<smem>>) -> (i32, i32) {
    %c0_i32 = arith.constant 0 : i32
    return %arg0, %arg1 : i32, i32
  }
  func.func @transform_5(%arg0: i32, %arg1: i32, %arg2: memref<1x1xi32, #tpu.memory_space<smem>>) -> (i32, i32) {
    %c0_i32 = arith.constant 0 : i32
    %c0_i32_0 = arith.constant 0 : i32
    return %arg0, %c0_i32 : i32, i32
  }
}

</mosaic_0001>

<llo_original>
// kernel: spgat_forward.3
$region0: #{spgat_forward.3}
  #allocation0 [shape = 'u32[]', space=smem, size = 0x4, offset = 0x4, fixed_abs, tag = 'smem constant byte address 0x4 - core index']
  #allocation1 [shape = 'u32[144,128]{1,0:T(1,128)}', space=vmem, size = 0x12000, scoped, tag = 'internal scratch']
  #allocation2 [shape = 'f32[128,5]{1,0:T(8,128)}', space=vmem, size = 0x10000, scoped, tag = 'scratch operand']
  #allocation3 [shape = 's32[1]{0}', space=sflag, size = 0x4, scoped, tag = 'scoped memory for spgat_forward.3']
  #allocation4 [shape = 's32[1,1]{1,0:T(1,128)S(6)}', space=smem, size = 0x200, scoped, tag = 'prefetched SMEM operand 0']
  %s0 = inlined_call_operand.<no memory space> [shape: s32[1,1], index: 0, kind: input, shape index: {}]
  %s1 = inlined_call_operand.vmem [shape: f32[128,1], index: 1, kind: input, shape index: {}]
  %s2 = inlined_call_operand.vmem [shape: f32[1,128], index: 2, kind: input, shape index: {}]
  %s3 = inlined_call_operand.vmem [shape: f32[128,5], index: 3, kind: input, shape index: {}]
  %s4 = inlined_call_operand.vmem [shape: f32[1,5], index: 4, kind: input, shape index: {}]
  %s5 = inlined_call_operand.vmem [shape: s8[128,128], index: 5, kind: input, shape index: {}]
  %s6 = inlined_call_operand.vmem [shape: f32[128,4], index: 6, kind: output, shape index: {}]
  %s7 = sld [smem:[#allocation0]]
  $region42: #{spgat_forward.3} parent=0
    _
  %s9 = ssub.s32 1, %s7
  %s10 = scalar_select 0, %s9, %s7
  %11 = sst [smem:[#allocation4]] %s0
  // Predicated region
  $region2: #{spgat_forward.3} parent=0 // pred_check
    _
  $region3: #{spgat_forward.3} parent=0 // pred_check_branch
    %13 = sbr.rel (0) target = $region5
  $region4: #{spgat_forward.3} parent=0 // pred_region
    _
  $region5: #{spgat_forward.3} parent=0 // pred_fallthru
    _
  // Predicated region
  $region6: #{spgat_forward.3} parent=0 // pred_check
    _
  $region7: #{spgat_forward.3} parent=0 // pred_check_branch
    %15 = sbr.rel (0) target = $region9
  $region8: #{spgat_forward.3} parent=0 // pred_region
    _
  $region9: #{spgat_forward.3} parent=0 // pred_fallthru
    _
  // Predicated region
  $region10: #{spgat_forward.3} parent=0 // pred_check
    _
  $region11: #{spgat_forward.3} parent=0 // pred_check_branch
    %17 = sbr.rel (0) target = $region13
  $region12: #{spgat_forward.3} parent=0 // pred_region
    _
  $region13: #{spgat_forward.3} parent=0 // pred_fallthru
    _
  // Predicated region
  $region14: #{spgat_forward.3} parent=0 // pred_check
    _
  $region15: #{spgat_forward.3} parent=0 // pred_check_branch
    %19 = sbr.rel (0) target = $region17
  $region16: #{spgat_forward.3} parent=0 // pred_region
    _
  $region17: #{spgat_forward.3} parent=0 // pred_fallthru
    _
  // Predicated region
  $region18: #{spgat_forward.3} parent=0 // pred_check
    _
  $region19: #{spgat_forward.3} parent=0 // pred_check_branch
    %21 = sbr.rel (0) target = $region21
  $region20: #{spgat_forward.3} parent=0 // pred_region
    _
  $region21: #{spgat_forward.3} parent=0 // pred_fallthru
    _
  %p25 = scmp.eq.s32.totalorder 0, 0
  // Predicated region
  $region22: #{spgat_forward.3} parent=0 // pred_check
    %p26 = pneg %p25
  $region23: #{spgat_forward.3} parent=0 // pred_check_branch
    %28 = sbr.rel (%p26) target = $region25
  $region24: #{spgat_forward.3} parent=0 // pred_region
    %vm29 = vcmask 39936
    %30 = vst.msk [vmem:[#allocation2] sm:$0xff] %vm29, 0.0
    %31 = vst.msk [vmem:[#allocation2 + $0x8] sm:$0xff] %vm29, 0.0
    %32 = vst.msk [vmem:[#allocation2 + $0x10] sm:$0xff] %vm29, 0.0
    %33 = vst.msk [vmem:[#allocation2 + $0x18] sm:$0xff] %vm29, 0.0
    %34 = vst.msk [vmem:[#allocation2 + $0x20] sm:$0xff] %vm29, 0.0
    %35 = vst.msk [vmem:[#allocation2 + $0x28] sm:$0xff] %vm29, 0.0
    %36 = vst.msk [vmem:[#allocation2 + $0x30] sm:$0xff] %vm29, 0.0
    %37 = vst.msk [vmem:[#allocation2 + $0x38] sm:$0xff] %vm29, 0.0
    %38 = vst.msk [vmem:[#allocation2 + $0x40] sm:$0xff] %vm29, 0.0
    %39 = vst.msk [vmem:[#allocation2 + $0x48] sm:$0xff] %vm29, 0.0
    %40 = vst.msk [vmem:[#allocation2 + $0x50] sm:$0xff] %vm29, 0.0
    %41 = vst.msk [vmem:[#allocation2 + $0x58] sm:$0xff] %vm29, 0.0
    %42 = vst.msk [vmem:[#allocation2 + $0x60] sm:$0xff] %vm29, 0.0
    %43 = vst.msk [vmem:[#allocation2 + $0x68] sm:$0xff] %vm29, 0.0
    %44 = vst.msk [vmem:[#allocation2 + $0x70] sm:$0xff] %vm29, 0.0
    %45 = vst.msk [vmem:[#allocation2 + $0x78] sm:$0xff] %vm29, 0.0
  $region25: #{spgat_forward.3} parent=0 // pred_fallthru
    _
  %s46 = sadd.s32 0, 0
  %s47 = smul.u32 %s46, 128
  %s48 = sadd.s32 %s47, 0
  %s49 = sld [smem:[#allocation4 + %s48]]
  %p50 = scmp.gt.s32.totalorder %s49, 0
  // Predicated region
  $region26: #{spgat_forward.3} parent=0 // pred_check
    %p51 = pneg %p50
  $region27: #{spgat_forward.3} parent=0 // pred_check_branch
    %53 = sbr.rel (%p51) target = $region29
  $region28: #{spgat_forward.3} parent=0 // pred_region
    %v54 = vld [vmem:[%s5] sm:$0xff]
    %v55 = vld [vmem:[%s5 + $0x8] sm:$0xff]
    %v56 = vld [vmem:[%s5 + $0x10] sm:$0xff]
    %v57 = vld [vmem:[%s5 + $0x18] sm:$0xff]
    %vm58 = vnez %v54
    %vm59 = vnez %v55
    %vm60 = vnez %v56
    %vm61 = vnez %v57
    %v62 = vld [vmem:[%s1] sm:$0xff]
    %v63 = vld [vmem:[%s1 + $0x8] sm:$0xff]
    %v64 = vld [vmem:[%s1 + $0x10] sm:$0xff]
    %v65 = vld [vmem:[%s1 + $0x18] sm:$0xff]
    %v66 = vld [vmem:[%s1 + $0x20] sm:$0xff]
    %v67 = vld [vmem:[%s1 + $0x28] sm:$0xff]
    %v68 = vld [vmem:[%s1 + $0x30] sm:$0xff]
    %v69 = vld [vmem:[%s1 + $0x38] sm:$0xff]
    %v70 = vld [vmem:[%s1 + $0x40] sm:$0xff]
    %v71 = vld [vmem:[%s1 + $0x48] sm:$0xff]
    %v72 = vld [vmem:[%s1 + $0x50] sm:$0xff]
    %v73 = vld [vmem:[%s1 + $0x58] sm:$0xff]
    %v74 = vld [vmem:[%s1 + $0x60] sm:$0xff]
    %v75 = vld [vmem:[%s1 + $0x68] sm:$0xff]
    %v76 = vld [vmem:[%s1 + $0x70] sm:$0xff]
    %v77 = vld [vmem:[%s1 + $0x78] sm:$0xff]
    %v78 = vld [vmem:[%s2] sm:$0x1]
    %v79 = vld [vmem:[%s3] sm:$0xff]
    %v80 = vld [vmem:[%s3 + $0x8] sm:$0xff]
    %v81 = vld [vmem:[%s3 + $0x10] sm:$0xff]
    %v82 = vld [vmem:[%s3 + $0x18] sm:$0xff]
    %v83 = vld [vmem:[%s3 + $0x20] sm:$0xff]
    %v84 = vld [vmem:[%s3 + $0x28] sm:$0xff]
    %v85 = vld [vmem:[%s3 + $0x30] sm:$0xff]
    %v86 = vld [vmem:[%s3 + $0x38] sm:$0xff]
    %v87 = vld [vmem:[%s3 + $0x40] sm:$0xff]
    %v88 = vld [vmem:[%s3 + $0x48] sm:$0xff]
    %v89 = vld [vmem:[%s3 + $0x50] sm:$0xff]
    %v90 = vld [vmem:[%s3 + $0x58] sm:$0xff]
    %v91 = vld [vmem:[%s3 + $0x60] sm:$0xff]
    %v92 = vld [vmem:[%s3 + $0x68] sm:$0xff]
    %v93 = vld [vmem:[%s3 + $0x70] sm:$0xff]
    %v94 = vld [vmem:[%s3 + $0x78] sm:$0xff]
    %96 = vset.pattern.permute.xlu0 0
    %97 = vperm.xlu0 %96, %v62
    %v98 = vpop.permute.xlu0 %97
    %101 = vset.pattern.permute.xlu0 0
    %102 = vperm.xlu0 %101, %v63
    %v103 = vpop.permute.xlu0 %102
    %106 = vset.pattern.permute.xlu0 0
    %107 = vperm.xlu0 %106, %v64
    %v108 = vpop.permute.xlu0 %107
    %111 = vset.pattern.permute.xlu0 0
    %112 = vperm.xlu0 %111, %v65
    %v113 = vpop.permute.xlu0 %112
    %116 = vset.pattern.permute.xlu0 0
    %117 = vperm.xlu0 %116, %v66
    %v118 = vpop.permute.xlu0 %117
    %121 = vset.pattern.permute.xlu0 0
    %122 = vperm.xlu0 %121, %v67
    %v123 = vpop.permute.xlu0 %122
    %126 = vset.pattern.permute.xlu0 0
    %127 = vperm.xlu0 %126, %v68
    %v128 = vpop.permute.xlu0 %127
    %131 = vset.pattern.permute.xlu0 0
    %132 = vperm.xlu0 %131, %v69
    %v133 = vpop.permute.xlu0 %132
    %136 = vset.pattern.permute.xlu0 0
    %137 = vperm.xlu0 %136, %v70
    %v138 = vpop.permute.xlu0 %137
    %141 = vset.pattern.permute.xlu0 0
    %142 = vperm.xlu0 %141, %v71
    %v143 = vpop.permute.xlu0 %142
    %146 = vset.pattern.permute.xlu0 0
    %147 = vperm.xlu0 %146, %v72
    %v148 = vpop.permute.xlu0 %147
    %151 = vset.pattern.permute.xlu0 0
    %152 = vperm.xlu0 %151, %v73
    %v153 = vpop.permute.xlu0 %152
    %156 = vset.pattern.permute.xlu0 0
    %157 = vperm.xlu0 %156, %v74
    %v158 = vpop.permute.xlu0 %157
    %161 = vset.pattern.permute.xlu0 0
    %162 = vperm.xlu0 %161, %v75
    %v163 = vpop.permute.xlu0 %162
    %166 = vset.pattern.permute.xlu0 0
    %167 = vperm.xlu0 %166, %v76
    %v168 = vpop.permute.xlu0 %167
    %171 = vset.pattern.permute.xlu0 0
    %172 = vperm.xlu0 %171, %v77
    %v173 = vpop.permute.xlu0 %172
    %v176 = vlaneseq
    %v177 = vshrl.u32 %v176, 7
    %v178 = vsub.s32 0, %v177
    %v179 = vrot.slane %v78, %v178
    %v181 = vadd.f32 %v98, %v179
    %v182 = vadd.f32 %v103, %v179
    %v183 = vadd.f32 %v108, %v179
    %v184 = vadd.f32 %v113, %v179
    %v185 = vadd.f32 %v118, %v179
    %v186 = vadd.f32 %v123, %v179
    %v187 = vadd.f32 %v128, %v179
    %v188 = vadd.f32 %v133, %v179
    %v189 = vadd.f32 %v138, %v179
    %v190 = vadd.f32 %v143, %v179
    %v191 = vadd.f32 %v148, %v179
    %v192 = vadd.f32 %v153, %v179
    %v193 = vadd.f32 %v158, %v179
    %v194 = vadd.f32 %v163, %v179
    %v195 = vadd.f32 %v168, %v179
    %v196 = vadd.f32 %v173, %v179
    %vm197 = vcmp.gt.f32.partialorder %v181, 0.0
    %vm198 = vcmp.gt.f32.partialorder %v182, 0.0
    %vm199 = vcmp.gt.f32.partialorder %v183, 0.0
    %vm200 = vcmp.gt.f32.partialorder %v184, 0.0
    %vm201 = vcmp.gt.f32.partialorder %v185, 0.0
    %vm202 = vcmp.gt.f32.partialorder %v186, 0.0
    %vm203 = vcmp.gt.f32.partialorder %v187, 0.0
    %vm204 = vcmp.gt.f32.partialorder %v188, 0.0
    %vm205 = vcmp.gt.f32.partialorder %v189, 0.0
    %vm206 = vcmp.gt.f32.partialorder %v190, 0.0
    %vm207 = vcmp.gt.f32.partialorder %v191, 0.0
    %vm208 = vcmp.gt.f32.partialorder %v192, 0.0
    %vm209 = vcmp.gt.f32.partialorder %v193, 0.0
    %vm210 = vcmp.gt.f32.partialorder %v194, 0.0
    %vm211 = vcmp.gt.f32.partialorder %v195, 0.0
    %vm212 = vcmp.gt.f32.partialorder %v196, 0.0
    %v213 = vmul.f32 %v181, 0.2
    %v214 = vmul.f32 %v182, 0.2
    %v215 = vmul.f32 %v183, 0.2
    %v216 = vmul.f32 %v184, 0.2
    %v217 = vmul.f32 %v185, 0.2
    %v218 = vmul.f32 %v186, 0.2
    %v219 = vmul.f32 %v187, 0.2
    %v220 = vmul.f32 %v188, 0.2
    %v221 = vmul.f32 %v189, 0.2
    %v222 = vmul.f32 %v190, 0.2
    %v223 = vmul.f32 %v191, 0.2
    %v224 = vmul.f32 %v192, 0.2
    %v225 = vmul.f32 %v193, 0.2
    %v226 = vmul.f32 %v194, 0.2
    %v227 = vmul.f32 %v195, 0.2
    %v228 = vmul.f32 %v196, 0.2
    %v229 = vsel %vm197, %v181, %v213
    %v230 = vsel %vm198, %v182, %v214
    %v231 = vsel %vm199, %v183, %v215
    %v232 = vsel %vm200, %v184, %v216
    %v233 = vsel %vm201, %v185, %v217
    %v234 = vsel %vm202, %v186, %v218
    %v235 = vsel %vm203, %v187, %v219
    %v236 = vsel %vm204, %v188, %v220
    %v237 = vsel %vm205, %v189, %v221
    %v238 = vsel %vm206, %v190, %v222
    %v239 = vsel %vm207, %v191, %v223
    %v240 = vsel %vm208, %v192, %v224
    %v241 = vsel %vm209, %v193, %v225
    %v242 = vsel %vm210, %v194, %v226
    %v243 = vsel %vm211, %v195, %v227
    %v244 = vsel %vm212, %v196, %v228
    %v245 = vsub.f32 0.0, %v229
    %v246 = vsub.f32 0.0, %v230
    %v247 = vsub.f32 0.0, %v231
    %v248 = vsub.f32 0.0, %v232
    %v249 = vsub.f32 0.0, %v233
    %v250 = vsub.f32 0.0, %v234
    %v251 = vsub.f32 0.0, %v235
    %v252 = vsub.f32 0.0, %v236
    %v253 = vsub.f32 0.0, %v237
    %v254 = vsub.f32 0.0, %v238
    %v255 = vsub.f32 0.0, %v239
    %v256 = vsub.f32 0.0, %v240
    %v257 = vsub.f32 0.0, %v241
    %v258 = vsub.f32 0.0, %v242
    %v259 = vsub.f32 0.0, %v243
    %v260 = vsub.f32 0.0, %v244
    %v261 = vmul.f32 %v245, 1.442695
    %v262 = vpow.pop %v261
    %v263 = vmul.f32 %v246, 1.442695
    %v264 = vpow.pop %v263
    %v265 = vmul.f32 %v247, 1.442695
    %v266 = vpow.pop %v265
    %v267 = vmul.f32 %v248, 1.442695
    %v268 = vpow.pop %v267
    %v269 = vmul.f32 %v249, 1.442695
    %v270 = vpow.pop %v269
    %v271 = vmul.f32 %v250, 1.442695
    %v272 = vpow.pop %v271
    %v273 = vmul.f32 %v251, 1.442695
    %v274 = vpow.pop %v273
    %v275 = vmul.f32 %v252, 1.442695
    %v276 = vpow.pop %v275
    %v277 = vmul.f32 %v253, 1.442695
    %v278 = vpow.pop %v277
    %v279 = vmul.f32 %v254, 1.442695
    %v280 = vpow.pop %v279
    %v281 = vmul.f32 %v255, 1.442695
    %v282 = vpow.pop %v281
    %v283 = vmul.f32 %v256, 1.442695
    %v284 = vpow.pop %v283
    %v285 = vmul.f32 %v257, 1.442695
    %v286 = vpow.pop %v285
    %v287 = vmul.f32 %v258, 1.442695
    %v288 = vpow.pop %v287
    %v289 = vmul.f32 %v259, 1.442695
    %v290 = vpow.pop %v289
    %v291 = vmul.f32 %v260, 1.442695
    %v292 = vpow.pop %v291
    %v293 = vsel %vm58, 16843009, 0
    %v294 = vsel %vm59, 16843009, 0
    %v295 = vsel %vm60, 16843009, 0
    %v296 = vsel %vm61, 16843009, 0
    %v297 = vunpack.c.0.s8 %v293
    %v298 = vunpack.c.1.s8 %v293
    %v299 = vunpack.c.2.s8 %v293
    %v300 = vunpack.c.3.s8 %v293
    %v301 = vunpack.c.0.s8 %v294
    %v302 = vunpack.c.1.s8 %v294
    %v303 = vunpack.c.2.s8 %v294
    %v304 = vunpack.c.3.s8 %v294
    %v305 = vunpack.c.0.s8 %v295
    %v306 = vunpack.c.1.s8 %v295
    %v307 = vunpack.c.2.s8 %v295
    %v308 = vunpack.c.3.s8 %v295
    %v309 = vunpack.c.0.s8 %v296
    %v310 = vunpack.c.1.s8 %v296
    %v311 = vunpack.c.2.s8 %v296
    %v312 = vunpack.c.3.s8 %v296
    %v313 = vpack.c.b16 %v297, %v297
    %v314 = vpack.c.b8 %v313, %v313
    %v315 = vpack.c.b16 %v298, %v298
    %v316 = vpack.c.b8 %v315, %v315
    %v317 = vpack.c.b16 %v299, %v299
    %v318 = vpack.c.b8 %v317, %v317
    %v319 = vpack.c.b16 %v300, %v300
    %v320 = vpack.c.b8 %v319, %v319
    %v321 = vpack.c.b16 %v301, %v301
    %v322 = vpack.c.b8 %v321, %v321
    %v323 = vpack.c.b16 %v302, %v302
    %v324 = vpack.c.b8 %v323, %v323
    %v325 = vpack.c.b16 %v303, %v303
    %v326 = vpack.c.b8 %v325, %v325
    %v327 = vpack.c.b16 %v304, %v304
    %v328 = vpack.c.b8 %v327, %v327
    %v329 = vpack.c.b16 %v305, %v305
    %v330 = vpack.c.b8 %v329, %v329
    %v331 = vpack.c.b16 %v306, %v306
    %v332 = vpack.c.b8 %v331, %v331
    %v333 = vpack.c.b16 %v307, %v307
    %v334 = vpack.c.b8 %v333, %v333
    %v335 = vpack.c.b16 %v308, %v308
    %v336 = vpack.c.b8 %v335, %v335
    %v337 = vpack.c.b16 %v309, %v309
    %v338 = vpack.c.b8 %v337, %v337
    %v339 = vpack.c.b16 %v310, %v310
    %v340 = vpack.c.b8 %v339, %v339
    %v341 = vpack.c.b16 %v311, %v311
    %v342 = vpack.c.b8 %v341, %v341
    %v343 = vpack.c.b16 %v312, %v312
    %v344 = vpack.c.b8 %v343, %v343
    %vm345 = vnez %v314
    %vm346 = vnez %v316
    %vm347 = vnez %v318
    %vm348 = vnez %v320
    %vm349 = vnez %v322
    %vm350 = vnez %v324
    %vm351 = vnez %v326
    %vm352 = vnez %v328
    %vm353 = vnez %v330
    %vm354 = vnez %v332
    %vm355 = vnez %v334
    %vm356 = vnez %v336
    %vm357 = vnez %v338
    %vm358 = vnez %v340
    %vm359 = vnez %v342
    %vm360 = vnez %v344
    %v361 = vsel %vm345, 16843009, 0
    %v362 = vsel %vm346, 16843009, 0
    %v363 = vsel %vm347, 16843009, 0
    %v364 = vsel %vm348, 16843009, 0
    %v365 = vsel %vm349, 16843009, 0
    %v366 = vsel %vm350, 16843009, 0
    %v367 = vsel %vm351, 16843009, 0
    %v368 = vsel %vm352, 16843009, 0
    %v369 = vsel %vm353, 16843009, 0
    %v370 = vsel %vm354, 16843009, 0
    %v371 = vsel %vm355, 16843009, 0
    %v372 = vsel %vm356, 16843009, 0
    %v373 = vsel %vm357, 16843009, 0
    %v374 = vsel %vm358, 16843009, 0
    %v375 = vsel %vm359, 16843009, 0
    %v376 = vsel %vm360, 16843009, 0
    %v377 = vunpack.c.0.s8 %v361
    %v378 = vunpack.c.0.s8 %v362
    %v379 = vunpack.c.0.s8 %v363
    %v380 = vunpack.c.0.s8 %v364
    %v381 = vunpack.c.0.s8 %v365
    %v382 = vunpack.c.0.s8 %v366
    %v383 = vunpack.c.0.s8 %v367
    %v384 = vunpack.c.0.s8 %v368
    %v385 = vunpack.c.0.s8 %v369
    %v386 = vunpack.c.0.s8 %v370
    %v387 = vunpack.c.0.s8 %v371
    %v388 = vunpack.c.0.s8 %v372
    %v389 = vunpack.c.0.s8 %v373
    %v390 = vunpack.c.0.s8 %v374
    %v391 = vunpack.c.0.s8 %v375
    %v392 = vunpack.c.0.s8 %v376
    %vm393 = vcmp.ne.s32.totalorder %v377, 0
    %vm394 = vcmp.ne.s32.totalorder %v378, 0
    %vm395 = vcmp.ne.s32.totalorder %v379, 0
    %vm396 = vcmp.ne.s32.totalorder %v380, 0
    %vm397 = vcmp.ne.s32.totalorder %v381, 0
    %vm398 = vcmp.ne.s32.totalorder %v382, 0
    %vm399 = vcmp.ne.s32.totalorder %v383, 0
    %vm400 = vcmp.ne.s32.totalorder %v384, 0
    %vm401 = vcmp.ne.s32.totalorder %v385, 0
    %vm402 = vcmp.ne.s32.totalorder %v386, 0
    %vm403 = vcmp.ne.s32.totalorder %v387, 0
    %vm404 = vcmp.ne.s32.totalorder %v388, 0
    %vm405 = vcmp.ne.s32.totalorder %v389, 0
    %vm406 = vcmp.ne.s32.totalorder %v390, 0
    %vm407 = vcmp.ne.s32.totalorder %v391, 0
    %vm408 = vcmp.ne.s32.totalorder %v392, 0
    %v409 = vsel %vm393, %v262, 0.0
    %v410 = vsel %vm394, %v264, 0.0
    %v411 = vsel %vm395, %v266, 0.0
    %v412 = vsel %vm396, %v268, 0.0
    %v413 = vsel %vm397, %v270, 0.0
    %v414 = vsel %vm398, %v272, 0.0
    %v415 = vsel %vm399, %v274, 0.0
    %v416 = vsel %vm400, %v276, 0.0
    %v417 = vsel %vm401, %v278, 0.0
    %v418 = vsel %vm402, %v280, 0.0
    %v419 = vsel %vm403, %v282, 0.0
    %v420 = vsel %vm404, %v284, 0.0
    %v421 = vsel %vm405, %v286, 0.0
    %v422 = vsel %vm406, %v288, 0.0
    %v423 = vsel %vm407, %v290, 0.0
    %v424 = vsel %vm408, %v292, 0.0
    %v425 = vld [vmem:[%s4] sm:$0x1]
    %v427 = vlaneseq
    %v428 = vshrl.u32 %v427, 7
    %v429 = vsub.s32 0, %v428
    %v430 = vrot.slane %v425, %v429
    %v432 = vmul.f32 %v79, %v430
    %v433 = vmul.f32 %v80, %v430
    %v434 = vmul.f32 %v81, %v430
    %v435 = vmul.f32 %v82, %v430
    %v436 = vmul.f32 %v83, %v430
    %v437 = vmul.f32 %v84, %v430
    %v438 = vmul.f32 %v85, %v430
    %v439 = vmul.f32 %v86, %v430
    %v440 = vmul.f32 %v87, %v430
    %v441 = vmul.f32 %v88, %v430
    %v442 = vmul.f32 %v89, %v430
    %v443 = vmul.f32 %v90, %v430
    %v444 = vmul.f32 %v91, %v430
    %v445 = vmul.f32 %v92, %v430
    %v446 = vmul.f32 %v93, %v430
    %v447 = vmul.f32 %v94, %v430
    %v448 = vpack.c.bf16 %v410, %v409
    %v449 = vpack.c.bf16 %v412, %v411
    %v450 = vpack.c.bf16 %v414, %v413
    %v451 = vpack.c.bf16 %v416, %v415
    %v452 = vpack.c.bf16 %v418, %v417
    %v453 = vpack.c.bf16 %v420, %v419
    %v454 = vpack.c.bf16 %v422, %v421
    %v455 = vpack.c.bf16 %v424, %v423
    %v456 = vpack.c.bf16 %v433, %v432
    %v457 = vpack.c.bf16 %v435, %v434
    %v458 = vpack.c.bf16 %v437, %v436
    %v459 = vpack.c.bf16 %v439, %v438
    %v460 = vpack.c.bf16 %v441, %v440
    %v461 = vpack.c.bf16 %v443, %v442
    %v462 = vpack.c.bf16 %v445, %v444
    %v463 = vpack.c.bf16 %v447, %v446
    %464 = vmatprep.subr.bf16.mxu0 0
    %465 = vmatpush1.bf16.msra.mxu0 %v456
    %466 = vmatprep.subr.bf16.mxu0 0
    %467 = vmatpush1.bf16.msra.mxu0 %v457
    %468 = vmatprep.subr.bf16.mxu0 0
    %469 = vmatpush1.bf16.msra.mxu0 %v458
    %470 = vmatprep.subr.bf16.mxu0 0
    %471 = vmatpush1.bf16.msra.mxu0 %v459
    %472 = vmatprep.subr.bf16.mxu0 0
    %473 = vmatpush1.bf16.msra.mxu0 %v460
    %474 = vmatprep.subr.bf16.mxu0 0
    %475 = vmatpush1.bf16.msra.mxu0 %v461
    %476 = vmatprep.subr.bf16.mxu0 0
    %477 = vmatpush1.bf16.msra.mxu0 %v462
    %478 = vmatprep.subr.bf16.mxu0 0
    %479 = vmatpush1.bf16.msra.mxu0 %v463
    %480 = vmatprep.subr.bf16.mxu0 0
    %481 = vmatpush1.bf16.msra.mxu0 0
    %482 = vmatprep.subr.bf16.mxu0 0
    %483 = vmatpush1.bf16.msra.mxu0 0
    %484 = vmatprep.subr.bf16.mxu0 0
    %485 = vmatpush1.bf16.msra.mxu0 0
    %486 = vmatprep.subr.bf16.mxu0 0
    %487 = vmatpush1.bf16.msra.mxu0 0
    %488 = vmatprep.subr.bf16.mxu0 0
    %489 = vmatpush1.bf16.msra.mxu0 0
    %490 = vmatprep.subr.bf16.mxu0 0
    %491 = vmatpush1.bf16.msra.mxu0 0
    %492 = vmatprep.subr.bf16.mxu0 0
    %493 = vmatpush1.bf16.msra.mxu0 0
    %494 = vmatprep.subr.bf16.mxu0 0
    %495 = vmatpush1.bf16.msra.mxu0 0
    %496 = vmatprep.mubr.bf16.mxu0 0
    %497 = vmatmul.mubr.bf16.gmra.mrb[0].mxu0 %v448
    %v498 = vpop.f32.mrb[0].mxu0
    %v499 = vadd.f32 0.0, %v498
    %v500 = vpop.f32.mrb[0].mxu0
    %v501 = vpop.f32.mrb[0].mxu0
    %v502 = vadd.f32 0.0, %v501
    %v503 = vpop.f32.mrb[0].mxu0
    %504 = vmatprep.mubr.bf16.mxu0 0
    %505 = vmatmul.mubr.bf16.gmra.mrb[0].mxu0 %v449
    %v506 = vpop.f32.mrb[0].mxu0
    %v507 = vadd.f32 0.0, %v506
    %v508 = vpop.f32.mrb[0].mxu0
    %v509 = vpop.f32.mrb[0].mxu0
    %v510 = vadd.f32 0.0, %v509
    %v511 = vpop.f32.mrb[0].mxu0
    %512 = vmatprep.mubr.bf16.mxu0 0
    %513 = vmatmul.mubr.bf16.gmra.mrb[0].mxu0 %v450
    %v514 = vpop.f32.mrb[0].mxu0
    %v515 = vadd.f32 0.0, %v514
    %v516 = vpop.f32.mrb[0].mxu0
    %v517 = vpop.f32.mrb[0].mxu0
    %v518 = vadd.f32 0.0, %v517
    %v519 = vpop.f32.mrb[0].mxu0
    %520 = vmatprep.mubr.bf16.mxu0 0
    %521 = vmatmul.mubr.bf16.gmra.mrb[0].mxu0 %v451
    %v522 = vpop.f32.mrb[0].mxu0
    %v523 = vadd.f32 0.0, %v522
    %v524 = vpop.f32.mrb[0].mxu0
    %v525 = vpop.f32.mrb[0].mxu0
    %v526 = vadd.f32 0.0, %v525
    %v527 = vpop.f32.mrb[0].mxu0
    %528 = vmatprep.mubr.bf16.mxu0 0
    %529 = vmatmul.mubr.bf16.gmra.mrb[0].mxu0 %v452
    %v530 = vpop.f32.mrb[0].mxu0
    %v531 = vadd.f32 0.0, %v530
    %v532 = vpop.f32.mrb[0].mxu0
    %v533 = vpop.f32.mrb[0].mxu0
    %v534 = vadd.f32 0.0, %v533
    %v535 = vpop.f32.mrb[0].mxu0
    %536 = vmatprep.mubr.bf16.mxu0 0
    %537 = vmatmul.mubr.bf16.gmra.mrb[0].mxu0 %v453
    %v538 = vpop.f32.mrb[0].mxu0
    %v539 = vadd.f32 0.0, %v538
    %v540 = vpop.f32.mrb[0].mxu0
    %v541 = vpop.f32.mrb[0].mxu0
    %v542 = vadd.f32 0.0, %v541
    %v543 = vpop.f32.mrb[0].mxu0
    %544 = vmatprep.mubr.bf16.mxu0 0
    %545 = vmatmul.mubr.bf16.gmra.mrb[0].mxu0 %v454
    %v546 = vpop.f32.mrb[0].mxu0
    %v547 = vadd.f32 0.0, %v546
    %v548 = vpop.f32.mrb[0].mxu0
    %v549 = vpop.f32.mrb[0].mxu0
    %v550 = vadd.f32 0.0, %v549
    %v551 = vpop.f32.mrb[0].mxu0
    %552 = vmatprep.mubr.bf16.mxu0 0
    %553 = vmatmul.mubr.bf16.gmra.mrb[0].mxu0 %v455
    %v554 = vpop.f32.mrb[0].mxu0
    %v555 = vadd.f32 0.0, %v554
    %v556 = vpop.f32.mrb[0].mxu0
    %v557 = vpop.f32.mrb[0].mxu0
    %v558 = vadd.f32 0.0, %v557
    %v559 = vpop.f32.mrb[0].mxu0
    %560 = vdwg.mxu0
    %v561 = vld [vmem:[#allocation2] sm:$0xff]
    %v562 = vld [vmem:[#allocation2 + $0x8] sm:$0xff]
    %v563 = vld [vmem:[#allocation2 + $0x10] sm:$0xff]
    %v564 = vld [vmem:[#allocation2 + $0x18] sm:$0xff]
    %v565 = vld [vmem:[#allocation2 + $0x20] sm:$0xff]
    %v566 = vld [vmem:[#allocation2 + $0x28] sm:$0xff]
    %v567 = vld [vmem:[#allocation2 + $0x30] sm:$0xff]
    %v568 = vld [vmem:[#allocation2 + $0x38] sm:$0xff]
    %v569 = vld [vmem:[#allocation2 + $0x40] sm:$0xff]
    %v570 = vld [vmem:[#allocation2 + $0x48] sm:$0xff]
    %v571 = vld [vmem:[#allocation2 + $0x50] sm:$0xff]
    %v572 = vld [vmem:[#allocation2 + $0x58] sm:$0xff]
    %v573 = vld [vmem:[#allocation2 + $0x60] sm:$0xff]
    %v574 = vld [vmem:[#allocation2 + $0x68] sm:$0xff]
    %v575 = vld [vmem:[#allocation2 + $0x70] sm:$0xff]
    %v576 = vld [vmem:[#allocation2 + $0x78] sm:$0xff]
    %v577 = vadd.f32 %v561, %v499
    %v578 = vadd.f32 %v562, %v502
    %v579 = vadd.f32 %v563, %v507
    %v580 = vadd.f32 %v564, %v510
    %v581 = vadd.f32 %v565, %v515
    %v582 = vadd.f32 %v566, %v518
    %v583 = vadd.f32 %v567, %v523
    %v584 = vadd.f32 %v568, %v526
    %v585 = vadd.f32 %v569, %v531
    %v586 = vadd.f32 %v570, %v534
    %v587 = vadd.f32 %v571, %v539
    %v588 = vadd.f32 %v572, %v542
    %v589 = vadd.f32 %v573, %v547
    %v590 = vadd.f32 %v574, %v550
    %v591 = vadd.f32 %v575, %v555
    %v592 = vadd.f32 %v576, %v558
    %vm593 = vcmask 39936
    %594 = vst.msk [vmem:[#allocation2] sm:$0xff] %vm593, %v577
    %595 = vst.msk [vmem:[#allocation2 + $0x8] sm:$0xff] %vm593, %v578
    %596 = vst.msk [vmem:[#allocation2 + $0x10] sm:$0xff] %vm593, %v579
    %597 = vst.msk [vmem:[#allocation2 + $0x18] sm:$0xff] %vm593, %v580
    %598 = vst.msk [vmem:[#allocation2 + $0x20] sm:$0xff] %vm593, %v581
    %599 = vst.msk [vmem:[#allocation2 + $0x28] sm:$0xff] %vm593, %v582
    %600 = vst.msk [vmem:[#allocation2 + $0x30] sm:$0xff] %vm593, %v583
    %601 = vst.msk [vmem:[#allocation2 + $0x38] sm:$0xff] %vm593, %v584
    %602 = vst.msk [vmem:[#allocation2 + $0x40] sm:$0xff] %vm593, %v585
    %603 = vst.msk [vmem:[#allocation2 + $0x48] sm:$0xff] %vm593, %v586
    %604 = vst.msk [vmem:[#allocation2 + $0x50] sm:$0xff] %vm593, %v587
    %605 = vst.msk [vmem:[#allocation2 + $0x58] sm:$0xff] %vm593, %v588
    %606 = vst.msk [vmem:[#allocation2 + $0x60] sm:$0xff] %vm593, %v589
    %607 = vst.msk [vmem:[#allocation2 + $0x68] sm:$0xff] %vm593, %v590
    %608 = vst.msk [vmem:[#allocation2 + $0x70] sm:$0xff] %vm593, %v591
    %609 = vst.msk [vmem:[#allocation2 + $0x78] sm:$0xff] %vm593, %v592
  $region29: #{spgat_forward.3} parent=0 // pred_fallthru
    _
  // Predicated region
  $region30: #{spgat_forward.3} parent=0 // pred_check
    %p610 = pneg %p25
  $region31: #{spgat_forward.3} parent=0 // pred_check_branch
    %612 = sbr.rel (%p610) target = $region33
  $region32: #{spgat_forward.3} parent=0 // pred_region
    %v613 = vld [vmem:[#allocation2] sm:$0xff]
    %v614 = vld [vmem:[#allocation2 + $0x8] sm:$0xff]
    %v615 = vld [vmem:[#allocation2 + $0x10] sm:$0xff]
    %v616 = vld [vmem:[#allocation2 + $0x18] sm:$0xff]
    %v617 = vld [vmem:[#allocation2 + $0x20] sm:$0xff]
    %v618 = vld [vmem:[#allocation2 + $0x28] sm:$0xff]
    %v619 = vld [vmem:[#allocation2 + $0x30] sm:$0xff]
    %v620 = vld [vmem:[#allocation2 + $0x38] sm:$0xff]
    %v621 = vld [vmem:[#allocation2 + $0x40] sm:$0xff]
    %v622 = vld [vmem:[#allocation2 + $0x48] sm:$0xff]
    %v623 = vld [vmem:[#allocation2 + $0x50] sm:$0xff]
    %v624 = vld [vmem:[#allocation2 + $0x58] sm:$0xff]
    %v625 = vld [vmem:[#allocation2 + $0x60] sm:$0xff]
    %v626 = vld [vmem:[#allocation2 + $0x68] sm:$0xff]
    %v627 = vld [vmem:[#allocation2 + $0x70] sm:$0xff]
    %v628 = vld [vmem:[#allocation2 + $0x78] sm:$0xff]
    %v629 = vmax.f32 %v613, 1e-30
    %v630 = vmax.f32 %v614, 1e-30
    %v631 = vmax.f32 %v615, 1e-30
    %v632 = vmax.f32 %v616, 1e-30
    %v633 = vmax.f32 %v617, 1e-30
    %v634 = vmax.f32 %v618, 1e-30
    %v635 = vmax.f32 %v619, 1e-30
    %v636 = vmax.f32 %v620, 1e-30
    %v637 = vmax.f32 %v621, 1e-30
    %v638 = vmax.f32 %v622, 1e-30
    %v639 = vmax.f32 %v623, 1e-30
    %v640 = vmax.f32 %v624, 1e-30
    %v641 = vmax.f32 %v625, 1e-30
    %v642 = vmax.f32 %v626, 1e-30
    %v643 = vmax.f32 %v627, 1e-30
    %v644 = vmax.f32 %v628, 1e-30
    %v645 = vrcp.pop %v629
    %v646 = vrcp.pop %v630
    %v647 = vrcp.pop %v631
    %v648 = vrcp.pop %v632
    %v649 = vrcp.pop %v633
    %v650 = vrcp.pop %v634
    %v651 = vrcp.pop %v635
    %v652 = vrcp.pop %v636
    %v653 = vrcp.pop %v637
    %v654 = vrcp.pop %v638
    %v655 = vrcp.pop %v639
    %v656 = vrcp.pop %v640
    %v657 = vrcp.pop %v641
    %v658 = vrcp.pop %v642
    %v659 = vrcp.pop %v643
    %v660 = vrcp.pop %v644
    %v661 = vmul.f32 %v629, %v645
    %v662 = vmul.f32 %v630, %v646
    %v663 = vmul.f32 %v631, %v647
    %v664 = vmul.f32 %v632, %v648
    %v665 = vmul.f32 %v633, %v649
    %v666 = vmul.f32 %v634, %v650
    %v667 = vmul.f32 %v635, %v651
    %v668 = vmul.f32 %v636, %v652
    %v669 = vmul.f32 %v637, %v653
    %v670 = vmul.f32 %v638, %v654
    %v671 = vmul.f32 %v639, %v655
    %v672 = vmul.f32 %v640, %v656
    %v673 = vmul.f32 %v641, %v657
    %v674 = vmul.f32 %v642, %v658
    %v675 = vmul.f32 %v643, %v659
    %v676 = vmul.f32 %v644, %v660
    %v677 = vsub.f32 2.0, %v661
    %v678 = vsub.f32 2.0, %v662
    %v679 = vsub.f32 2.0, %v663
    %v680 = vsub.f32 2.0, %v664
    %v681 = vsub.f32 2.0, %v665
    %v682 = vsub.f32 2.0, %v666
    %v683 = vsub.f32 2.0, %v667
    %v684 = vsub.f32 2.0, %v668
    %v685 = vsub.f32 2.0, %v669
    %v686 = vsub.f32 2.0, %v670
    %v687 = vsub.f32 2.0, %v671
    %v688 = vsub.f32 2.0, %v672
    %v689 = vsub.f32 2.0, %v673
    %v690 = vsub.f32 2.0, %v674
    %v691 = vsub.f32 2.0, %v675
    %v692 = vsub.f32 2.0, %v676
    %v693 = vmul.f32 %v645, %v677
    %v694 = vmul.f32 %v646, %v678
    %v695 = vmul.f32 %v647, %v679
    %v696 = vmul.f32 %v648, %v680
    %v697 = vmul.f32 %v649, %v681
    %v698 = vmul.f32 %v650, %v682
    %v699 = vmul.f32 %v651, %v683
    %v700 = vmul.f32 %v652, %v684
    %v701 = vmul.f32 %v653, %v685
    %v702 = vmul.f32 %v654, %v686
    %v703 = vmul.f32 %v655, %v687
    %v704 = vmul.f32 %v656, %v688
    %v705 = vmul.f32 %v657, %v689
    %v706 = vmul.f32 %v658, %v690
    %v707 = vmul.f32 %v659, %v691
    %v708 = vmul.f32 %v660, %v692
    %v709 = vld [vmem:[%s4] sm:$0x1]
    %711 = vset.pattern.permute.xlu0 4
    %712 = vperm.xlu0 %711, %v693
    %v713 = vpop.permute.xlu0 %712
    %716 = vset.pattern.permute.xlu0 4
    %717 = vperm.xlu0 %716, %v694
    %v718 = vpop.permute.xlu0 %717
    %721 = vset.pattern.permute.xlu0 4
    %722 = vperm.xlu0 %721, %v695
    %v723 = vpop.permute.xlu0 %722
    %726 = vset.pattern.permute.xlu0 4
    %727 = vperm.xlu0 %726, %v696
    %v728 = vpop.permute.xlu0 %727
    %731 = vset.pattern.permute.xlu0 4
    %732 = vperm.xlu0 %731, %v697
    %v733 = vpop.permute.xlu0 %732
    %736 = vset.pattern.permute.xlu0 4
    %737 = vperm.xlu0 %736, %v698
    %v738 = vpop.permute.xlu0 %737
    %741 = vset.pattern.permute.xlu0 4
    %742 = vperm.xlu0 %741, %v699
    %v743 = vpop.permute.xlu0 %742
    %746 = vset.pattern.permute.xlu0 4
    %747 = vperm.xlu0 %746, %v700
    %v748 = vpop.permute.xlu0 %747
    %751 = vset.pattern.permute.xlu0 4
    %752 = vperm.xlu0 %751, %v701
    %v753 = vpop.permute.xlu0 %752
    %756 = vset.pattern.permute.xlu0 4
    %757 = vperm.xlu0 %756, %v702
    %v758 = vpop.permute.xlu0 %757
    %761 = vset.pattern.permute.xlu0 4
    %762 = vperm.xlu0 %761, %v703
    %v763 = vpop.permute.xlu0 %762
    %766 = vset.pattern.permute.xlu0 4
    %767 = vperm.xlu0 %766, %v704
    %v768 = vpop.permute.xlu0 %767
    %771 = vset.pattern.permute.xlu0 4
    %772 = vperm.xlu0 %771, %v705
    %v773 = vpop.permute.xlu0 %772
    %776 = vset.pattern.permute.xlu0 4
    %777 = vperm.xlu0 %776, %v706
    %v778 = vpop.permute.xlu0 %777
    %781 = vset.pattern.permute.xlu0 4
    %782 = vperm.xlu0 %781, %v707
    %v783 = vpop.permute.xlu0 %782
    %786 = vset.pattern.permute.xlu0 4
    %787 = vperm.xlu0 %786, %v708
    %v788 = vpop.permute.xlu0 %787
    %v791 = vlaneseq
    %v792 = vshrl.u32 %v791, 7
    %v793 = vsub.s32 0, %v792
    %v794 = vrot.slane %v709, %v793
    %v796 = vmul.f32 %v713, %v794
    %v797 = vmul.f32 %v718, %v794
    %v798 = vmul.f32 %v723, %v794
    %v799 = vmul.f32 %v728, %v794
    %v800 = vmul.f32 %v733, %v794
    %v801 = vmul.f32 %v738, %v794
    %v802 = vmul.f32 %v743, %v794
    %v803 = vmul.f32 %v748, %v794
    %v804 = vmul.f32 %v753, %v794
    %v805 = vmul.f32 %v758, %v794
    %v806 = vmul.f32 %v763, %v794
    %v807 = vmul.f32 %v768, %v794
    %v808 = vmul.f32 %v773, %v794
    %v809 = vmul.f32 %v778, %v794
    %v810 = vmul.f32 %v783, %v794
    %v811 = vmul.f32 %v788, %v794
    %v812 = vmul.f32 %v613, %v796
    %v813 = vmul.f32 %v614, %v797
    %v814 = vmul.f32 %v615, %v798
    %v815 = vmul.f32 %v616, %v799
    %v816 = vmul.f32 %v617, %v800
    %v817 = vmul.f32 %v618, %v801
    %v818 = vmul.f32 %v619, %v802
    %v819 = vmul.f32 %v620, %v803
    %v820 = vmul.f32 %v621, %v804
    %v821 = vmul.f32 %v622, %v805
    %v822 = vmul.f32 %v623, %v806
    %v823 = vmul.f32 %v624, %v807
    %v824 = vmul.f32 %v625, %v808
    %v825 = vmul.f32 %v626, %v809
    %v826 = vmul.f32 %v627, %v810
    %v827 = vmul.f32 %v628, %v811
    %vm828 = vcmp.gt.f32.partialorder %v812, 0.0
    %vm829 = vcmp.gt.f32.partialorder %v813, 0.0
    %vm830 = vcmp.gt.f32.partialorder %v814, 0.0
    %vm831 = vcmp.gt.f32.partialorder %v815, 0.0
    %vm832 = vcmp.gt.f32.partialorder %v816, 0.0
    %vm833 = vcmp.gt.f32.partialorder %v817, 0.0
    %vm834 = vcmp.gt.f32.partialorder %v818, 0.0
    %vm835 = vcmp.gt.f32.partialorder %v819, 0.0
    %vm836 = vcmp.gt.f32.partialorder %v820, 0.0
    %vm837 = vcmp.gt.f32.partialorder %v821, 0.0
    %vm838 = vcmp.gt.f32.partialorder %v822, 0.0
    %vm839 = vcmp.gt.f32.partialorder %v823, 0.0
    %vm840 = vcmp.gt.f32.partialorder %v824, 0.0
    %vm841 = vcmp.gt.f32.partialorder %v825, 0.0
    %vm842 = vcmp.gt.f32.partialorder %v826, 0.0
    %vm843 = vcmp.gt.f32.partialorder %v827, 0.0
    %v844 = vmul.f32 %v812, 1.442695
    %v845 = vpow.pop %v844
    %v846 = vmul.f32 %v813, 1.442695
    %v847 = vpow.pop %v846
    %v848 = vmul.f32 %v814, 1.442695
    %v849 = vpow.pop %v848
    %v850 = vmul.f32 %v815, 1.442695
    %v851 = vpow.pop %v850
    %v852 = vmul.f32 %v816, 1.442695
    %v853 = vpow.pop %v852
    %v854 = vmul.f32 %v817, 1.442695
    %v855 = vpow.pop %v854
    %v856 = vmul.f32 %v818, 1.442695
    %v857 = vpow.pop %v856
    %v858 = vmul.f32 %v819, 1.442695
    %v859 = vpow.pop %v858
    %v860 = vmul.f32 %v820, 1.442695
    %v861 = vpow.pop %v860
    %v862 = vmul.f32 %v821, 1.442695
    %v863 = vpow.pop %v862
    %v864 = vmul.f32 %v822, 1.442695
    %v865 = vpow.pop %v864
    %v866 = vmul.f32 %v823, 1.442695
    %v867 = vpow.pop %v866
    %v868 = vmul.f32 %v824, 1.442695
    %v869 = vpow.pop %v868
    %v870 = vmul.f32 %v825, 1.442695
    %v871 = vpow.pop %v870
    %v872 = vmul.f32 %v826, 1.442695
    %v873 = vpow.pop %v872
    %v874 = vmul.f32 %v827, 1.442695
    %v875 = vpow.pop %v874
    %v876 = vsub.f32 %v845, 1.0
    %v877 = vsub.f32 %v847, 1.0
    %v878 = vsub.f32 %v849, 1.0
    %v879 = vsub.f32 %v851, 1.0
    %v880 = vsub.f32 %v853, 1.0
    %v881 = vsub.f32 %v855, 1.0
    %v882 = vsub.f32 %v857, 1.0
    %v883 = vsub.f32 %v859, 1.0
    %v884 = vsub.f32 %v861, 1.0
    %v885 = vsub.f32 %v863, 1.0
    %v886 = vsub.f32 %v865, 1.0
    %v887 = vsub.f32 %v867, 1.0
    %v888 = vsub.f32 %v869, 1.0
    %v889 = vsub.f32 %v871, 1.0
    %v890 = vsub.f32 %v873, 1.0
    %v891 = vsub.f32 %v875, 1.0
    %v892 = vsel %vm828, %v812, %v876
    %v893 = vsel %vm829, %v813, %v877
    %v894 = vsel %vm830, %v814, %v878
    %v895 = vsel %vm831, %v815, %v879
    %v896 = vsel %vm832, %v816, %v880
    %v897 = vsel %vm833, %v817, %v881
    %v898 = vsel %vm834, %v818, %v882
    %v899 = vsel %vm835, %v819, %v883
    %v900 = vsel %vm836, %v820, %v884
    %v901 = vsel %vm837, %v821, %v885
    %v902 = vsel %vm838, %v822, %v886
    %v903 = vsel %vm839, %v823, %v887
    %v904 = vsel %vm840, %v824, %v888
    %v905 = vsel %vm841, %v825, %v889
    %v906 = vsel %vm842, %v826, %v890
    %v907 = vsel %vm843, %v827, %v891
    %vm908 = vcmask 31744
    %v909 = vsel %vm908, %v892, -inf
    %910 = vmax.xlane.f32.xlu0 %v909
    %v911 = vpop.xlane.xlu0 %910
    %v912 = vsel %vm908, %v893, -inf
    %913 = vmax.xlane.f32.xlu0 %v912
    %v914 = vpop.xlane.xlu0 %913
    %v915 = vsel %vm908, %v894, -inf
    %916 = vmax.xlane.f32.xlu0 %v915
    %v917 = vpop.xlane.xlu0 %916
    %v918 = vsel %vm908, %v895, -inf
    %919 = vmax.xlane.f32.xlu0 %v918
    %v920 = vpop.xlane.xlu0 %919
    %v921 = vsel %vm908, %v896, -inf
    %922 = vmax.xlane.f32.xlu0 %v921
    %v923 = vpop.xlane.xlu0 %922
    %v924 = vsel %vm908, %v897, -inf
    %925 = vmax.xlane.f32.xlu0 %v924
    %v926 = vpop.xlane.xlu0 %925
    %v927 = vsel %vm908, %v898, -inf
    %928 = vmax.xlane.f32.xlu0 %v927
    %v929 = vpop.xlane.xlu0 %928
    %v930 = vsel %vm908, %v899, -inf
    %931 = vmax.xlane.f32.xlu0 %v930
    %v932 = vpop.xlane.xlu0 %931
    %v933 = vsel %vm908, %v900, -inf
    %934 = vmax.xlane.f32.xlu0 %v933
    %v935 = vpop.xlane.xlu0 %934
    %v936 = vsel %vm908, %v901, -inf
    %937 = vmax.xlane.f32.xlu0 %v936
    %v938 = vpop.xlane.xlu0 %937
    %v939 = vsel %vm908, %v902, -inf
    %940 = vmax.xlane.f32.xlu0 %v939
    %v941 = vpop.xlane.xlu0 %940
    %v942 = vsel %vm908, %v903, -inf
    %943 = vmax.xlane.f32.xlu0 %v942
    %v944 = vpop.xlane.xlu0 %943
    %v945 = vsel %vm908, %v904, -inf
    %946 = vmax.xlane.f32.xlu0 %v945
    %v947 = vpop.xlane.xlu0 %946
    %v948 = vsel %vm908, %v905, -inf
    %949 = vmax.xlane.f32.xlu0 %v948
    %v950 = vpop.xlane.xlu0 %949
    %v951 = vsel %vm908, %v906, -inf
    %952 = vmax.xlane.f32.xlu0 %v951
    %v953 = vpop.xlane.xlu0 %952
    %v954 = vsel %vm908, %v907, -inf
    %955 = vmax.xlane.f32.xlu0 %v954
    %v956 = vpop.xlane.xlu0 %955
    %v957 = vsub.f32 %v892, %v911
    %v958 = vsub.f32 %v893, %v914
    %v959 = vsub.f32 %v894, %v917
    %v960 = vsub.f32 %v895, %v920
    %v961 = vsub.f32 %v896, %v923
    %v962 = vsub.f32 %v897, %v926
    %v963 = vsub.f32 %v898, %v929
    %v964 = vsub.f32 %v899, %v932
    %v965 = vsub.f32 %v900, %v935
    %v966 = vsub.f32 %v901, %v938
    %v967 = vsub.f32 %v902, %v941
    %v968 = vsub.f32 %v903, %v944
    %v969 = vsub.f32 %v904, %v947
    %v970 = vsub.f32 %v905, %v950
    %v971 = vsub.f32 %v906, %v953
    %v972 = vsub.f32 %v907, %v956
    %v973 = vmul.f32 %v957, 1.442695
    %v974 = vpow.pop %v973
    %v975 = vmul.f32 %v958, 1.442695
    %v976 = vpow.pop %v975
    %v977 = vmul.f32 %v959, 1.442695
    %v978 = vpow.pop %v977
    %v979 = vmul.f32 %v960, 1.442695
    %v980 = vpow.pop %v979
    %v981 = vmul.f32 %v961, 1.442695
    %v982 = vpow.pop %v981
    %v983 = vmul.f32 %v962, 1.442695
    %v984 = vpow.pop %v983
    %v985 = vmul.f32 %v963, 1.442695
    %v986 = vpow.pop %v985
    %v987 = vmul.f32 %v964, 1.442695
    %v988 = vpow.pop %v987
    %v989 = vmul.f32 %v965, 1.442695
    %v990 = vpow.pop %v989
    %v991 = vmul.f32 %v966, 1.442695
    %v992 = vpow.pop %v991
    %v993 = vmul.f32 %v967, 1.442695
    %v994 = vpow.pop %v993
    %v995 = vmul.f32 %v968, 1.442695
    %v996 = vpow.pop %v995
    %v997 = vmul.f32 %v969, 1.442695
    %v998 = vpow.pop %v997
    %v999 = vmul.f32 %v970, 1.442695
    %v1000 = vpow.pop %v999
    %v1001 = vmul.f32 %v971, 1.442695
    %v1002 = vpow.pop %v1001
    %v1003 = vmul.f32 %v972, 1.442695
    %v1004 = vpow.pop %v1003
    %v1005 = vsel %vm908, %v974, 0.0
    %1006 = vadd.xlane.f32.xlu0 %v1005
    %v1007 = vpop.xlane.xlu0 %1006
    %v1008 = vsel %vm908, %v976, 0.0
    %1009 = vadd.xlane.f32.xlu0 %v1008
    %v1010 = vpop.xlane.xlu0 %1009
    %v1011 = vsel %vm908, %v978, 0.0
    %1012 = vadd.xlane.f32.xlu0 %v1011
    %v1013 = vpop.xlane.xlu0 %1012
    %v1014 = vsel %vm908, %v980, 0.0
    %1015 = vadd.xlane.f32.xlu0 %v1014
    %v1016 = vpop.xlane.xlu0 %1015
    %v1017 = vsel %vm908, %v982, 0.0
    %1018 = vadd.xlane.f32.xlu0 %v1017
    %v1019 = vpop.xlane.xlu0 %1018
    %v1020 = vsel %vm908, %v984, 0.0
    %1021 = vadd.xlane.f32.xlu0 %v1020
    %v1022 = vpop.xlane.xlu0 %1021
    %v1023 = vsel %vm908, %v986, 0.0
    %1024 = vadd.xlane.f32.xlu0 %v1023
    %v1025 = vpop.xlane.xlu0 %1024
    %v1026 = vsel %vm908, %v988, 0.0
    %1027 = vadd.xlane.f32.xlu0 %v1026
    %v1028 = vpop.xlane.xlu0 %1027
    %v1029 = vsel %vm908, %v990, 0.0
    %1030 = vadd.xlane.f32.xlu0 %v1029
    %v1031 = vpop.xlane.xlu0 %1030
    %v1032 = vsel %vm908, %v992, 0.0
    %1033 = vadd.xlane.f32.xlu0 %v1032
    %v1034 = vpop.xlane.xlu0 %1033
    %v1035 = vsel %vm908, %v994, 0.0
    %1036 = vadd.xlane.f32.xlu0 %v1035
    %v1037 = vpop.xlane.xlu0 %1036
    %v1038 = vsel %vm908, %v996, 0.0
    %1039 = vadd.xlane.f32.xlu0 %v1038
    %v1040 = vpop.xlane.xlu0 %1039
    %v1041 = vsel %vm908, %v998, 0.0
    %1042 = vadd.xlane.f32.xlu0 %v1041
    %v1043 = vpop.xlane.xlu0 %1042
    %v1044 = vsel %vm908, %v1000, 0.0
    %1045 = vadd.xlane.f32.xlu0 %v1044
    %v1046 = vpop.xlane.xlu0 %1045
    %v1047 = vsel %vm908, %v1002, 0.0
    %1048 = vadd.xlane.f32.xlu0 %v1047
    %v1049 = vpop.xlane.xlu0 %1048
    %v1050 = vsel %vm908, %v1004, 0.0
    %1051 = vadd.xlane.f32.xlu0 %v1050
    %v1052 = vpop.xlane.xlu0 %1051
    %v1053 = vlog2.pop %v1007
    %v1054 = vmul.f32 %v1053, 0.6931472
    %v1055 = vlog2.pop %v1010
    %v1056 = vmul.f32 %v1055, 0.6931472
    %v1057 = vlog2.pop %v1013
    %v1058 = vmul.f32 %v1057, 0.6931472
    %v1059 = vlog2.pop %v1016
    %v1060 = vmul.f32 %v1059, 0.6931472
    %v1061 = vlog2.pop %v1019
    %v1062 = vmul.f32 %v1061, 0.6931472
    %v1063 = vlog2.pop %v1022
    %v1064 = vmul.f32 %v1063, 0.6931472
    %v1065 = vlog2.pop %v1025
    %v1066 = vmul.f32 %v1065, 0.6931472
    %v1067 = vlog2.pop %v1028
    %v1068 = vmul.f32 %v1067, 0.6931472
    %v1069 = vlog2.pop %v1031
    %v1070 = vmul.f32 %v1069, 0.6931472
    %v1071 = vlog2.pop %v1034
    %v1072 = vmul.f32 %v1071, 0.6931472
    %v1073 = vlog2.pop %v1037
    %v1074 = vmul.f32 %v1073, 0.6931472
    %v1075 = vlog2.pop %v1040
    %v1076 = vmul.f32 %v1075, 0.6931472
    %v1077 = vlog2.pop %v1043
    %v1078 = vmul.f32 %v1077, 0.6931472
    %v1079 = vlog2.pop %v1046
    %v1080 = vmul.f32 %v1079, 0.6931472
    %v1081 = vlog2.pop %v1049
    %v1082 = vmul.f32 %v1081, 0.6931472
    %v1083 = vlog2.pop %v1052
    %v1084 = vmul.f32 %v1083, 0.6931472
    %v1085 = vsub.f32 %v957, %v1054
    %v1086 = vsub.f32 %v958, %v1056
    %v1087 = vsub.f32 %v959, %v1058
    %v1088 = vsub.f32 %v960, %v1060
    %v1089 = vsub.f32 %v961, %v1062
    %v1090 = vsub.f32 %v962, %v1064
    %v1091 = vsub.f32 %v963, %v1066
    %v1092 = vsub.f32 %v964, %v1068
    %v1093 = vsub.f32 %v965, %v1070
    %v1094 = vsub.f32 %v966, %v1072
    %v1095 = vsub.f32 %v967, %v1074
    %v1096 = vsub.f32 %v968, %v1076
    %v1097 = vsub.f32 %v969, %v1078
    %v1098 = vsub.f32 %v970, %v1080
    %v1099 = vsub.f32 %v971, %v1082
    %v1100 = vsub.f32 %v972, %v1084
    %1101 = vst.msk [vmem:[%s6] sm:$0xff] %vm908, %v1085
    %1102 = vst.msk [vmem:[%s6 + $0x8] sm:$0xff] %vm908, %v1086
    %1103 = vst.msk [vmem:[%s6 + $0x10] sm:$0xff] %vm908, %v1087
    %1104 = vst.msk [vmem:[%s6 + $0x18] sm:$0xff] %vm908, %v1088
    %1105 = vst.msk [vmem:[%s6 + $0x20] sm:$0xff] %vm908, %v1089
    %1106 = vst.msk [vmem:[%s6 + $0x28] sm:$0xff] %vm908, %v1090
    %1107 = vst.msk [vmem:[%s6 + $0x30] sm:$0xff] %vm908, %v1091
    %1108 = vst.msk [vmem:[%s6 + $0x38] sm:$0xff] %vm908, %v1092
    %1109 = vst.msk [vmem:[%s6 + $0x40] sm:$0xff] %vm908, %v1093
    %1110 = vst.msk [vmem:[%s6 + $0x48] sm:$0xff] %vm908, %v1094
    %1111 = vst.msk [vmem:[%s6 + $0x50] sm:$0xff] %vm908, %v1095
    %1112 = vst.msk [vmem:[%s6 + $0x58] sm:$0xff] %vm908, %v1096
    %1113 = vst.msk [vmem:[%s6 + $0x60] sm:$0xff] %vm908, %v1097
    %1114 = vst.msk [vmem:[%s6 + $0x68] sm:$0xff] %vm908, %v1098
    %1115 = vst.msk [vmem:[%s6 + $0x70] sm:$0xff] %vm908, %v1099
    %1116 = vst.msk [vmem:[%s6 + $0x78] sm:$0xff] %vm908, %v1100
  $region33: #{spgat_forward.3} parent=0 // pred_fallthru
    _
  // Predicated region
  $region34: #{spgat_forward.3} parent=0 // pred_check
    _
  $region35: #{spgat_forward.3} parent=0 // pred_check_branch
    %1118 = sbr.rel (0) target = $region37
  $region36: #{spgat_forward.3} parent=0 // pred_region
    _
  $region37: #{spgat_forward.3} parent=0 // pred_fallthru
    _
  // Predicated region
  $region38: #{spgat_forward.3} parent=0 // pred_check
    _
  $region39: #{spgat_forward.3} parent=0 // pred_check_branch
    %1120 = sbr.rel (0) target = $region41
  $region40: #{spgat_forward.3} parent=0 // pred_region
    _
  $region41: #{spgat_forward.3} parent=0 // pred_fallthru
    _

// kernel: spgat_forward.2
$region0: #{spgat_forward.2}
  #allocation0 [shape = 'u32[]', space=smem, size = 0x4, offset = 0x4, fixed_abs, tag = 'smem constant byte address 0x4 - core index']
  #allocation1 [shape = 'u32[144,128]{1,0:T(1,128)}', space=vmem, size = 0x12000, scoped, tag = 'internal scratch']
  #allocation2 [shape = 'f32[128,36]{1,0:T(8,128)}', space=vmem, size = 0x10000, scoped, tag = 'scratch operand']
  #allocation3 [shape = 's32[1]{0}', space=sflag, size = 0x4, scoped, tag = 'scoped memory for spgat_forward.2']
  #allocation4 [shape = 's32[1,1]{1,0:T(1,128)S(6)}', space=smem, size = 0x200, scoped, tag = 'prefetched SMEM operand 0']
  %s0 = inlined_call_operand.<no memory space> [shape: s32[1,1], index: 0, kind: input, shape index: {}]
  %s1 = inlined_call_operand.vmem [shape: f32[128,4], index: 1, kind: input, shape index: {}]
  %s2 = inlined_call_operand.vmem [shape: f32[4,128], index: 2, kind: input, shape index: {}]
  %s3 = inlined_call_operand.vmem [shape: f32[128,36], index: 3, kind: input, shape index: {}]
  %s4 = inlined_call_operand.vmem [shape: f32[4,36], index: 4, kind: input, shape index: {}]
  %s5 = inlined_call_operand.vmem [shape: s8[128,128], index: 5, kind: input, shape index: {}]
  %s6 = inlined_call_operand.vmem [shape: f32[128,32], index: 6, kind: output, shape index: {}]
  %s7 = sld [smem:[#allocation0]]
  $region42: #{spgat_forward.2} parent=0
    _
  %s9 = ssub.s32 1, %s7
  %s10 = scalar_select 0, %s9, %s7
  %11 = sst [smem:[#allocation4]] %s0
  // Predicated region
  $region2: #{spgat_forward.2} parent=0 // pred_check
    _
  $region3: #{spgat_forward.2} parent=0 // pred_check_branch
    %13 = sbr.rel (0) target = $region5
  $region4: #{spgat_forward.2} parent=0 // pred_region
    _
  $region5: #{spgat_forward.2} parent=0 // pred_fallthru
    _
  // Predicated region
  $region6: #{spgat_forward.2} parent=0 // pred_check
    _
  $region7: #{spgat_forward.2} parent=0 // pred_check_branch
    %15 = sbr.rel (0) target = $region9
  $region8: #{spgat_forward.2} parent=0 // pred_region
    _
  $region9: #{spgat_forward.2} parent=0 // pred_fallthru
    _
  // Predicated region
  $region10: #{spgat_forward.2} parent=0 // pred_check
    _
  $region11: #{spgat_forward.2} parent=0 // pred_check_branch
    %17 = sbr.rel (0) target = $region13
  $region12: #{spgat_forward.2} parent=0 // pred_region
    _
  $region13: #{spgat_forward.2} parent=0 // pred_fallthru
    _
  // Predicated region
  $region14: #{spgat_forward.2} parent=0 // pred_check
    _
  $region15: #{spgat_forward.2} parent=0 // pred_check_branch
    %19 = sbr.rel (0) target = $region17
  $region16: #{spgat_forward.2} parent=0 // pred_region
    _
  $region17: #{spgat_forward.2} parent=0 // pred_fallthru
    _
  // Predicated region
  $region18: #{spgat_forward.2} parent=0 // pred_check
    _
  $region19: #{spgat_forward.2} parent=0 // pred_check_branch
    %21 = sbr.rel (0) target = $region21
  $region20: #{spgat_forward.2} parent=0 // pred_region
    _
  $region21: #{spgat_forward.2} parent=0 // pred_fallthru
    _
  %p25 = scmp.eq.s32.totalorder 0, 0
  // Predicated region
  $region22: #{spgat_forward.2} parent=0 // pred_check
    %p26 = pneg %p25
  $region23: #{spgat_forward.2} parent=0 // pred_check_branch
    %28 = sbr.rel (%p26) target = $region25
  $region24: #{spgat_forward.2} parent=0 // pred_region
    %vm29 = vcmask 293888
    %30 = vst.msk [vmem:[#allocation2] sm:$0xff] %vm29, 0.0
    %31 = vst.msk [vmem:[#allocation2 + $0x8] sm:$0xff] %vm29, 0.0
    %32 = vst.msk [vmem:[#allocation2 + $0x10] sm:$0xff] %vm29, 0.0
    %33 = vst.msk [vmem:[#allocation2 + $0x18] sm:$0xff] %vm29, 0.0
    %34 = vst.msk [vmem:[#allocation2 + $0x20] sm:$0xff] %vm29, 0.0
    %35 = vst.msk [vmem:[#allocation2 + $0x28] sm:$0xff] %vm29, 0.0
    %36 = vst.msk [vmem:[#allocation2 + $0x30] sm:$0xff] %vm29, 0.0
    %37 = vst.msk [vmem:[#allocation2 + $0x38] sm:$0xff] %vm29, 0.0
    %38 = vst.msk [vmem:[#allocation2 + $0x40] sm:$0xff] %vm29, 0.0
    %39 = vst.msk [vmem:[#allocation2 + $0x48] sm:$0xff] %vm29, 0.0
    %40 = vst.msk [vmem:[#allocation2 + $0x50] sm:$0xff] %vm29, 0.0
    %41 = vst.msk [vmem:[#allocation2 + $0x58] sm:$0xff] %vm29, 0.0
    %42 = vst.msk [vmem:[#allocation2 + $0x60] sm:$0xff] %vm29, 0.0
    %43 = vst.msk [vmem:[#allocation2 + $0x68] sm:$0xff] %vm29, 0.0
    %44 = vst.msk [vmem:[#allocation2 + $0x70] sm:$0xff] %vm29, 0.0
    %45 = vst.msk [vmem:[#allocation2 + $0x78] sm:$0xff] %vm29, 0.0
  $region25: #{spgat_forward.2} parent=0 // pred_fallthru
    _
  %s46 = sadd.s32 0, 0
  %s47 = smul.u32 %s46, 128
  %s48 = sadd.s32 %s47, 0
  %s49 = sld [smem:[#allocation4 + %s48]]
  %p50 = scmp.gt.s32.totalorder %s49, 0
  // Predicated region
  $region26: #{spgat_forward.2} parent=0 // pred_check
    %p51 = pneg %p50
  $region27: #{spgat_forward.2} parent=0 // pred_check_branch
    %53 = sbr.rel (%p51) target = $region29
  $region28: #{spgat_forward.2} parent=0 // pred_region
    %v54 = vld [vmem:[%s5] sm:$0xff]
    %v55 = vld [vmem:[%s5 + $0x8] sm:$0xff]
    %v56 = vld [vmem:[%s5 + $0x10] sm:$0xff]
    %v57 = vld [vmem:[%s5 + $0x18] sm:$0xff]
    %vm58 = vnez %v54
    %vm59 = vnez %v55
    %vm60 = vnez %v56
    %vm61 = vnez %v57
    %v62 = vld [vmem:[%s1] sm:$0xff]
    %v63 = vld [vmem:[%s1 + $0x8] sm:$0xff]
    %v64 = vld [vmem:[%s1 + $0x10] sm:$0xff]
    %v65 = vld [vmem:[%s1 + $0x18] sm:$0xff]
    %v66 = vld [vmem:[%s1 + $0x20] sm:$0xff]
    %v67 = vld [vmem:[%s1 + $0x28] sm:$0xff]
    %v68 = vld [vmem:[%s1 + $0x30] sm:$0xff]
    %v69 = vld [vmem:[%s1 + $0x38] sm:$0xff]
    %v70 = vld [vmem:[%s1 + $0x40] sm:$0xff]
    %v71 = vld [vmem:[%s1 + $0x48] sm:$0xff]
    %v72 = vld [vmem:[%s1 + $0x50] sm:$0xff]
    %v73 = vld [vmem:[%s1 + $0x58] sm:$0xff]
    %v74 = vld [vmem:[%s1 + $0x60] sm:$0xff]
    %v75 = vld [vmem:[%s1 + $0x68] sm:$0xff]
    %v76 = vld [vmem:[%s1 + $0x70] sm:$0xff]
    %v77 = vld [vmem:[%s1 + $0x78] sm:$0xff]
    %v78 = vld [vmem:[%s2] sm:$0xf]
    %v79 = vld [vmem:[%s3] sm:$0xff]
    %v80 = vld [vmem:[%s3 + $0x8] sm:$0xff]
    %v81 = vld [vmem:[%s3 + $0x10] sm:$0xff]
    %v82 = vld [vmem:[%s3 + $0x18] sm:$0xff]
    %v83 = vld [vmem:[%s3 + $0x20] sm:$0xff]
    %v84 = vld [vmem:[%s3 + $0x28] sm:$0xff]
    %v85 = vld [vmem:[%s3 + $0x30] sm:$0xff]
    %v86 = vld [vmem:[%s3 + $0x38] sm:$0xff]
    %v87 = vld [vmem:[%s3 + $0x40] sm:$0xff]
    %v88 = vld [vmem:[%s3 + $0x48] sm:$0xff]
    %v89 = vld [vmem:[%s3 + $0x50] sm:$0xff]
    %v90 = vld [vmem:[%s3 + $0x58] sm:$0xff]
    %v91 = vld [vmem:[%s3 + $0x60] sm:$0xff]
    %v92 = vld [vmem:[%s3 + $0x68] sm:$0xff]
    %v93 = vld [vmem:[%s3 + $0x70] sm:$0xff]
    %v94 = vld [vmem:[%s3 + $0x78] sm:$0xff]
    %96 = vset.pattern.permute.xlu0 0
    %97 = vperm.xlu0 %96, %v62
    %v98 = vpop.permute.xlu0 %97
    %101 = vset.pattern.permute.xlu0 0
    %102 = vperm.xlu0 %101, %v63
    %v103 = vpop.permute.xlu0 %102
    %106 = vset.pattern.permute.xlu0 0
    %107 = vperm.xlu0 %106, %v64
    %v108 = vpop.permute.xlu0 %107
    %111 = vset.pattern.permute.xlu0 0
    %112 = vperm.xlu0 %111, %v65
    %v113 = vpop.permute.xlu0 %112
    %116 = vset.pattern.permute.xlu0 0
    %117 = vperm.xlu0 %116, %v66
    %v118 = vpop.permute.xlu0 %117
    %121 = vset.pattern.permute.xlu0 0
    %122 = vperm.xlu0 %121, %v67
    %v123 = vpop.permute.xlu0 %122
    %126 = vset.pattern.permute.xlu0 0
    %127 = vperm.xlu0 %126, %v68
    %v128 = vpop.permute.xlu0 %127
    %131 = vset.pattern.permute.xlu0 0
    %132 = vperm.xlu0 %131, %v69
    %v133 = vpop.permute.xlu0 %132
    %136 = vset.pattern.permute.xlu0 0
    %137 = vperm.xlu0 %136, %v70
    %v138 = vpop.permute.xlu0 %137
    %141 = vset.pattern.permute.xlu0 0
    %142 = vperm.xlu0 %141, %v71
    %v143 = vpop.permute.xlu0 %142
    %146 = vset.pattern.permute.xlu0 0
    %147 = vperm.xlu0 %146, %v72
    %v148 = vpop.permute.xlu0 %147
    %151 = vset.pattern.permute.xlu0 0
    %152 = vperm.xlu0 %151, %v73
    %v153 = vpop.permute.xlu0 %152
    %156 = vset.pattern.permute.xlu0 0
    %157 = vperm.xlu0 %156, %v74
    %v158 = vpop.permute.xlu0 %157
    %161 = vset.pattern.permute.xlu0 0
    %162 = vperm.xlu0 %161, %v75
    %v163 = vpop.permute.xlu0 %162
    %166 = vset.pattern.permute.xlu0 0
    %167 = vperm.xlu0 %166, %v76
    %v168 = vpop.permute.xlu0 %167
    %171 = vset.pattern.permute.xlu0 0
    %172 = vperm.xlu0 %171, %v77
    %v173 = vpop.permute.xlu0 %172
    %v175 = vlaneseq
    %v176 = vshrl.u32 %v175, 7
    %v177 = vsub.s32 0, %v176
    %v178 = vrot.slane %v78, %v177
    %v179 = vadd.f32 %v98, %v178
    %v180 = vadd.f32 %v103, %v178
    %v181 = vadd.f32 %v108, %v178
    %v182 = vadd.f32 %v113, %v178
    %v183 = vadd.f32 %v118, %v178
    %v184 = vadd.f32 %v123, %v178
    %v185 = vadd.f32 %v128, %v178
    %v186 = vadd.f32 %v133, %v178
    %v187 = vadd.f32 %v138, %v178
    %v188 = vadd.f32 %v143, %v178
    %v189 = vadd.f32 %v148, %v178
    %v190 = vadd.f32 %v153, %v178
    %v191 = vadd.f32 %v158, %v178
    %v192 = vadd.f32 %v163, %v178
    %v193 = vadd.f32 %v168, %v178
    %v194 = vadd.f32 %v173, %v178
    %vm195 = vcmp.gt.f32.partialorder %v179, 0.0
    %vm196 = vcmp.gt.f32.partialorder %v180, 0.0
    %vm197 = vcmp.gt.f32.partialorder %v181, 0.0
    %vm198 = vcmp.gt.f32.partialorder %v182, 0.0
    %vm199 = vcmp.gt.f32.partialorder %v183, 0.0
    %vm200 = vcmp.gt.f32.partialorder %v184, 0.0
    %vm201 = vcmp.gt.f32.partialorder %v185, 0.0
    %vm202 = vcmp.gt.f32.partialorder %v186, 0.0
    %vm203 = vcmp.gt.f32.partialorder %v187, 0.0
    %vm204 = vcmp.gt.f32.partialorder %v188, 0.0
    %vm205 = vcmp.gt.f32.partialorder %v189, 0.0
    %vm206 = vcmp.gt.f32.partialorder %v190, 0.0
    %vm207 = vcmp.gt.f32.partialorder %v191, 0.0
    %vm208 = vcmp.gt.f32.partialorder %v192, 0.0
    %vm209 = vcmp.gt.f32.partialorder %v193, 0.0
    %vm210 = vcmp.gt.f32.partialorder %v194, 0.0
    %v211 = vmul.f32 %v179, 0.2
    %v212 = vmul.f32 %v180, 0.2
    %v213 = vmul.f32 %v181, 0.2
    %v214 = vmul.f32 %v182, 0.2
    %v215 = vmul.f32 %v183, 0.2
    %v216 = vmul.f32 %v184, 0.2
    %v217 = vmul.f32 %v185, 0.2
    %v218 = vmul.f32 %v186, 0.2
    %v219 = vmul.f32 %v187, 0.2
    %v220 = vmul.f32 %v188, 0.2
    %v221 = vmul.f32 %v189, 0.2
    %v222 = vmul.f32 %v190, 0.2
    %v223 = vmul.f32 %v191, 0.2
    %v224 = vmul.f32 %v192, 0.2
    %v225 = vmul.f32 %v193, 0.2
    %v226 = vmul.f32 %v194, 0.2
    %v227 = vsel %vm195, %v179, %v211
    %v228 = vsel %vm196, %v180, %v212
    %v229 = vsel %vm197, %v181, %v213
    %v230 = vsel %vm198, %v182, %v214
    %v231 = vsel %vm199, %v183, %v215
    %v232 = vsel %vm200, %v184, %v216
    %v233 = vsel %vm201, %v185, %v217
    %v234 = vsel %vm202, %v186, %v218
    %v235 = vsel %vm203, %v187, %v219
    %v236 = vsel %vm204, %v188, %v220
    %v237 = vsel %vm205, %v189, %v221
    %v238 = vsel %vm206, %v190, %v222
    %v239 = vsel %vm207, %v191, %v223
    %v240 = vsel %vm208, %v192, %v224
    %v241 = vsel %vm209, %v193, %v225
    %v242 = vsel %vm210, %v194, %v226
    %v243 = vsub.f32 0.0, %v227
    %v244 = vsub.f32 0.0, %v228
    %v245 = vsub.f32 0.0, %v229
    %v246 = vsub.f32 0.0, %v230
    %v247 = vsub.f32 0.0, %v231
    %v248 = vsub.f32 0.0, %v232
    %v249 = vsub.f32 0.0, %v233
    %v250 = vsub.f32 0.0, %v234
    %v251 = vsub.f32 0.0, %v235
    %v252 = vsub.f32 0.0, %v236
    %v253 = vsub.f32 0.0, %v237
    %v254 = vsub.f32 0.0, %v238
    %v255 = vsub.f32 0.0, %v239
    %v256 = vsub.f32 0.0, %v240
    %v257 = vsub.f32 0.0, %v241
    %v258 = vsub.f32 0.0, %v242
    %v259 = vmul.f32 %v243, 1.442695
    %v260 = vpow.pop %v259
    %v261 = vmul.f32 %v244, 1.442695
    %v262 = vpow.pop %v261
    %v263 = vmul.f32 %v245, 1.442695
    %v264 = vpow.pop %v263
    %v265 = vmul.f32 %v246, 1.442695
    %v266 = vpow.pop %v265
    %v267 = vmul.f32 %v247, 1.442695
    %v268 = vpow.pop %v267
    %v269 = vmul.f32 %v248, 1.442695
    %v270 = vpow.pop %v269
    %v271 = vmul.f32 %v249, 1.442695
    %v272 = vpow.pop %v271
    %v273 = vmul.f32 %v250, 1.442695
    %v274 = vpow.pop %v273
    %v275 = vmul.f32 %v251, 1.442695
    %v276 = vpow.pop %v275
    %v277 = vmul.f32 %v252, 1.442695
    %v278 = vpow.pop %v277
    %v279 = vmul.f32 %v253, 1.442695
    %v280 = vpow.pop %v279
    %v281 = vmul.f32 %v254, 1.442695
    %v282 = vpow.pop %v281
    %v283 = vmul.f32 %v255, 1.442695
    %v284 = vpow.pop %v283
    %v285 = vmul.f32 %v256, 1.442695
    %v286 = vpow.pop %v285
    %v287 = vmul.f32 %v257, 1.442695
    %v288 = vpow.pop %v287
    %v289 = vmul.f32 %v258, 1.442695
    %v290 = vpow.pop %v289
    %v291 = vsel %vm58, 16843009, 0
    %v292 = vsel %vm59, 16843009, 0
    %v293 = vsel %vm60, 16843009, 0
    %v294 = vsel %vm61, 16843009, 0
    %v295 = vunpack.c.0.s8 %v291
    %v296 = vunpack.c.1.s8 %v291
    %v297 = vunpack.c.2.s8 %v291
    %v298 = vunpack.c.3.s8 %v291
    %v299 = vunpack.c.0.s8 %v292
    %v300 = vunpack.c.1.s8 %v292
    %v301 = vunpack.c.2.s8 %v292
    %v302 = vunpack.c.3.s8 %v292
    %v303 = vunpack.c.0.s8 %v293
    %v304 = vunpack.c.1.s8 %v293
    %v305 = vunpack.c.2.s8 %v293
    %v306 = vunpack.c.3.s8 %v293
    %v307 = vunpack.c.0.s8 %v294
    %v308 = vunpack.c.1.s8 %v294
    %v309 = vunpack.c.2.s8 %v294
    %v310 = vunpack.c.3.s8 %v294
    %v311 = vpack.c.b16 %v295, %v295
    %v312 = vpack.c.b8 %v311, %v311
    %v313 = vpack.c.b16 %v296, %v296
    %v314 = vpack.c.b8 %v313, %v313
    %v315 = vpack.c.b16 %v297, %v297
    %v316 = vpack.c.b8 %v315, %v315
    %v317 = vpack.c.b16 %v298, %v298
    %v318 = vpack.c.b8 %v317, %v317
    %v319 = vpack.c.b16 %v299, %v299
    %v320 = vpack.c.b8 %v319, %v319
    %v321 = vpack.c.b16 %v300, %v300
    %v322 = vpack.c.b8 %v321, %v321
    %v323 = vpack.c.b16 %v301, %v301
    %v324 = vpack.c.b8 %v323, %v323
    %v325 = vpack.c.b16 %v302, %v302
    %v326 = vpack.c.b8 %v325, %v325
    %v327 = vpack.c.b16 %v303, %v303
    %v328 = vpack.c.b8 %v327, %v327
    %v329 = vpack.c.b16 %v304, %v304
    %v330 = vpack.c.b8 %v329, %v329
    %v331 = vpack.c.b16 %v305, %v305
    %v332 = vpack.c.b8 %v331, %v331
    %v333 = vpack.c.b16 %v306, %v306
    %v334 = vpack.c.b8 %v333, %v333
    %v335 = vpack.c.b16 %v307, %v307
    %v336 = vpack.c.b8 %v335, %v335
    %v337 = vpack.c.b16 %v308, %v308
    %v338 = vpack.c.b8 %v337, %v337
    %v339 = vpack.c.b16 %v309, %v309
    %v340 = vpack.c.b8 %v339, %v339
    %v341 = vpack.c.b16 %v310, %v310
    %v342 = vpack.c.b8 %v341, %v341
    %vm343 = vnez %v312
    %vm344 = vnez %v314
    %vm345 = vnez %v316
    %vm346 = vnez %v318
    %vm347 = vnez %v320
    %vm348 = vnez %v322
    %vm349 = vnez %v324
    %vm350 = vnez %v326
    %vm351 = vnez %v328
    %vm352 = vnez %v330
    %vm353 = vnez %v332
    %vm354 = vnez %v334
    %vm355 = vnez %v336
    %vm356 = vnez %v338
    %vm357 = vnez %v340
    %vm358 = vnez %v342
    %v359 = vsel %vm343, 16843009, 0
    %v360 = vsel %vm344, 16843009, 0
    %v361 = vsel %vm345, 16843009, 0
    %v362 = vsel %vm346, 16843009, 0
    %v363 = vsel %vm347, 16843009, 0
    %v364 = vsel %vm348, 16843009, 0
    %v365 = vsel %vm349, 16843009, 0
    %v366 = vsel %vm350, 16843009, 0
    %v367 = vsel %vm351, 16843009, 0
    %v368 = vsel %vm352, 16843009, 0
    %v369 = vsel %vm353, 16843009, 0
    %v370 = vsel %vm354, 16843009, 0
    %v371 = vsel %vm355, 16843009, 0
    %v372 = vsel %vm356, 16843009, 0
    %v373 = vsel %vm357, 16843009, 0
    %v374 = vsel %vm358, 16843009, 0
    %v375 = vunpack.c.0.s8 %v359
    %v376 = vunpack.c.0.s8 %v360
    %v377 = vunpack.c.0.s8 %v361
    %v378 = vunpack.c.0.s8 %v362
    %v379 = vunpack.c.0.s8 %v363
    %v380 = vunpack.c.0.s8 %v364
    %v381 = vunpack.c.0.s8 %v365
    %v382 = vunpack.c.0.s8 %v366
    %v383 = vunpack.c.0.s8 %v367
    %v384 = vunpack.c.0.s8 %v368
    %v385 = vunpack.c.0.s8 %v369
    %v386 = vunpack.c.0.s8 %v370
    %v387 = vunpack.c.0.s8 %v371
    %v388 = vunpack.c.0.s8 %v372
    %v389 = vunpack.c.0.s8 %v373
    %v390 = vunpack.c.0.s8 %v374
    %vm391 = vcmp.ne.s32.totalorder %v375, 0
    %vm392 = vcmp.ne.s32.totalorder %v376, 0
    %vm393 = vcmp.ne.s32.totalorder %v377, 0
    %vm394 = vcmp.ne.s32.totalorder %v378, 0
    %vm395 = vcmp.ne.s32.totalorder %v379, 0
    %vm396 = vcmp.ne.s32.totalorder %v380, 0
    %vm397 = vcmp.ne.s32.totalorder %v381, 0
    %vm398 = vcmp.ne.s32.totalorder %v382, 0
    %vm399 = vcmp.ne.s32.totalorder %v383, 0
    %vm400 = vcmp.ne.s32.totalorder %v384, 0
    %vm401 = vcmp.ne.s32.totalorder %v385, 0
    %vm402 = vcmp.ne.s32.totalorder %v386, 0
    %vm403 = vcmp.ne.s32.totalorder %v387, 0
    %vm404 = vcmp.ne.s32.totalorder %v388, 0
    %vm405 = vcmp.ne.s32.totalorder %v389, 0
    %vm406 = vcmp.ne.s32.totalorder %v390, 0
    %v407 = vsel %vm391, %v260, 0.0
    %v408 = vsel %vm392, %v262, 0.0
    %v409 = vsel %vm393, %v264, 0.0
    %v410 = vsel %vm394, %v266, 0.0
    %v411 = vsel %vm395, %v268, 0.0
    %v412 = vsel %vm396, %v270, 0.0
    %v413 = vsel %vm397, %v272, 0.0
    %v414 = vsel %vm398, %v274, 0.0
    %v415 = vsel %vm399, %v276, 0.0
    %v416 = vsel %vm400, %v278, 0.0
    %v417 = vsel %vm401, %v280, 0.0
    %v418 = vsel %vm402, %v282, 0.0
    %v419 = vsel %vm403, %v284, 0.0
    %v420 = vsel %vm404, %v286, 0.0
    %v421 = vsel %vm405, %v288, 0.0
    %v422 = vsel %vm406, %v290, 0.0
    %v423 = vld [vmem:[%s4] sm:$0x1]
    %v424 = vlaneseq
    %v425 = vshrl.u32 %v424, 7
    %v426 = vsub.s32 0, %v425
    %v427 = vrot.slane %v423, %v426
    %v428 = vmul.f32 %v79, %v427
    %v429 = vmul.f32 %v80, %v427
    %v430 = vmul.f32 %v81, %v427
    %v431 = vmul.f32 %v82, %v427
    %v432 = vmul.f32 %v83, %v427
    %v433 = vmul.f32 %v84, %v427
    %v434 = vmul.f32 %v85, %v427
    %v435 = vmul.f32 %v86, %v427
    %v436 = vmul.f32 %v87, %v427
    %v437 = vmul.f32 %v88, %v427
    %v438 = vmul.f32 %v89, %v427
    %v439 = vmul.f32 %v90, %v427
    %v440 = vmul.f32 %v91, %v427
    %v441 = vmul.f32 %v92, %v427
    %v442 = vmul.f32 %v93, %v427
    %v443 = vmul.f32 %v94, %v427
    %v444 = vpack.c.bf16 %v408, %v407
    %v445 = vpack.c.bf16 %v410, %v409
    %v446 = vpack.c.bf16 %v412, %v411
    %v447 = vpack.c.bf16 %v414, %v413
    %v448 = vpack.c.bf16 %v416, %v415
    %v449 = vpack.c.bf16 %v418, %v417
    %v450 = vpack.c.bf16 %v420, %v419
    %v451 = vpack.c.bf16 %v422, %v421
    %v452 = vpack.c.bf16 %v429, %v428
    %v453 = vpack.c.bf16 %v431, %v430
    %v454 = vpack.c.bf16 %v433, %v432
    %v455 = vpack.c.bf16 %v435, %v434
    %v456 = vpack.c.bf16 %v437, %v436
    %v457 = vpack.c.bf16 %v439, %v438
    %v458 = vpack.c.bf16 %v441, %v440
    %v459 = vpack.c.bf16 %v443, %v442
    %460 = vset.pattern.permute.xlu0 1
    %461 = vperm.xlu0 %460, %v62
    %v462 = vpop.permute.xlu0 %461
    %464 = vset.pattern.permute.xlu0 1
    %465 = vperm.xlu0 %464, %v63
    %v466 = vpop.permute.xlu0 %465
    %468 = vset.pattern.permute.xlu0 1
    %469 = vperm.xlu0 %468, %v64
    %v470 = vpop.permute.xlu0 %469
    %472 = vset.pattern.permute.xlu0 1
    %473 = vperm.xlu0 %472, %v65
    %v474 = vpop.permute.xlu0 %473
    %476 = vset.pattern.permute.xlu0 1
    %477 = vperm.xlu0 %476, %v66
    %v478 = vpop.permute.xlu0 %477
    %480 = vset.pattern.permute.xlu0 1
    %481 = vperm.xlu0 %480, %v67
    %v482 = vpop.permute.xlu0 %481
    %484 = vset.pattern.permute.xlu0 1
    %485 = vperm.xlu0 %484, %v68
    %v486 = vpop.permute.xlu0 %485
    %488 = vset.pattern.permute.xlu0 1
    %489 = vperm.xlu0 %488, %v69
    %v490 = vpop.permute.xlu0 %489
    %492 = vset.pattern.permute.xlu0 1
    %493 = vperm.xlu0 %492, %v70
    %v494 = vpop.permute.xlu0 %493
    %496 = vset.pattern.permute.xlu0 1
    %497 = vperm.xlu0 %496, %v71
    %v498 = vpop.permute.xlu0 %497
    %500 = vset.pattern.permute.xlu0 1
    %501 = vperm.xlu0 %500, %v72
    %v502 = vpop.permute.xlu0 %501
    %504 = vset.pattern.permute.xlu0 1
    %505 = vperm.xlu0 %504, %v73
    %v506 = vpop.permute.xlu0 %505
    %508 = vset.pattern.permute.xlu0 1
    %509 = vperm.xlu0 %508, %v74
    %v510 = vpop.permute.xlu0 %509
    %512 = vset.pattern.permute.xlu0 1
    %513 = vperm.xlu0 %512, %v75
    %v514 = vpop.permute.xlu0 %513
    %516 = vset.pattern.permute.xlu0 1
    %517 = vperm.xlu0 %516, %v76
    %v518 = vpop.permute.xlu0 %517
    %520 = vset.pattern.permute.xlu0 1
    %521 = vperm.xlu0 %520, %v77
    %v522 = vpop.permute.xlu0 %521
    %v524 = vlaneseq
    %v525 = vshrl.u32 %v524, 7
    %v526 = vsub.s32 1, %v525
    %v527 = vrot.slane %v78, %v526
    %v528 = vadd.f32 %v462, %v527
    %v529 = vadd.f32 %v466, %v527
    %v530 = vadd.f32 %v470, %v527
    %v531 = vadd.f32 %v474, %v527
    %v532 = vadd.f32 %v478, %v527
    %v533 = vadd.f32 %v482, %v527
    %v534 = vadd.f32 %v486, %v527
    %v535 = vadd.f32 %v490, %v527
    %v536 = vadd.f32 %v494, %v527
    %v537 = vadd.f32 %v498, %v527
    %v538 = vadd.f32 %v502, %v527
    %v539 = vadd.f32 %v506, %v527
    %v540 = vadd.f32 %v510, %v527
    %v541 = vadd.f32 %v514, %v527
    %v542 = vadd.f32 %v518, %v527
    %v543 = vadd.f32 %v522, %v527
    %vm544 = vcmp.gt.f32.partialorder %v528, 0.0
    %vm545 = vcmp.gt.f32.partialorder %v529, 0.0
    %vm546 = vcmp.gt.f32.partialorder %v530, 0.0
    %vm547 = vcmp.gt.f32.partialorder %v531, 0.0
    %vm548 = vcmp.gt.f32.partialorder %v532, 0.0
    %vm549 = vcmp.gt.f32.partialorder %v533, 0.0
    %vm550 = vcmp.gt.f32.partialorder %v534, 0.0
    %vm551 = vcmp.gt.f32.partialorder %v535, 0.0
    %vm552 = vcmp.gt.f32.partialorder %v536, 0.0
    %vm553 = vcmp.gt.f32.partialorder %v537, 0.0
    %vm554 = vcmp.gt.f32.partialorder %v538, 0.0
    %vm555 = vcmp.gt.f32.partialorder %v539, 0.0
    %vm556 = vcmp.gt.f32.partialorder %v540, 0.0
    %vm557 = vcmp.gt.f32.partialorder %v541, 0.0
    %vm558 = vcmp.gt.f32.partialorder %v542, 0.0
    %vm559 = vcmp.gt.f32.partialorder %v543, 0.0
    %v560 = vmul.f32 %v528, 0.2
    %v561 = vmul.f32 %v529, 0.2
    %v562 = vmul.f32 %v530, 0.2
    %v563 = vmul.f32 %v531, 0.2
    %v564 = vmul.f32 %v532, 0.2
    %v565 = vmul.f32 %v533, 0.2
    %v566 = vmul.f32 %v534, 0.2
    %v567 = vmul.f32 %v535, 0.2
    %v568 = vmul.f32 %v536, 0.2
    %v569 = vmul.f32 %v537, 0.2
    %v570 = vmul.f32 %v538, 0.2
    %v571 = vmul.f32 %v539, 0.2
    %v572 = vmul.f32 %v540, 0.2
    %v573 = vmul.f32 %v541, 0.2
    %v574 = vmul.f32 %v542, 0.2
    %v575 = vmul.f32 %v543, 0.2
    %v576 = vsel %vm544, %v528, %v560
    %v577 = vsel %vm545, %v529, %v561
    %v578 = vsel %vm546, %v530, %v562
    %v579 = vsel %vm547, %v531, %v563
    %v580 = vsel %vm548, %v532, %v564
    %v581 = vsel %vm549, %v533, %v565
    %v582 = vsel %vm550, %v534, %v566
    %v583 = vsel %vm551, %v535, %v567
    %v584 = vsel %vm552, %v536, %v568
    %v585 = vsel %vm553, %v537, %v569
    %v586 = vsel %vm554, %v538, %v570
    %v587 = vsel %vm555, %v539, %v571
    %v588 = vsel %vm556, %v540, %v572
    %v589 = vsel %vm557, %v541, %v573
    %v590 = vsel %vm558, %v542, %v574
    %v591 = vsel %vm559, %v543, %v575
    %v592 = vsub.f32 0.0, %v576
    %v593 = vsub.f32 0.0, %v577
    %v594 = vsub.f32 0.0, %v578
    %v595 = vsub.f32 0.0, %v579
    %v596 = vsub.f32 0.0, %v580
    %v597 = vsub.f32 0.0, %v581
    %v598 = vsub.f32 0.0, %v582
    %v599 = vsub.f32 0.0, %v583
    %v600 = vsub.f32 0.0, %v584
    %v601 = vsub.f32 0.0, %v585
    %v602 = vsub.f32 0.0, %v586
    %v603 = vsub.f32 0.0, %v587
    %v604 = vsub.f32 0.0, %v588
    %v605 = vsub.f32 0.0, %v589
    %v606 = vsub.f32 0.0, %v590
    %v607 = vsub.f32 0.0, %v591
    %v608 = vmul.f32 %v592, 1.442695
    %v609 = vpow.pop %v608
    %v610 = vmul.f32 %v593, 1.442695
    %v611 = vpow.pop %v610
    %v612 = vmul.f32 %v594, 1.442695
    %v613 = vpow.pop %v612
    %v614 = vmul.f32 %v595, 1.442695
    %v615 = vpow.pop %v614
    %v616 = vmul.f32 %v596, 1.442695
    %v617 = vpow.pop %v616
    %v618 = vmul.f32 %v597, 1.442695
    %v619 = vpow.pop %v618
    %v620 = vmul.f32 %v598, 1.442695
    %v621 = vpow.pop %v620
    %v622 = vmul.f32 %v599, 1.442695
    %v623 = vpow.pop %v622
    %v624 = vmul.f32 %v600, 1.442695
    %v625 = vpow.pop %v624
    %v626 = vmul.f32 %v601, 1.442695
    %v627 = vpow.pop %v626
    %v628 = vmul.f32 %v602, 1.442695
    %v629 = vpow.pop %v628
    %v630 = vmul.f32 %v603, 1.442695
    %v631 = vpow.pop %v630
    %v632 = vmul.f32 %v604, 1.442695
    %v633 = vpow.pop %v632
    %v634 = vmul.f32 %v605, 1.442695
    %v635 = vpow.pop %v634
    %v636 = vmul.f32 %v606, 1.442695
    %v637 = vpow.pop %v636
    %v638 = vmul.f32 %v607, 1.442695
    %v639 = vpow.pop %v638
    %v640 = vsel %vm391, %v609, 0.0
    %v641 = vsel %vm392, %v611, 0.0
    %v642 = vsel %vm393, %v613, 0.0
    %v643 = vsel %vm394, %v615, 0.0
    %v644 = vsel %vm395, %v617, 0.0
    %v645 = vsel %vm396, %v619, 0.0
    %v646 = vsel %vm397, %v621, 0.0
    %v647 = vsel %vm398, %v623, 0.0
    %v648 = vsel %vm399, %v625, 0.0
    %v649 = vsel %vm400, %v627, 0.0
    %v650 = vsel %vm401, %v629, 0.0
    %v651 = vsel %vm402, %v631, 0.0
    %v652 = vsel %vm403, %v633, 0.0
    %v653 = vsel %vm404, %v635, 0.0
    %v654 = vsel %vm405, %v637, 0.0
    %v655 = vsel %vm406, %v639, 0.0
    %v656 = vld [vmem:[%s4 + $0x1] sm:$0x1]
    %v657 = vlaneseq
    %v658 = vshrl.u32 %v657, 7
    %v659 = vsub.s32 0, %v658
    %v660 = vrot.slane %v656, %v659
    %v661 = vmul.f32 %v79, %v660
    %v662 = vmul.f32 %v80, %v660
    %v663 = vmul.f32 %v81, %v660
    %v664 = vmul.f32 %v82, %v660
    %v665 = vmul.f32 %v83, %v660
    %v666 = vmul.f32 %v84, %v660
    %v667 = vmul.f32 %v85, %v660
    %v668 = vmul.f32 %v86, %v660
    %v669 = vmul.f32 %v87, %v660
    %v670 = vmul.f32 %v88, %v660
    %v671 = vmul.f32 %v89, %v660
    %v672 = vmul.f32 %v90, %v660
    %v673 = vmul.f32 %v91, %v660
    %v674 = vmul.f32 %v92, %v660
    %v675 = vmul.f32 %v93, %v660
    %v676 = vmul.f32 %v94, %v660
    %v677 = vpack.c.bf16 %v641, %v640
    %v678 = vpack.c.bf16 %v643, %v642
    %v679 = vpack.c.bf16 %v645, %v644
    %v680 = vpack.c.bf16 %v647, %v646
    %v681 = vpack.c.bf16 %v649, %v648
    %v682 = vpack.c.bf16 %v651, %v650
    %v683 = vpack.c.bf16 %v653, %v652
    %v684 = vpack.c.bf16 %v655, %v654
    %v685 = vpack.c.bf16 %v662, %v661
    %v686 = vpack.c.bf16 %v664, %v663
    %v687 = vpack.c.bf16 %v666, %v665
    %v688 = vpack.c.bf16 %v668, %v667
    %v689 = vpack.c.bf16 %v670, %v669
    %v690 = vpack.c.bf16 %v672, %v671
    %v691 = vpack.c.bf16 %v674, %v673
    %v692 = vpack.c.bf16 %v676, %v675
    %693 = vmatprep.subr.bf16.mxu0 0
    %694 = vmatpush1.bf16.msra.mxu0 %v685
    %695 = vmatprep.subr.bf16.mxu0 0
    %696 = vmatpush1.bf16.msra.mxu0 %v686
    %697 = vmatprep.subr.bf16.mxu0 0
    %698 = vmatpush1.bf16.msra.mxu0 %v687
    %699 = vmatprep.subr.bf16.mxu0 0
    %700 = vmatpush1.bf16.msra.mxu0 %v688
    %701 = vmatprep.subr.bf16.mxu0 0
    %702 = vmatpush1.bf16.msra.mxu0 %v689
    %703 = vmatprep.subr.bf16.mxu0 0
    %704 = vmatpush1.bf16.msra.mxu0 %v690
    %705 = vmatprep.subr.bf16.mxu0 0
    %706 = vmatpush1.bf16.msra.mxu0 %v691
    %707 = vmatprep.subr.bf16.mxu0 0
    %708 = vmatpush1.bf16.msra.mxu0 %v692
    %709 = vmatprep.subr.bf16.mxu0 0
    %710 = vmatpush1.bf16.msra.mxu0 0
    %711 = vmatprep.subr.bf16.mxu0 0
    %712 = vmatpush1.bf16.msra.mxu0 0
    %713 = vmatprep.subr.bf16.mxu0 0
    %714 = vmatpush1.bf16.msra.mxu0 0
    %715 = vmatprep.subr.bf16.mxu0 0
    %716 = vmatpush1.bf16.msra.mxu0 0
    %717 = vmatprep.subr.bf16.mxu0 0
    %718 = vmatpush1.bf16.msra.mxu0 0
    %719 = vmatprep.subr.bf16.mxu0 0
    %720 = vmatpush1.bf16.msra.mxu0 0
    %721 = vmatprep.subr.bf16.mxu0 0
    %722 = vmatpush1.bf16.msra.mxu0 0
    %723 = vmatprep.subr.bf16.mxu0 0
    %724 = vmatpush1.bf16.msra.mxu0 0
    %725 = vmatprep.mubr.bf16.mxu0 0
    %726 = vmatmul.mubr.bf16.gmra.mrb[0].mxu0 %v677
    %v727 = vpop.f32.mrb[0].mxu0
    %v728 = vadd.f32 0.0, %v727
    %v729 = vpop.f32.mrb[0].mxu0
    %v730 = vpop.f32.mrb[0].mxu0
    %v731 = vadd.f32 0.0, %v730
    %v732 = vpop.f32.mrb[0].mxu0
    %733 = vmatprep.mubr.bf16.mxu0 0
    %734 = vmatmul.mubr.bf16.gmra.mrb[0].mxu0 %v678
    %v735 = vpop.f32.mrb[0].mxu0
    %v736 = vadd.f32 0.0, %v735
    %v737 = vpop.f32.mrb[0].mxu0
    %v738 = vpop.f32.mrb[0].mxu0
    %v739 = vadd.f32 0.0, %v738
    %v740 = vpop.f32.mrb[0].mxu0
    %741 = vmatprep.mubr.bf16.mxu0 0
    %742 = vmatmul.mubr.bf16.gmra.mrb[0].mxu0 %v679
    %v743 = vpop.f32.mrb[0].mxu0
    %v744 = vadd.f32 0.0, %v743
    %v745 = vpop.f32.mrb[0].mxu0
    %v746 = vpop.f32.mrb[0].mxu0
    %v747 = vadd.f32 0.0, %v746
    %v748 = vpop.f32.mrb[0].mxu0
    %749 = vmatprep.mubr.bf16.mxu0 0
    %750 = vmatmul.mubr.bf16.gmra.mrb[0].mxu0 %v680
    %v751 = vpop.f32.mrb[0].mxu0
    %v752 = vadd.f32 0.0, %v751
    %v753 = vpop.f32.mrb[0].mxu0
    %v754 = vpop.f32.mrb[0].mxu0
    %v755 = vadd.f32 0.0, %v754
    %v756 = vpop.f32.mrb[0].mxu0
    %757 = vmatprep.mubr.bf16.mxu0 0
    %758 = vmatmul.mubr.bf16.gmra.mrb[0].mxu0 %v681
    %v759 = vpop.f32.mrb[0].mxu0
    %v760 = vadd.f32 0.0, %v759
    %v761 = vpop.f32.mrb[0].mxu0
    %v762 = vpop.f32.mrb[0].mxu0
    %v763 = vadd.f32 0.0, %v762
    %v764 = vpop.f32.mrb[0].mxu0
    %765 = vmatprep.mubr.bf16.mxu0 0
    %766 = vmatmul.mubr.bf16.gmra.mrb[0].mxu0 %v682
    %v767 = vpop.f32.mrb[0].mxu0
    %v768 = vadd.f32 0.0, %v767
    %v769 = vpop.f32.mrb[0].mxu0
    %v770 = vpop.f32.mrb[0].mxu0
    %v771 = vadd.f32 0.0, %v770
    %v772 = vpop.f32.mrb[0].mxu0
    %773 = vmatprep.mubr.bf16.mxu0 0
    %774 = vmatmul.mubr.bf16.gmra.mrb[0].mxu0 %v683
    %v775 = vpop.f32.mrb[0].mxu0
    %v776 = vadd.f32 0.0, %v775
    %v777 = vpop.f32.mrb[0].mxu0
    %v778 = vpop.f32.mrb[0].mxu0
    %v779 = vadd.f32 0.0, %v778
    %v780 = vpop.f32.mrb[0].mxu0
    %781 = vmatprep.mubr.bf16.mxu0 0
    %782 = vmatmul.mubr.bf16.gmra.mrb[0].mxu0 %v684
    %v783 = vpop.f32.mrb[0].mxu0
    %v784 = vadd.f32 0.0, %v783
    %v785 = vpop.f32.mrb[0].mxu0
    %v786 = vpop.f32.mrb[0].mxu0
    %v787 = vadd.f32 0.0, %v786
    %v788 = vpop.f32.mrb[0].mxu0
    %789 = vdwg.mxu0
    %790 = vmatprep.subr.bf16.mxu0 0
    %791 = vmatpush1.bf16.msra.mxu0 %v452
    %792 = vmatprep.subr.bf16.mxu0 0
    %793 = vmatpush1.bf16.msra.mxu0 %v453
    %794 = vmatprep.subr.bf16.mxu0 0
    %795 = vmatpush1.bf16.msra.mxu0 %v454
    %796 = vmatprep.subr.bf16.mxu0 0
    %797 = vmatpush1.bf16.msra.mxu0 %v455
    %798 = vmatprep.subr.bf16.mxu0 0
    %799 = vmatpush1.bf16.msra.mxu0 %v456
    %800 = vmatprep.subr.bf16.mxu0 0
    %801 = vmatpush1.bf16.msra.mxu0 %v457
    %802 = vmatprep.subr.bf16.mxu0 0
    %803 = vmatpush1.bf16.msra.mxu0 %v458
    %804 = vmatprep.subr.bf16.mxu0 0
    %805 = vmatpush1.bf16.msra.mxu0 %v459
    %806 = vmatprep.subr.bf16.mxu0 0
    %807 = vmatpush1.bf16.msra.mxu0 0
    %808 = vmatprep.subr.bf16.mxu0 0
    %809 = vmatpush1.bf16.msra.mxu0 0
    %810 = vmatprep.subr.bf16.mxu0 0
    %811 = vmatpush1.bf16.msra.mxu0 0
    %812 = vmatprep.subr.bf16.mxu0 0
    %813 = vmatpush1.bf16.msra.mxu0 0
    %814 = vmatprep.subr.bf16.mxu0 0
    %815 = vmatpush1.bf16.msra.mxu0 0
    %816 = vmatprep.subr.bf16.mxu0 0
    %817 = vmatpush1.bf16.msra.mxu0 0
    %818 = vmatprep.subr.bf16.mxu0 0
    %819 = vmatpush1.bf16.msra.mxu0 0
    %820 = vmatprep.subr.bf16.mxu0 0
    %821 = vmatpush1.bf16.msra.mxu0 0
    %822 = vmatprep.mubr.bf16.mxu0 0
    %823 = vmatmul.mubr.bf16.gmra.mrb[0].mxu0 %v444
    %v824 = vpop.f32.mrb[0].mxu0
    %v825 = vadd.f32 %v728, %v824
    %v826 = vpop.f32.mrb[0].mxu0
    %v827 = vpop.f32.mrb[0].mxu0
    %v828 = vadd.f32 %v731, %v827
    %v829 = vpop.f32.mrb[0].mxu0
    %830 = vmatprep.mubr.bf16.mxu0 0
    %831 = vmatmul.mubr.bf16.gmra.mrb[0].mxu0 %v445
    %v832 = vpop.f32.mrb[0].mxu0
    %v833 = vadd.f32 %v736, %v832
    %v834 = vpop.f32.mrb[0].mxu0
    %v835 = vpop.f32.mrb[0].mxu0
    %v836 = vadd.f32 %v739, %v835
    %v837 = vpop.f32.mrb[0].mxu0
    %838 = vmatprep.mubr.bf16.mxu0 0
    %839 = vmatmul.mubr.bf16.gmra.mrb[0].mxu0 %v446
    %v840 = vpop.f32.mrb[0].mxu0
    %v841 = vadd.f32 %v744, %v840
    %v842 = vpop.f32.mrb[0].mxu0
    %v843 = vpop.f32.mrb[0].mxu0
    %v844 = vadd.f32 %v747, %v843
    %v845 = vpop.f32.mrb[0].mxu0
    %846 = vmatprep.mubr.bf16.mxu0 0
    %847 = vmatmul.mubr.bf16.gmra.mrb[0].mxu0 %v447
    %v848 = vpop.f32.mrb[0].mxu0
    %v849 = vadd.f32 %v752, %v848
    %v850 = vpop.f32.mrb[0].mxu0
    %v851 = vpop.f32.mrb[0].mxu0
    %v852 = vadd.f32 %v755, %v851
    %v853 = vpop.f32.mrb[0].mxu0
    %854 = vmatprep.mubr.bf16.mxu0 0
    %855 = vmatmul.mubr.bf16.gmra.mrb[0].mxu0 %v448
    %v856 = vpop.f32.mrb[0].mxu0
    %v857 = vadd.f32 %v760, %v856
    %v858 = vpop.f32.mrb[0].mxu0
    %v859 = vpop.f32.mrb[0].mxu0
    %v860 = vadd.f32 %v763, %v859
    %v861 = vpop.f32.mrb[0].mxu0
    %862 = vmatprep.mubr.bf16.mxu0 0
    %863 = vmatmul.mubr.bf16.gmra.mrb[0].mxu0 %v449
    %v864 = vpop.f32.mrb[0].mxu0
    %v865 = vadd.f32 %v768, %v864
    %v866 = vpop.f32.mrb[0].mxu0
    %v867 = vpop.f32.mrb[0].mxu0
    %v868 = vadd.f32 %v771, %v867
    %v869 = vpop.f32.mrb[0].mxu0
    %870 = vmatprep.mubr.bf16.mxu0 0
    %871 = vmatmul.mubr.bf16.gmra.mrb[0].mxu0 %v450
    %v872 = vpop.f32.mrb[0].mxu0
    %v873 = vadd.f32 %v776, %v872
    %v874 = vpop.f32.mrb[0].mxu0
    %v875 = vpop.f32.mrb[0].mxu0
    %v876 = vadd.f32 %v779, %v875
    %v877 = vpop.f32.mrb[0].mxu0
    %878 = vmatprep.mubr.bf16.mxu0 0
    %879 = vmatmul.mubr.bf16.gmra.mrb[0].mxu0 %v451
    %v880 = vpop.f32.mrb[0].mxu0
    %v881 = vadd.f32 %v784, %v880
    %v882 = vpop.f32.mrb[0].mxu0
    %v883 = vpop.f32.mrb[0].mxu0
    %v884 = vadd.f32 %v787, %v883
    %v885 = vpop.f32.mrb[0].mxu0
    %886 = vdwg.mxu0
    %887 = vset.pattern.permute.xlu0 2
    %888 = vperm.xlu0 %887, %v62
    %v889 = vpop.permute.xlu0 %888
    %891 = vset.pattern.permute.xlu0 2
    %892 = vperm.xlu0 %891, %v63
    %v893 = vpop.permute.xlu0 %892
    %895 = vset.pattern.permute.xlu0 2
    %896 = vperm.xlu0 %895, %v64
    %v897 = vpop.permute.xlu0 %896
    %899 = vset.pattern.permute.xlu0 2
    %900 = vperm.xlu0 %899, %v65
    %v901 = vpop.permute.xlu0 %900
    %903 = vset.pattern.permute.xlu0 2
    %904 = vperm.xlu0 %903, %v66
    %v905 = vpop.permute.xlu0 %904
    %907 = vset.pattern.permute.xlu0 2
    %908 = vperm.xlu0 %907, %v67
    %v909 = vpop.permute.xlu0 %908
    %911 = vset.pattern.permute.xlu0 2
    %912 = vperm.xlu0 %911, %v68
    %v913 = vpop.permute.xlu0 %912
    %915 = vset.pattern.permute.xlu0 2
    %916 = vperm.xlu0 %915, %v69
    %v917 = vpop.permute.xlu0 %916
    %919 = vset.pattern.permute.xlu0 2
    %920 = vperm.xlu0 %919, %v70
    %v921 = vpop.permute.xlu0 %920
    %923 = vset.pattern.permute.xlu0 2
    %924 = vperm.xlu0 %923, %v71
    %v925 = vpop.permute.xlu0 %924
    %927 = vset.pattern.permute.xlu0 2
    %928 = vperm.xlu0 %927, %v72
    %v929 = vpop.permute.xlu0 %928
    %931 = vset.pattern.permute.xlu0 2
    %932 = vperm.xlu0 %931, %v73
    %v933 = vpop.permute.xlu0 %932
    %935 = vset.pattern.permute.xlu0 2
    %936 = vperm.xlu0 %935, %v74
    %v937 = vpop.permute.xlu0 %936
    %939 = vset.pattern.permute.xlu0 2
    %940 = vperm.xlu0 %939, %v75
    %v941 = vpop.permute.xlu0 %940
    %943 = vset.pattern.permute.xlu0 2
    %944 = vperm.xlu0 %943, %v76
    %v945 = vpop.permute.xlu0 %944
    %947 = vset.pattern.permute.xlu0 2
    %948 = vperm.xlu0 %947, %v77
    %v949 = vpop.permute.xlu0 %948
    %v951 = vlaneseq
    %v952 = vshrl.u32 %v951, 7
    %v953 = vsub.s32 2, %v952
    %v954 = vrot.slane %v78, %v953
    %v955 = vadd.f32 %v889, %v954
    %v956 = vadd.f32 %v893, %v954
    %v957 = vadd.f32 %v897, %v954
    %v958 = vadd.f32 %v901, %v954
    %v959 = vadd.f32 %v905, %v954
    %v960 = vadd.f32 %v909, %v954
    %v961 = vadd.f32 %v913, %v954
    %v962 = vadd.f32 %v917, %v954
    %v963 = vadd.f32 %v921, %v954
    %v964 = vadd.f32 %v925, %v954
    %v965 = vadd.f32 %v929, %v954
    %v966 = vadd.f32 %v933, %v954
    %v967 = vadd.f32 %v937, %v954
    %v968 = vadd.f32 %v941, %v954
    %v969 = vadd.f32 %v945, %v954
    %v970 = vadd.f32 %v949, %v954
    %vm971 = vcmp.gt.f32.partialorder %v955, 0.0
    %vm972 = vcmp.gt.f32.partialorder %v956, 0.0
    %vm973 = vcmp.gt.f32.partialorder %v957, 0.0
    %vm974 = vcmp.gt.f32.partialorder %v958, 0.0
    %vm975 = vcmp.gt.f32.partialorder %v959, 0.0
    %vm976 = vcmp.gt.f32.partialorder %v960, 0.0
    %vm977 = vcmp.gt.f32.partialorder %v961, 0.0
    %vm978 = vcmp.gt.f32.partialorder %v962, 0.0
    %vm979 = vcmp.gt.f32.partialorder %v963, 0.0
    %vm980 = vcmp.gt.f32.partialorder %v964, 0.0
    %vm981 = vcmp.gt.f32.partialorder %v965, 0.0
    %vm982 = vcmp.gt.f32.partialorder %v966, 0.0
    %vm983 = vcmp.gt.f32.partialorder %v967, 0.0
    %vm984 = vcmp.gt.f32.partialorder %v968, 0.0
    %vm985 = vcmp.gt.f32.partialorder %v969, 0.0
    %vm986 = vcmp.gt.f32.partialorder %v970, 0.0
    %v987 = vmul.f32 %v955, 0.2
    %v988 = vmul.f32 %v956, 0.2
    %v989 = vmul.f32 %v957, 0.2
    %v990 = vmul.f32 %v958, 0.2
    %v991 = vmul.f32 %v959, 0.2
    %v992 = vmul.f32 %v960, 0.2
    %v993 = vmul.f32 %v961, 0.2
    %v994 = vmul.f32 %v962, 0.2
    %v995 = vmul.f32 %v963, 0.2
    %v996 = vmul.f32 %v964, 0.2
    %v997 = vmul.f32 %v965, 0.2
    %v998 = vmul.f32 %v966, 0.2
    %v999 = vmul.f32 %v967, 0.2
    %v1000 = vmul.f32 %v968, 0.2
    %v1001 = vmul.f32 %v969, 0.2
    %v1002 = vmul.f32 %v970, 0.2
    %v1003 = vsel %vm971, %v955, %v987
    %v1004 = vsel %vm972, %v956, %v988
    %v1005 = vsel %vm973, %v957, %v989
    %v1006 = vsel %vm974, %v958, %v990
    %v1007 = vsel %vm975, %v959, %v991
    %v1008 = vsel %vm976, %v960, %v992
    %v1009 = vsel %vm977, %v961, %v993
    %v1010 = vsel %vm978, %v962, %v994
    %v1011 = vsel %vm979, %v963, %v995
    %v1012 = vsel %vm980, %v964, %v996
    %v1013 = vsel %vm981, %v965, %v997
    %v1014 = vsel %vm982, %v966, %v998
    %v1015 = vsel %vm983, %v967, %v999
    %v1016 = vsel %vm984, %v968, %v1000
    %v1017 = vsel %vm985, %v969, %v1001
    %v1018 = vsel %vm986, %v970, %v1002
    %v1019 = vsub.f32 0.0, %v1003
    %v1020 = vsub.f32 0.0, %v1004
    %v1021 = vsub.f32 0.0, %v1005
    %v1022 = vsub.f32 0.0, %v1006
    %v1023 = vsub.f32 0.0, %v1007
    %v1024 = vsub.f32 0.0, %v1008
    %v1025 = vsub.f32 0.0, %v1009
    %v1026 = vsub.f32 0.0, %v1010
    %v1027 = vsub.f32 0.0, %v1011
    %v1028 = vsub.f32 0.0, %v1012
    %v1029 = vsub.f32 0.0, %v1013
    %v1030 = vsub.f32 0.0, %v1014
    %v1031 = vsub.f32 0.0, %v1015
    %v1032 = vsub.f32 0.0, %v1016
    %v1033 = vsub.f32 0.0, %v1017
    %v1034 = vsub.f32 0.0, %v1018
    %v1035 = vmul.f32 %v1019, 1.442695
    %v1036 = vpow.pop %v1035
    %v1037 = vmul.f32 %v1020, 1.442695
    %v1038 = vpow.pop %v1037
    %v1039 = vmul.f32 %v1021, 1.442695
    %v1040 = vpow.pop %v1039
    %v1041 = vmul.f32 %v1022, 1.442695
    %v1042 = vpow.pop %v1041
    %v1043 = vmul.f32 %v1023, 1.442695
    %v1044 = vpow.pop %v1043
    %v1045 = vmul.f32 %v1024, 1.442695
    %v1046 = vpow.pop %v1045
    %v1047 = vmul.f32 %v1025, 1.442695
    %v1048 = vpow.pop %v1047
    %v1049 = vmul.f32 %v1026, 1.442695
    %v1050 = vpow.pop %v1049
    %v1051 = vmul.f32 %v1027, 1.442695
    %v1052 = vpow.pop %v1051
    %v1053 = vmul.f32 %v1028, 1.442695
    %v1054 = vpow.pop %v1053
    %v1055 = vmul.f32 %v1029, 1.442695
    %v1056 = vpow.pop %v1055
    %v1057 = vmul.f32 %v1030, 1.442695
    %v1058 = vpow.pop %v1057
    %v1059 = vmul.f32 %v1031, 1.442695
    %v1060 = vpow.pop %v1059
    %v1061 = vmul.f32 %v1032, 1.442695
    %v1062 = vpow.pop %v1061
    %v1063 = vmul.f32 %v1033, 1.442695
    %v1064 = vpow.pop %v1063
    %v1065 = vmul.f32 %v1034, 1.442695
    %v1066 = vpow.pop %v1065
    %v1067 = vsel %vm391, %v1036, 0.0
    %v1068 = vsel %vm392, %v1038, 0.0
    %v1069 = vsel %vm393, %v1040, 0.0
    %v1070 = vsel %vm394, %v1042, 0.0
    %v1071 = vsel %vm395, %v1044, 0.0
    %v1072 = vsel %vm396, %v1046, 0.0
    %v1073 = vsel %vm397, %v1048, 0.0
    %v1074 = vsel %vm398, %v1050, 0.0
    %v1075 = vsel %vm399, %v1052, 0.0
    %v1076 = vsel %vm400, %v1054, 0.0
    %v1077 = vsel %vm401, %v1056, 0.0
    %v1078 = vsel %vm402, %v1058, 0.0
    %v1079 = vsel %vm403, %v1060, 0.0
    %v1080 = vsel %vm404, %v1062, 0.0
    %v1081 = vsel %vm405, %v1064, 0.0
    %v1082 = vsel %vm406, %v1066, 0.0
    %v1083 = vld [vmem:[%s4 + $0x2] sm:$0x1]
    %v1084 = vlaneseq
    %v1085 = vshrl.u32 %v1084, 7
    %v1086 = vsub.s32 0, %v1085
    %v1087 = vrot.slane %v1083, %v1086
    %v1088 = vmul.f32 %v79, %v1087
    %v1089 = vmul.f32 %v80, %v1087
    %v1090 = vmul.f32 %v81, %v1087
    %v1091 = vmul.f32 %v82, %v1087
    %v1092 = vmul.f32 %v83, %v1087
    %v1093 = vmul.f32 %v84, %v1087
    %v1094 = vmul.f32 %v85, %v1087
    %v1095 = vmul.f32 %v86, %v1087
    %v1096 = vmul.f32 %v87, %v1087
    %v1097 = vmul.f32 %v88, %v1087
    %v1098 = vmul.f32 %v89, %v1087
    %v1099 = vmul.f32 %v90, %v1087
    %v1100 = vmul.f32 %v91, %v1087
    %v1101 = vmul.f32 %v92, %v1087
    %v1102 = vmul.f32 %v93, %v1087
    %v1103 = vmul.f32 %v94, %v1087
    %v1104 = vpack.c.bf16 %v1068, %v1067
    %v1105 = vpack.c.bf16 %v1070, %v1069
    %v1106 = vpack.c.bf16 %v1072, %v1071
    %v1107 = vpack.c.bf16 %v1074, %v1073
    %v1108 = vpack.c.bf16 %v1076, %v1075
    %v1109 = vpack.c.bf16 %v1078, %v1077
    %v1110 = vpack.c.bf16 %v1080, %v1079
    %v1111 = vpack.c.bf16 %v1082, %v1081
    %v1112 = vpack.c.bf16 %v1089, %v1088
    %v1113 = vpack.c.bf16 %v1091, %v1090
    %v1114 = vpack.c.bf16 %v1093, %v1092
    %v1115 = vpack.c.bf16 %v1095, %v1094
    %v1116 = vpack.c.bf16 %v1097, %v1096
    %v1117 = vpack.c.bf16 %v1099, %v1098
    %v1118 = vpack.c.bf16 %v1101, %v1100
    %v1119 = vpack.c.bf16 %v1103, %v1102
    %1120 = vmatprep.subr.bf16.mxu0 0
    %1121 = vmatpush1.bf16.msra.mxu0 %v1112
    %1122 = vmatprep.subr.bf16.mxu0 0
    %1123 = vmatpush1.bf16.msra.mxu0 %v1113
    %1124 = vmatprep.subr.bf16.mxu0 0
    %1125 = vmatpush1.bf16.msra.mxu0 %v1114
    %1126 = vmatprep.subr.bf16.mxu0 0
    %1127 = vmatpush1.bf16.msra.mxu0 %v1115
    %1128 = vmatprep.subr.bf16.mxu0 0
    %1129 = vmatpush1.bf16.msra.mxu0 %v1116
    %1130 = vmatprep.subr.bf16.mxu0 0
    %1131 = vmatpush1.bf16.msra.mxu0 %v1117
    %1132 = vmatprep.subr.bf16.mxu0 0
    %1133 = vmatpush1.bf16.msra.mxu0 %v1118
    %1134 = vmatprep.subr.bf16.mxu0 0
    %1135 = vmatpush1.bf16.msra.mxu0 %v1119
    %1136 = vmatprep.subr.bf16.mxu0 0
    %1137 = vmatpush1.bf16.msra.mxu0 0
    %1138 = vmatprep.subr.bf16.mxu0 0
    %1139 = vmatpush1.bf16.msra.mxu0 0
    %1140 = vmatprep.subr.bf16.mxu0 0
    %1141 = vmatpush1.bf16.msra.mxu0 0
    %1142 = vmatprep.subr.bf16.mxu0 0
    %1143 = vmatpush1.bf16.msra.mxu0 0
    %1144 = vmatprep.subr.bf16.mxu0 0
    %1145 = vmatpush1.bf16.msra.mxu0 0
    %1146 = vmatprep.subr.bf16.mxu0 0
    %1147 = vmatpush1.bf16.msra.mxu0 0
    %1148 = vmatprep.subr.bf16.mxu0 0
    %1149 = vmatpush1.bf16.msra.mxu0 0
    %1150 = vmatprep.subr.bf16.mxu0 0
    %1151 = vmatpush1.bf16.msra.mxu0 0
    %1152 = vmatprep.mubr.bf16.mxu0 0
    %1153 = vmatmul.mubr.bf16.gmra.mrb[0].mxu0 %v1104
    %v1154 = vpop.f32.mrb[0].mxu0
    %v1155 = vadd.f32 0.0, %v1154
    %v1156 = vpop.f32.mrb[0].mxu0
    %v1157 = vpop.f32.mrb[0].mxu0
    %v1158 = vadd.f32 0.0, %v1157
    %v1159 = vpop.f32.mrb[0].mxu0
    %1160 = vmatprep.mubr.bf16.mxu0 0
    %1161 = vmatmul.mubr.bf16.gmra.mrb[0].mxu0 %v1105
    %v1162 = vpop.f32.mrb[0].mxu0
    %v1163 = vadd.f32 0.0, %v1162
    %v1164 = vpop.f32.mrb[0].mxu0
    %v1165 = vpop.f32.mrb[0].mxu0
    %v1166 = vadd.f32 0.0, %v1165
    %v1167 = vpop.f32.mrb[0].mxu0
    %1168 = vmatprep.mubr.bf16.mxu0 0
    %1169 = vmatmul.mubr.bf16.gmra.mrb[0].mxu0 %v1106
    %v1170 = vpop.f32.mrb[0].mxu0
    %v1171 = vadd.f32 0.0, %v1170
    %v1172 = vpop.f32.mrb[0].mxu0
    %v1173 = vpop.f32.mrb[0].mxu0
    %v1174 = vadd.f32 0.0, %v1173
    %v1175 = vpop.f32.mrb[0].mxu0
    %1176 = vmatprep.mubr.bf16.mxu0 0
    %1177 = vmatmul.mubr.bf16.gmra.mrb[0].mxu0 %v1107
    %v1178 = vpop.f32.mrb[0].mxu0
    %v1179 = vadd.f32 0.0, %v1178
    %v1180 = vpop.f32.mrb[0].mxu0
    %v1181 = vpop.f32.mrb[0].mxu0
    %v1182 = vadd.f32 0.0, %v1181
    %v1183 = vpop.f32.mrb[0].mxu0
    %1184 = vmatprep.mubr.bf16.mxu0 0
    %1185 = vmatmul.mubr.bf16.gmra.mrb[0].mxu0 %v1108
    %v1186 = vpop.f32.mrb[0].mxu0
    %v1187 = vadd.f32 0.0, %v1186
    %v1188 = vpop.f32.mrb[0].mxu0
    %v1189 = vpop.f32.mrb[0].mxu0
    %v1190 = vadd.f32 0.0, %v1189
    %v1191 = vpop.f32.mrb[0].mxu0
    %1192 = vmatprep.mubr.bf16.mxu0 0
    %1193 = vmatmul.mubr.bf16.gmra.mrb[0].mxu0 %v1109
    %v1194 = vpop.f32.mrb[0].mxu0
    %v1195 = vadd.f32 0.0, %v1194
    %v1196 = vpop.f32.mrb[0].mxu0
    %v1197 = vpop.f32.mrb[0].mxu0
    %v1198 = vadd.f32 0.0, %v1197
    %v1199 = vpop.f32.mrb[0].mxu0
    %1200 = vmatprep.mubr.bf16.mxu0 0
    %1201 = vmatmul.mubr.bf16.gmra.mrb[0].mxu0 %v1110
    %v1202 = vpop.f32.mrb[0].mxu0
    %v1203 = vadd.f32 0.0, %v1202
    %v1204 = vpop.f32.mrb[0].mxu0
    %v1205 = vpop.f32.mrb[0].mxu0
    %v1206 = vadd.f32 0.0, %v1205
    %v1207 = vpop.f32.mrb[0].mxu0
    %1208 = vmatprep.mubr.bf16.mxu0 0
    %1209 = vmatmul.mubr.bf16.gmra.mrb[0].mxu0 %v1111
    %v1210 = vpop.f32.mrb[0].mxu0
    %v1211 = vadd.f32 0.0, %v1210
    %v1212 = vpop.f32.mrb[0].mxu0
    %v1213 = vpop.f32.mrb[0].mxu0
    %v1214 = vadd.f32 0.0, %v1213
    %v1215 = vpop.f32.mrb[0].mxu0
    %1216 = vdwg.mxu0
    %v1217 = vadd.f32 %v825, %v1155
    %v1218 = vadd.f32 %v828, %v1158
    %v1219 = vadd.f32 %v833, %v1163
    %v1220 = vadd.f32 %v836, %v1166
    %v1221 = vadd.f32 %v841, %v1171
    %v1222 = vadd.f32 %v844, %v1174
    %v1223 = vadd.f32 %v849, %v1179
    %v1224 = vadd.f32 %v852, %v1182
    %v1225 = vadd.f32 %v857, %v1187
    %v1226 = vadd.f32 %v860, %v1190
    %v1227 = vadd.f32 %v865, %v1195
    %v1228 = vadd.f32 %v868, %v1198
    %v1229 = vadd.f32 %v873, %v1203
    %v1230 = vadd.f32 %v876, %v1206
    %v1231 = vadd.f32 %v881, %v1211
    %v1232 = vadd.f32 %v884, %v1214
    %1233 = vset.pattern.permute.xlu0 3
    %1234 = vperm.xlu0 %1233, %v62
    %v1235 = vpop.permute.xlu0 %1234
    %1237 = vset.pattern.permute.xlu0 3
    %1238 = vperm.xlu0 %1237, %v63
    %v1239 = vpop.permute.xlu0 %1238
    %1241 = vset.pattern.permute.xlu0 3
    %1242 = vperm.xlu0 %1241, %v64
    %v1243 = vpop.permute.xlu0 %1242
    %1245 = vset.pattern.permute.xlu0 3
    %1246 = vperm.xlu0 %1245, %v65
    %v1247 = vpop.permute.xlu0 %1246
    %1249 = vset.pattern.permute.xlu0 3
    %1250 = vperm.xlu0 %1249, %v66
    %v1251 = vpop.permute.xlu0 %1250
    %1253 = vset.pattern.permute.xlu0 3
    %1254 = vperm.xlu0 %1253, %v67
    %v1255 = vpop.permute.xlu0 %1254
    %1257 = vset.pattern.permute.xlu0 3
    %1258 = vperm.xlu0 %1257, %v68
    %v1259 = vpop.permute.xlu0 %1258
    %1261 = vset.pattern.permute.xlu0 3
    %1262 = vperm.xlu0 %1261, %v69
    %v1263 = vpop.permute.xlu0 %1262
    %1265 = vset.pattern.permute.xlu0 3
    %1266 = vperm.xlu0 %1265, %v70
    %v1267 = vpop.permute.xlu0 %1266
    %1269 = vset.pattern.permute.xlu0 3
    %1270 = vperm.xlu0 %1269, %v71
    %v1271 = vpop.permute.xlu0 %1270
    %1273 = vset.pattern.permute.xlu0 3
    %1274 = vperm.xlu0 %1273, %v72
    %v1275 = vpop.permute.xlu0 %1274
    %1277 = vset.pattern.permute.xlu0 3
    %1278 = vperm.xlu0 %1277, %v73
    %v1279 = vpop.permute.xlu0 %1278
    %1281 = vset.pattern.permute.xlu0 3
    %1282 = vperm.xlu0 %1281, %v74
    %v1283 = vpop.permute.xlu0 %1282
    %1285 = vset.pattern.permute.xlu0 3
    %1286 = vperm.xlu0 %1285, %v75
    %v1287 = vpop.permute.xlu0 %1286
    %1289 = vset.pattern.permute.xlu0 3
    %1290 = vperm.xlu0 %1289, %v76
    %v1291 = vpop.permute.xlu0 %1290
    %1293 = vset.pattern.permute.xlu0 3
    %1294 = vperm.xlu0 %1293, %v77
    %v1295 = vpop.permute.xlu0 %1294
    %v1297 = vlaneseq
    %v1298 = vshrl.u32 %v1297, 7
    %v1299 = vsub.s32 3, %v1298
    %v1300 = vrot.slane %v78, %v1299
    %v1301 = vadd.f32 %v1235, %v1300
    %v1302 = vadd.f32 %v1239, %v1300
    %v1303 = vadd.f32 %v1243, %v1300
    %v1304 = vadd.f32 %v1247, %v1300
    %v1305 = vadd.f32 %v1251, %v1300
    %v1306 = vadd.f32 %v1255, %v1300
    %v1307 = vadd.f32 %v1259, %v1300
    %v1308 = vadd.f32 %v1263, %v1300
    %v1309 = vadd.f32 %v1267, %v1300
    %v1310 = vadd.f32 %v1271, %v1300
    %v1311 = vadd.f32 %v1275, %v1300
    %v1312 = vadd.f32 %v1279, %v1300
    %v1313 = vadd.f32 %v1283, %v1300
    %v1314 = vadd.f32 %v1287, %v1300
    %v1315 = vadd.f32 %v1291, %v1300
    %v1316 = vadd.f32 %v1295, %v1300
    %vm1317 = vcmp.gt.f32.partialorder %v1301, 0.0
    %vm1318 = vcmp.gt.f32.partialorder %v1302, 0.0
    %vm1319 = vcmp.gt.f32.partialorder %v1303, 0.0
    %vm1320 = vcmp.gt.f32.partialorder %v1304, 0.0
    %vm1321 = vcmp.gt.f32.partialorder %v1305, 0.0
    %vm1322 = vcmp.gt.f32.partialorder %v1306, 0.0
    %vm1323 = vcmp.gt.f32.partialorder %v1307, 0.0
    %vm1324 = vcmp.gt.f32.partialorder %v1308, 0.0
    %vm1325 = vcmp.gt.f32.partialorder %v1309, 0.0
    %vm1326 = vcmp.gt.f32.partialorder %v1310, 0.0
    %vm1327 = vcmp.gt.f32.partialorder %v1311, 0.0
    %vm1328 = vcmp.gt.f32.partialorder %v1312, 0.0
    %vm1329 = vcmp.gt.f32.partialorder %v1313, 0.0
    %vm1330 = vcmp.gt.f32.partialorder %v1314, 0.0
    %vm1331 = vcmp.gt.f32.partialorder %v1315, 0.0
    %vm1332 = vcmp.gt.f32.partialorder %v1316, 0.0
    %v1333 = vmul.f32 %v1301, 0.2
    %v1334 = vmul.f32 %v1302, 0.2
    %v1335 = vmul.f32 %v1303, 0.2
    %v1336 = vmul.f32 %v1304, 0.2
    %v1337 = vmul.f32 %v1305, 0.2
    %v1338 = vmul.f32 %v1306, 0.2
    %v1339 = vmul.f32 %v1307, 0.2
    %v1340 = vmul.f32 %v1308, 0.2
    %v1341 = vmul.f32 %v1309, 0.2
    %v1342 = vmul.f32 %v1310, 0.2
    %v1343 = vmul.f32 %v1311, 0.2
    %v1344 = vmul.f32 %v1312, 0.2
    %v1345 = vmul.f32 %v1313, 0.2
    %v1346 = vmul.f32 %v1314, 0.2
    %v1347 = vmul.f32 %v1315, 0.2
    %v1348 = vmul.f32 %v1316, 0.2
    %v1349 = vsel %vm1317, %v1301, %v1333
    %v1350 = vsel %vm1318, %v1302, %v1334
    %v1351 = vsel %vm1319, %v1303, %v1335
    %v1352 = vsel %vm1320, %v1304, %v1336
    %v1353 = vsel %vm1321, %v1305, %v1337
    %v1354 = vsel %vm1322, %v1306, %v1338
    %v1355 = vsel %vm1323, %v1307, %v1339
    %v1356 = vsel %vm1324, %v1308, %v1340
    %v1357 = vsel %vm1325, %v1309, %v1341
    %v1358 = vsel %vm1326, %v1310, %v1342
    %v1359 = vsel %vm1327, %v1311, %v1343
    %v1360 = vsel %vm1328, %v1312, %v1344
    %v1361 = vsel %vm1329, %v1313, %v1345
    %v1362 = vsel %vm1330, %v1314, %v1346
    %v1363 = vsel %vm1331, %v1315, %v1347
    %v1364 = vsel %vm1332, %v1316, %v1348
    %v1365 = vsub.f32 0.0, %v1349
    %v1366 = vsub.f32 0.0, %v1350
    %v1367 = vsub.f32 0.0, %v1351
    %v1368 = vsub.f32 0.0, %v1352
    %v1369 = vsub.f32 0.0, %v1353
    %v1370 = vsub.f32 0.0, %v1354
    %v1371 = vsub.f32 0.0, %v1355
    %v1372 = vsub.f32 0.0, %v1356
    %v1373 = vsub.f32 0.0, %v1357
    %v1374 = vsub.f32 0.0, %v1358
    %v1375 = vsub.f32 0.0, %v1359
    %v1376 = vsub.f32 0.0, %v1360
    %v1377 = vsub.f32 0.0, %v1361
    %v1378 = vsub.f32 0.0, %v1362
    %v1379 = vsub.f32 0.0, %v1363
    %v1380 = vsub.f32 0.0, %v1364
    %v1381 = vmul.f32 %v1365, 1.442695
    %v1382 = vpow.pop %v1381
    %v1383 = vmul.f32 %v1366, 1.442695
    %v1384 = vpow.pop %v1383
    %v1385 = vmul.f32 %v1367, 1.442695
    %v1386 = vpow.pop %v1385
    %v1387 = vmul.f32 %v1368, 1.442695
    %v1388 = vpow.pop %v1387
    %v1389 = vmul.f32 %v1369, 1.442695
    %v1390 = vpow.pop %v1389
    %v1391 = vmul.f32 %v1370, 1.442695
    %v1392 = vpow.pop %v1391
    %v1393 = vmul.f32 %v1371, 1.442695
    %v1394 = vpow.pop %v1393
    %v1395 = vmul.f32 %v1372, 1.442695
    %v1396 = vpow.pop %v1395
    %v1397 = vmul.f32 %v1373, 1.442695
    %v1398 = vpow.pop %v1397
    %v1399 = vmul.f32 %v1374, 1.442695
    %v1400 = vpow.pop %v1399
    %v1401 = vmul.f32 %v1375, 1.442695
    %v1402 = vpow.pop %v1401
    %v1403 = vmul.f32 %v1376, 1.442695
    %v1404 = vpow.pop %v1403
    %v1405 = vmul.f32 %v1377, 1.442695
    %v1406 = vpow.pop %v1405
    %v1407 = vmul.f32 %v1378, 1.442695
    %v1408 = vpow.pop %v1407
    %v1409 = vmul.f32 %v1379, 1.442695
    %v1410 = vpow.pop %v1409
    %v1411 = vmul.f32 %v1380, 1.442695
    %v1412 = vpow.pop %v1411
    %v1413 = vsel %vm391, %v1382, 0.0
    %v1414 = vsel %vm392, %v1384, 0.0
    %v1415 = vsel %vm393, %v1386, 0.0
    %v1416 = vsel %vm394, %v1388, 0.0
    %v1417 = vsel %vm395, %v1390, 0.0
    %v1418 = vsel %vm396, %v1392, 0.0
    %v1419 = vsel %vm397, %v1394, 0.0
    %v1420 = vsel %vm398, %v1396, 0.0
    %v1421 = vsel %vm399, %v1398, 0.0
    %v1422 = vsel %vm400, %v1400, 0.0
    %v1423 = vsel %vm401, %v1402, 0.0
    %v1424 = vsel %vm402, %v1404, 0.0
    %v1425 = vsel %vm403, %v1406, 0.0
    %v1426 = vsel %vm404, %v1408, 0.0
    %v1427 = vsel %vm405, %v1410, 0.0
    %v1428 = vsel %vm406, %v1412, 0.0
    %v1429 = vld [vmem:[%s4 + $0x3] sm:$0x1]
    %v1430 = vlaneseq
    %v1431 = vshrl.u32 %v1430, 7
    %v1432 = vsub.s32 0, %v1431
    %v1433 = vrot.slane %v1429, %v1432
    %v1434 = vmul.f32 %v79, %v1433
    %v1435 = vmul.f32 %v80, %v1433
    %v1436 = vmul.f32 %v81, %v1433
    %v1437 = vmul.f32 %v82, %v1433
    %v1438 = vmul.f32 %v83, %v1433
    %v1439 = vmul.f32 %v84, %v1433
    %v1440 = vmul.f32 %v85, %v1433
    %v1441 = vmul.f32 %v86, %v1433
    %v1442 = vmul.f32 %v87, %v1433
    %v1443 = vmul.f32 %v88, %v1433
    %v1444 = vmul.f32 %v89, %v1433
    %v1445 = vmul.f32 %v90, %v1433
    %v1446 = vmul.f32 %v91, %v1433
    %v1447 = vmul.f32 %v92, %v1433
    %v1448 = vmul.f32 %v93, %v1433
    %v1449 = vmul.f32 %v94, %v1433
    %v1450 = vpack.c.bf16 %v1414, %v1413
    %v1451 = vpack.c.bf16 %v1416, %v1415
    %v1452 = vpack.c.bf16 %v1418, %v1417
    %v1453 = vpack.c.bf16 %v1420, %v1419
    %v1454 = vpack.c.bf16 %v1422, %v1421
    %v1455 = vpack.c.bf16 %v1424, %v1423
    %v1456 = vpack.c.bf16 %v1426, %v1425
    %v1457 = vpack.c.bf16 %v1428, %v1427
    %v1458 = vpack.c.bf16 %v1435, %v1434
    %v1459 = vpack.c.bf16 %v1437, %v1436
    %v1460 = vpack.c.bf16 %v1439, %v1438
    %v1461 = vpack.c.bf16 %v1441, %v1440
    %v1462 = vpack.c.bf16 %v1443, %v1442
    %v1463 = vpack.c.bf16 %v1445, %v1444
    %v1464 = vpack.c.bf16 %v1447, %v1446
    %v1465 = vpack.c.bf16 %v1449, %v1448
    %1466 = vmatprep.subr.bf16.mxu0 0
    %1467 = vmatpush1.bf16.msra.mxu0 %v1458
    %1468 = vmatprep.subr.bf16.mxu0 0
    %1469 = vmatpush1.bf16.msra.mxu0 %v1459
    %1470 = vmatprep.subr.bf16.mxu0 0
    %1471 = vmatpush1.bf16.msra.mxu0 %v1460
    %1472 = vmatprep.subr.bf16.mxu0 0
    %1473 = vmatpush1.bf16.msra.mxu0 %v1461
    %1474 = vmatprep.subr.bf16.mxu0 0
    %1475 = vmatpush1.bf16.msra.mxu0 %v1462
    %1476 = vmatprep.subr.bf16.mxu0 0
    %1477 = vmatpush1.bf16.msra.mxu0 %v1463
    %1478 = vmatprep.subr.bf16.mxu0 0
    %1479 = vmatpush1.bf16.msra.mxu0 %v1464
    %1480 = vmatprep.subr.bf16.mxu0 0
    %1481 = vmatpush1.bf16.msra.mxu0 %v1465
    %1482 = vmatprep.subr.bf16.mxu0 0
    %1483 = vmatpush1.bf16.msra.mxu0 0
    %1484 = vmatprep.subr.bf16.mxu0 0
    %1485 = vmatpush1.bf16.msra.mxu0 0
    %1486 = vmatprep.subr.bf16.mxu0 0
    %1487 = vmatpush1.bf16.msra.mxu0 0
    %1488 = vmatprep.subr.bf16.mxu0 0
    %1489 = vmatpush1.bf16.msra.mxu0 0
    %1490 = vmatprep.subr.bf16.mxu0 0
    %1491 = vmatpush1.bf16.msra.mxu0 0
    %1492 = vmatprep.subr.bf16.mxu0 0
    %1493 = vmatpush1.bf16.msra.mxu0 0
    %1494 = vmatprep.subr.bf16.mxu0 0
    %1495 = vmatpush1.bf16.msra.mxu0 0
    %1496 = vmatprep.subr.bf16.mxu0 0
    %1497 = vmatpush1.bf16.msra.mxu0 0
    %1498 = vmatprep.mubr.bf16.mxu0 0
    %1499 = vmatmul.mubr.bf16.gmra.mrb[0].mxu0 %v1450
    %v1500 = vpop.f32.mrb[0].mxu0
    %v1501 = vadd.f32 0.0, %v1500
    %v1502 = vpop.f32.mrb[0].mxu0
    %v1503 = vpop.f32.mrb[0].mxu0
    %v1504 = vadd.f32 0.0, %v1503
    %v1505 = vpop.f32.mrb[0].mxu0
    %1506 = vmatprep.mubr.bf16.mxu0 0
    %1507 = vmatmul.mubr.bf16.gmra.mrb[0].mxu0 %v1451
    %v1508 = vpop.f32.mrb[0].mxu0
    %v1509 = vadd.f32 0.0, %v1508
    %v1510 = vpop.f32.mrb[0].mxu0
    %v1511 = vpop.f32.mrb[0].mxu0
    %v1512 = vadd.f32 0.0, %v1511
    %v1513 = vpop.f32.mrb[0].mxu0
    %1514 = vmatprep.mubr.bf16.mxu0 0
    %1515 = vmatmul.mubr.bf16.gmra.mrb[0].mxu0 %v1452
    %v1516 = vpop.f32.mrb[0].mxu0
    %v1517 = vadd.f32 0.0, %v1516
    %v1518 = vpop.f32.mrb[0].mxu0
    %v1519 = vpop.f32.mrb[0].mxu0
    %v1520 = vadd.f32 0.0, %v1519
    %v1521 = vpop.f32.mrb[0].mxu0
    %1522 = vmatprep.mubr.bf16.mxu0 0
    %1523 = vmatmul.mubr.bf16.gmra.mrb[0].mxu0 %v1453
    %v1524 = vpop.f32.mrb[0].mxu0
    %v1525 = vadd.f32 0.0, %v1524
    %v1526 = vpop.f32.mrb[0].mxu0
    %v1527 = vpop.f32.mrb[0].mxu0
    %v1528 = vadd.f32 0.0, %v1527
    %v1529 = vpop.f32.mrb[0].mxu0
    %1530 = vmatprep.mubr.bf16.mxu0 0
    %1531 = vmatmul.mubr.bf16.gmra.mrb[0].mxu0 %v1454
    %v1532 = vpop.f32.mrb[0].mxu0
    %v1533 = vadd.f32 0.0, %v1532
    %v1534 = vpop.f32.mrb[0].mxu0
    %v1535 = vpop.f32.mrb[0].mxu0
    %v1536 = vadd.f32 0.0, %v1535
    %v1537 = vpop.f32.mrb[0].mxu0
    %1538 = vmatprep.mubr.bf16.mxu0 0
    %1539 = vmatmul.mubr.bf16.gmra.mrb[0].mxu0 %v1455
    %v1540 = vpop.f32.mrb[0].mxu0
    %v1541 = vadd.f32 0.0, %v1540
    %v1542 = vpop.f32.mrb[0].mxu0
    %v1543 = vpop.f32.mrb[0].mxu0
    %v1544 = vadd.f32 0.0, %v1543
    %v1545 = vpop.f32.mrb[0].mxu0
    %1546 = vmatprep.mubr.bf16.mxu0 0
    %1547 = vmatmul.mubr.bf16.gmra.mrb[0].mxu0 %v1456
    %v1548 = vpop.f32.mrb[0].mxu0
    %v1549 = vadd.f32 0.0, %v1548
    %v1550 = vpop.f32.mrb[0].mxu0
    %v1551 = vpop.f32.mrb[0].mxu0
    %v1552 = vadd.f32 0.0, %v1551
    %v1553 = vpop.f32.mrb[0].mxu0
    %1554 = vmatprep.mubr.bf16.mxu0 0
    %1555 = vmatmul.mubr.bf16.gmra.mrb[0].mxu0 %v1457
    %v1556 = vpop.f32.mrb[0].mxu0
    %v1557 = vadd.f32 0.0, %v1556
    %v1558 = vpop.f32.mrb[0].mxu0
    %v1559 = vpop.f32.mrb[0].mxu0
    %v1560 = vadd.f32 0.0, %v1559
    %v1561 = vpop.f32.mrb[0].mxu0
    %1562 = vdwg.mxu0
    %v1563 = vadd.f32 %v1217, %v1501
    %v1564 = vadd.f32 %v1218, %v1504
    %v1565 = vadd.f32 %v1219, %v1509
    %v1566 = vadd.f32 %v1220, %v1512
    %v1567 = vadd.f32 %v1221, %v1517
    %v1568 = vadd.f32 %v1222, %v1520
    %v1569 = vadd.f32 %v1223, %v1525
    %v1570 = vadd.f32 %v1224, %v1528
    %v1571 = vadd.f32 %v1225, %v1533
    %v1572 = vadd.f32 %v1226, %v1536
    %v1573 = vadd.f32 %v1227, %v1541
    %v1574 = vadd.f32 %v1228, %v1544
    %v1575 = vadd.f32 %v1229, %v1549
    %v1576 = vadd.f32 %v1230, %v1552
    %v1577 = vadd.f32 %v1231, %v1557
    %v1578 = vadd.f32 %v1232, %v1560
    %v1579 = vld [vmem:[#allocation2] sm:$0xff]
    %v1580 = vld [vmem:[#allocation2 + $0x8] sm:$0xff]
    %v1581 = vld [vmem:[#allocation2 + $0x10] sm:$0xff]
    %v1582 = vld [vmem:[#allocation2 + $0x18] sm:$0xff]
    %v1583 = vld [vmem:[#allocation2 + $0x20] sm:$0xff]
    %v1584 = vld [vmem:[#allocation2 + $0x28] sm:$0xff]
    %v1585 = vld [vmem:[#allocation2 + $0x30] sm:$0xff]
    %v1586 = vld [vmem:[#allocation2 + $0x38] sm:$0xff]
    %v1587 = vld [vmem:[#allocation2 + $0x40] sm:$0xff]
    %v1588 = vld [vmem:[#allocation2 + $0x48] sm:$0xff]
    %v1589 = vld [vmem:[#allocation2 + $0x50] sm:$0xff]
    %v1590 = vld [vmem:[#allocation2 + $0x58] sm:$0xff]
    %v1591 = vld [vmem:[#allocation2 + $0x60] sm:$0xff]
    %v1592 = vld [vmem:[#allocation2 + $0x68] sm:$0xff]
    %v1593 = vld [vmem:[#allocation2 + $0x70] sm:$0xff]
    %v1594 = vld [vmem:[#allocation2 + $0x78] sm:$0xff]
    %v1595 = vadd.f32 %v1579, %v1563
    %v1596 = vadd.f32 %v1580, %v1564
    %v1597 = vadd.f32 %v1581, %v1565
    %v1598 = vadd.f32 %v1582, %v1566
    %v1599 = vadd.f32 %v1583, %v1567
    %v1600 = vadd.f32 %v1584, %v1568
    %v1601 = vadd.f32 %v1585, %v1569
    %v1602 = vadd.f32 %v1586, %v1570
    %v1603 = vadd.f32 %v1587, %v1571
    %v1604 = vadd.f32 %v1588, %v1572
    %v1605 = vadd.f32 %v1589, %v1573
    %v1606 = vadd.f32 %v1590, %v1574
    %v1607 = vadd.f32 %v1591, %v1575
    %v1608 = vadd.f32 %v1592, %v1576
    %v1609 = vadd.f32 %v1593, %v1577
    %v1610 = vadd.f32 %v1594, %v1578
    %vm1611 = vcmask 293888
    %1612 = vst.msk [vmem:[#allocation2] sm:$0xff] %vm1611, %v1595
    %1613 = vst.msk [vmem:[#allocation2 + $0x8] sm:$0xff] %vm1611, %v1596
    %1614 = vst.msk [vmem:[#allocation2 + $0x10] sm:$0xff] %vm1611, %v1597
    %1615 = vst.msk [vmem:[#allocation2 + $0x18] sm:$0xff] %vm1611, %v1598
    %1616 = vst.msk [vmem:[#allocation2 + $0x20] sm:$0xff] %vm1611, %v1599
    %1617 = vst.msk [vmem:[#allocation2 + $0x28] sm:$0xff] %vm1611, %v1600
    %1618 = vst.msk [vmem:[#allocation2 + $0x30] sm:$0xff] %vm1611, %v1601
    %1619 = vst.msk [vmem:[#allocation2 + $0x38] sm:$0xff] %vm1611, %v1602
    %1620 = vst.msk [vmem:[#allocation2 + $0x40] sm:$0xff] %vm1611, %v1603
    %1621 = vst.msk [vmem:[#allocation2 + $0x48] sm:$0xff] %vm1611, %v1604
    %1622 = vst.msk [vmem:[#allocation2 + $0x50] sm:$0xff] %vm1611, %v1605
    %1623 = vst.msk [vmem:[#allocation2 + $0x58] sm:$0xff] %vm1611, %v1606
    %1624 = vst.msk [vmem:[#allocation2 + $0x60] sm:$0xff] %vm1611, %v1607
    %1625 = vst.msk [vmem:[#allocation2 + $0x68] sm:$0xff] %vm1611, %v1608
    %1626 = vst.msk [vmem:[#allocation2 + $0x70] sm:$0xff] %vm1611, %v1609
    %1627 = vst.msk [vmem:[#allocation2 + $0x78] sm:$0xff] %vm1611, %v1610
  $region29: #{spgat_forward.2} parent=0 // pred_fallthru
    _
  // Predicated region
  $region30: #{spgat_forward.2} parent=0 // pred_check
    %p1628 = pneg %p25
  $region31: #{spgat_forward.2} parent=0 // pred_check_branch
    %1630 = sbr.rel (%p1628) target = $region33
  $region32: #{spgat_forward.2} parent=0 // pred_region
    %v1631 = vld [vmem:[#allocation2] sm:$0xff]
    %v1632 = vld [vmem:[#allocation2 + $0x8] sm:$0xff]
    %v1633 = vld [vmem:[#allocation2 + $0x10] sm:$0xff]
    %v1634 = vld [vmem:[#allocation2 + $0x18] sm:$0xff]
    %v1635 = vld [vmem:[#allocation2 + $0x20] sm:$0xff]
    %v1636 = vld [vmem:[#allocation2 + $0x28] sm:$0xff]
    %v1637 = vld [vmem:[#allocation2 + $0x30] sm:$0xff]
    %v1638 = vld [vmem:[#allocation2 + $0x38] sm:$0xff]
    %v1639 = vld [vmem:[#allocation2 + $0x40] sm:$0xff]
    %v1640 = vld [vmem:[#allocation2 + $0x48] sm:$0xff]
    %v1641 = vld [vmem:[#allocation2 + $0x50] sm:$0xff]
    %v1642 = vld [vmem:[#allocation2 + $0x58] sm:$0xff]
    %v1643 = vld [vmem:[#allocation2 + $0x60] sm:$0xff]
    %v1644 = vld [vmem:[#allocation2 + $0x68] sm:$0xff]
    %v1645 = vld [vmem:[#allocation2 + $0x70] sm:$0xff]
    %v1646 = vld [vmem:[#allocation2 + $0x78] sm:$0xff]
    %v1647 = vmax.f32 %v1631, 1e-30
    %v1648 = vmax.f32 %v1632, 1e-30
    %v1649 = vmax.f32 %v1633, 1e-30
    %v1650 = vmax.f32 %v1634, 1e-30
    %v1651 = vmax.f32 %v1635, 1e-30
    %v1652 = vmax.f32 %v1636, 1e-30
    %v1653 = vmax.f32 %v1637, 1e-30
    %v1654 = vmax.f32 %v1638, 1e-30
    %v1655 = vmax.f32 %v1639, 1e-30
    %v1656 = vmax.f32 %v1640, 1e-30
    %v1657 = vmax.f32 %v1641, 1e-30
    %v1658 = vmax.f32 %v1642, 1e-30
    %v1659 = vmax.f32 %v1643, 1e-30
    %v1660 = vmax.f32 %v1644, 1e-30
    %v1661 = vmax.f32 %v1645, 1e-30
    %v1662 = vmax.f32 %v1646, 1e-30
    %v1663 = vrcp.pop %v1647
    %v1664 = vrcp.pop %v1648
    %v1665 = vrcp.pop %v1649
    %v1666 = vrcp.pop %v1650
    %v1667 = vrcp.pop %v1651
    %v1668 = vrcp.pop %v1652
    %v1669 = vrcp.pop %v1653
    %v1670 = vrcp.pop %v1654
    %v1671 = vrcp.pop %v1655
    %v1672 = vrcp.pop %v1656
    %v1673 = vrcp.pop %v1657
    %v1674 = vrcp.pop %v1658
    %v1675 = vrcp.pop %v1659
    %v1676 = vrcp.pop %v1660
    %v1677 = vrcp.pop %v1661
    %v1678 = vrcp.pop %v1662
    %v1679 = vmul.f32 %v1647, %v1663
    %v1680 = vmul.f32 %v1648, %v1664
    %v1681 = vmul.f32 %v1649, %v1665
    %v1682 = vmul.f32 %v1650, %v1666
    %v1683 = vmul.f32 %v1651, %v1667
    %v1684 = vmul.f32 %v1652, %v1668
    %v1685 = vmul.f32 %v1653, %v1669
    %v1686 = vmul.f32 %v1654, %v1670
    %v1687 = vmul.f32 %v1655, %v1671
    %v1688 = vmul.f32 %v1656, %v1672
    %v1689 = vmul.f32 %v1657, %v1673
    %v1690 = vmul.f32 %v1658, %v1674
    %v1691 = vmul.f32 %v1659, %v1675
    %v1692 = vmul.f32 %v1660, %v1676
    %v1693 = vmul.f32 %v1661, %v1677
    %v1694 = vmul.f32 %v1662, %v1678
    %v1695 = vsub.f32 2.0, %v1679
    %v1696 = vsub.f32 2.0, %v1680
    %v1697 = vsub.f32 2.0, %v1681
    %v1698 = vsub.f32 2.0, %v1682
    %v1699 = vsub.f32 2.0, %v1683
    %v1700 = vsub.f32 2.0, %v1684
    %v1701 = vsub.f32 2.0, %v1685
    %v1702 = vsub.f32 2.0, %v1686
    %v1703 = vsub.f32 2.0, %v1687
    %v1704 = vsub.f32 2.0, %v1688
    %v1705 = vsub.f32 2.0, %v1689
    %v1706 = vsub.f32 2.0, %v1690
    %v1707 = vsub.f32 2.0, %v1691
    %v1708 = vsub.f32 2.0, %v1692
    %v1709 = vsub.f32 2.0, %v1693
    %v1710 = vsub.f32 2.0, %v1694
    %v1711 = vmul.f32 %v1663, %v1695
    %v1712 = vmul.f32 %v1664, %v1696
    %v1713 = vmul.f32 %v1665, %v1697
    %v1714 = vmul.f32 %v1666, %v1698
    %v1715 = vmul.f32 %v1667, %v1699
    %v1716 = vmul.f32 %v1668, %v1700
    %v1717 = vmul.f32 %v1669, %v1701
    %v1718 = vmul.f32 %v1670, %v1702
    %v1719 = vmul.f32 %v1671, %v1703
    %v1720 = vmul.f32 %v1672, %v1704
    %v1721 = vmul.f32 %v1673, %v1705
    %v1722 = vmul.f32 %v1674, %v1706
    %v1723 = vmul.f32 %v1675, %v1707
    %v1724 = vmul.f32 %v1676, %v1708
    %v1725 = vmul.f32 %v1677, %v1709
    %v1726 = vmul.f32 %v1678, %v1710
    %v1727 = vld [vmem:[%s4] sm:$0x1]
    %1729 = vset.pattern.permute.xlu0 32
    %1730 = vperm.xlu0 %1729, %v1711
    %v1731 = vpop.permute.xlu0 %1730
    %1734 = vset.pattern.permute.xlu0 32
    %1735 = vperm.xlu0 %1734, %v1712
    %v1736 = vpop.permute.xlu0 %1735
    %1739 = vset.pattern.permute.xlu0 32
    %1740 = vperm.xlu0 %1739, %v1713
    %v1741 = vpop.permute.xlu0 %1740
    %1744 = vset.pattern.permute.xlu0 32
    %1745 = vperm.xlu0 %1744, %v1714
    %v1746 = vpop.permute.xlu0 %1745
    %1749 = vset.pattern.permute.xlu0 32
    %1750 = vperm.xlu0 %1749, %v1715
    %v1751 = vpop.permute.xlu0 %1750
    %1754 = vset.pattern.permute.xlu0 32
    %1755 = vperm.xlu0 %1754, %v1716
    %v1756 = vpop.permute.xlu0 %1755
    %1759 = vset.pattern.permute.xlu0 32
    %1760 = vperm.xlu0 %1759, %v1717
    %v1761 = vpop.permute.xlu0 %1760
    %1764 = vset.pattern.permute.xlu0 32
    %1765 = vperm.xlu0 %1764, %v1718
    %v1766 = vpop.permute.xlu0 %1765
    %1769 = vset.pattern.permute.xlu0 32
    %1770 = vperm.xlu0 %1769, %v1719
    %v1771 = vpop.permute.xlu0 %1770
    %1774 = vset.pattern.permute.xlu0 32
    %1775 = vperm.xlu0 %1774, %v1720
    %v1776 = vpop.permute.xlu0 %1775
    %1779 = vset.pattern.permute.xlu0 32
    %1780 = vperm.xlu0 %1779, %v1721
    %v1781 = vpop.permute.xlu0 %1780
    %1784 = vset.pattern.permute.xlu0 32
    %1785 = vperm.xlu0 %1784, %v1722
    %v1786 = vpop.permute.xlu0 %1785
    %1789 = vset.pattern.permute.xlu0 32
    %1790 = vperm.xlu0 %1789, %v1723
    %v1791 = vpop.permute.xlu0 %1790
    %1794 = vset.pattern.permute.xlu0 32
    %1795 = vperm.xlu0 %1794, %v1724
    %v1796 = vpop.permute.xlu0 %1795
    %1799 = vset.pattern.permute.xlu0 32
    %1800 = vperm.xlu0 %1799, %v1725
    %v1801 = vpop.permute.xlu0 %1800
    %1804 = vset.pattern.permute.xlu0 32
    %1805 = vperm.xlu0 %1804, %v1726
    %v1806 = vpop.permute.xlu0 %1805
    %v1808 = vlaneseq
    %v1809 = vshrl.u32 %v1808, 7
    %v1810 = vsub.s32 0, %v1809
    %v1811 = vrot.slane %v1727, %v1810
    %v1812 = vmul.f32 %v1731, %v1811
    %v1813 = vmul.f32 %v1736, %v1811
    %v1814 = vmul.f32 %v1741, %v1811
    %v1815 = vmul.f32 %v1746, %v1811
    %v1816 = vmul.f32 %v1751, %v1811
    %v1817 = vmul.f32 %v1756, %v1811
    %v1818 = vmul.f32 %v1761, %v1811
    %v1819 = vmul.f32 %v1766, %v1811
    %v1820 = vmul.f32 %v1771, %v1811
    %v1821 = vmul.f32 %v1776, %v1811
    %v1822 = vmul.f32 %v1781, %v1811
    %v1823 = vmul.f32 %v1786, %v1811
    %v1824 = vmul.f32 %v1791, %v1811
    %v1825 = vmul.f32 %v1796, %v1811
    %v1826 = vmul.f32 %v1801, %v1811
    %v1827 = vmul.f32 %v1806, %v1811
    %v1828 = vld [vmem:[%s4 + $0x1] sm:$0x1]
    %1829 = vset.pattern.permute.xlu0 33
    %1830 = vperm.xlu0 %1829, %v1711
    %v1831 = vpop.permute.xlu0 %1830
    %1833 = vset.pattern.permute.xlu0 33
    %1834 = vperm.xlu0 %1833, %v1712
    %v1835 = vpop.permute.xlu0 %1834
    %1837 = vset.pattern.permute.xlu0 33
    %1838 = vperm.xlu0 %1837, %v1713
    %v1839 = vpop.permute.xlu0 %1838
    %1841 = vset.pattern.permute.xlu0 33
    %1842 = vperm.xlu0 %1841, %v1714
    %v1843 = vpop.permute.xlu0 %1842
    %1845 = vset.pattern.permute.xlu0 33
    %1846 = vperm.xlu0 %1845, %v1715
    %v1847 = vpop.permute.xlu0 %1846
    %1849 = vset.pattern.permute.xlu0 33
    %1850 = vperm.xlu0 %1849, %v1716
    %v1851 = vpop.permute.xlu0 %1850
    %1853 = vset.pattern.permute.xlu0 33
    %1854 = vperm.xlu0 %1853, %v1717
    %v1855 = vpop.permute.xlu0 %1854
    %1857 = vset.pattern.permute.xlu0 33
    %1858 = vperm.xlu0 %1857, %v1718
    %v1859 = vpop.permute.xlu0 %1858
    %1861 = vset.pattern.permute.xlu0 33
    %1862 = vperm.xlu0 %1861, %v1719
    %v1863 = vpop.permute.xlu0 %1862
    %1865 = vset.pattern.permute.xlu0 33
    %1866 = vperm.xlu0 %1865, %v1720
    %v1867 = vpop.permute.xlu0 %1866
    %1869 = vset.pattern.permute.xlu0 33
    %1870 = vperm.xlu0 %1869, %v1721
    %v1871 = vpop.permute.xlu0 %1870
    %1873 = vset.pattern.permute.xlu0 33
    %1874 = vperm.xlu0 %1873, %v1722
    %v1875 = vpop.permute.xlu0 %1874
    %1877 = vset.pattern.permute.xlu0 33
    %1878 = vperm.xlu0 %1877, %v1723
    %v1879 = vpop.permute.xlu0 %1878
    %1881 = vset.pattern.permute.xlu0 33
    %1882 = vperm.xlu0 %1881, %v1724
    %v1883 = vpop.permute.xlu0 %1882
    %1885 = vset.pattern.permute.xlu0 33
    %1886 = vperm.xlu0 %1885, %v1725
    %v1887 = vpop.permute.xlu0 %1886
    %1889 = vset.pattern.permute.xlu0 33
    %1890 = vperm.xlu0 %1889, %v1726
    %v1891 = vpop.permute.xlu0 %1890
    %v1893 = vlaneseq
    %v1894 = vshrl.u32 %v1893, 7
    %v1895 = vsub.s32 0, %v1894
    %v1896 = vrot.slane %v1828, %v1895
    %v1897 = vmul.f32 %v1831, %v1896
    %v1898 = vmul.f32 %v1835, %v1896
    %v1899 = vmul.f32 %v1839, %v1896
    %v1900 = vmul.f32 %v1843, %v1896
    %v1901 = vmul.f32 %v1847, %v1896
    %v1902 = vmul.f32 %v1851, %v1896
    %v1903 = vmul.f32 %v1855, %v1896
    %v1904 = vmul.f32 %v1859, %v1896
    %v1905 = vmul.f32 %v1863, %v1896
    %v1906 = vmul.f32 %v1867, %v1896
    %v1907 = vmul.f32 %v1871, %v1896
    %v1908 = vmul.f32 %v1875, %v1896
    %v1909 = vmul.f32 %v1879, %v1896
    %v1910 = vmul.f32 %v1883, %v1896
    %v1911 = vmul.f32 %v1887, %v1896
    %v1912 = vmul.f32 %v1891, %v1896
    %v1913 = vadd.f32 %v1812, %v1897
    %v1914 = vadd.f32 %v1813, %v1898
    %v1915 = vadd.f32 %v1814, %v1899
    %v1916 = vadd.f32 %v1815, %v1900
    %v1917 = vadd.f32 %v1816, %v1901
    %v1918 = vadd.f32 %v1817, %v1902
    %v1919 = vadd.f32 %v1818, %v1903
    %v1920 = vadd.f32 %v1819, %v1904
    %v1921 = vadd.f32 %v1820, %v1905
    %v1922 = vadd.f32 %v1821, %v1906
    %v1923 = vadd.f32 %v1822, %v1907
    %v1924 = vadd.f32 %v1823, %v1908
    %v1925 = vadd.f32 %v1824, %v1909
    %v1926 = vadd.f32 %v1825, %v1910
    %v1927 = vadd.f32 %v1826, %v1911
    %v1928 = vadd.f32 %v1827, %v1912
    %v1929 = vld [vmem:[%s4 + $0x2] sm:$0x1]
    %1930 = vset.pattern.permute.xlu0 34
    %1931 = vperm.xlu0 %1930, %v1711
    %v1932 = vpop.permute.xlu0 %1931
    %1934 = vset.pattern.permute.xlu0 34
    %1935 = vperm.xlu0 %1934, %v1712
    %v1936 = vpop.permute.xlu0 %1935
    %1938 = vset.pattern.permute.xlu0 34
    %1939 = vperm.xlu0 %1938, %v1713
    %v1940 = vpop.permute.xlu0 %1939
    %1942 = vset.pattern.permute.xlu0 34
    %1943 = vperm.xlu0 %1942, %v1714
    %v1944 = vpop.permute.xlu0 %1943
    %1946 = vset.pattern.permute.xlu0 34
    %1947 = vperm.xlu0 %1946, %v1715
    %v1948 = vpop.permute.xlu0 %1947
    %1950 = vset.pattern.permute.xlu0 34
    %1951 = vperm.xlu0 %1950, %v1716
    %v1952 = vpop.permute.xlu0 %1951
    %1954 = vset.pattern.permute.xlu0 34
    %1955 = vperm.xlu0 %1954, %v1717
    %v1956 = vpop.permute.xlu0 %1955
    %1958 = vset.pattern.permute.xlu0 34
    %1959 = vperm.xlu0 %1958, %v1718
    %v1960 = vpop.permute.xlu0 %1959
    %1962 = vset.pattern.permute.xlu0 34
    %1963 = vperm.xlu0 %1962, %v1719
    %v1964 = vpop.permute.xlu0 %1963
    %1966 = vset.pattern.permute.xlu0 34
    %1967 = vperm.xlu0 %1966, %v1720
    %v1968 = vpop.permute.xlu0 %1967
    %1970 = vset.pattern.permute.xlu0 34
    %1971 = vperm.xlu0 %1970, %v1721
    %v1972 = vpop.permute.xlu0 %1971
    %1974 = vset.pattern.permute.xlu0 34
    %1975 = vperm.xlu0 %1974, %v1722
    %v1976 = vpop.permute.xlu0 %1975
    %1978 = vset.pattern.permute.xlu0 34
    %1979 = vperm.xlu0 %1978, %v1723
    %v1980 = vpop.permute.xlu0 %1979
    %1982 = vset.pattern.permute.xlu0 34
    %1983 = vperm.xlu0 %1982, %v1724
    %v1984 = vpop.permute.xlu0 %1983
    %1986 = vset.pattern.permute.xlu0 34
    %1987 = vperm.xlu0 %1986, %v1725
    %v1988 = vpop.permute.xlu0 %1987
    %1990 = vset.pattern.permute.xlu0 34
    %1991 = vperm.xlu0 %1990, %v1726
    %v1992 = vpop.permute.xlu0 %1991
    %v1994 = vlaneseq
    %v1995 = vshrl.u32 %v1994, 7
    %v1996 = vsub.s32 0, %v1995
    %v1997 = vrot.slane %v1929, %v1996
    %v1998 = vmul.f32 %v1932, %v1997
    %v1999 = vmul.f32 %v1936, %v1997
    %v2000 = vmul.f32 %v1940, %v1997
    %v2001 = vmul.f32 %v1944, %v1997
    %v2002 = vmul.f32 %v1948, %v1997
    %v2003 = vmul.f32 %v1952, %v1997
    %v2004 = vmul.f32 %v1956, %v1997
    %v2005 = vmul.f32 %v1960, %v1997
    %v2006 = vmul.f32 %v1964, %v1997
    %v2007 = vmul.f32 %v1968, %v1997
    %v2008 = vmul.f32 %v1972, %v1997
    %v2009 = vmul.f32 %v1976, %v1997
    %v2010 = vmul.f32 %v1980, %v1997
    %v2011 = vmul.f32 %v1984, %v1997
    %v2012 = vmul.f32 %v1988, %v1997
    %v2013 = vmul.f32 %v1992, %v1997
    %v2014 = vadd.f32 %v1913, %v1998
    %v2015 = vadd.f32 %v1914, %v1999
    %v2016 = vadd.f32 %v1915, %v2000
    %v2017 = vadd.f32 %v1916, %v2001
    %v2018 = vadd.f32 %v1917, %v2002
    %v2019 = vadd.f32 %v1918, %v2003
    %v2020 = vadd.f32 %v1919, %v2004
    %v2021 = vadd.f32 %v1920, %v2005
    %v2022 = vadd.f32 %v1921, %v2006
    %v2023 = vadd.f32 %v1922, %v2007
    %v2024 = vadd.f32 %v1923, %v2008
    %v2025 = vadd.f32 %v1924, %v2009
    %v2026 = vadd.f32 %v1925, %v2010
    %v2027 = vadd.f32 %v1926, %v2011
    %v2028 = vadd.f32 %v1927, %v2012
    %v2029 = vadd.f32 %v1928, %v2013
    %v2030 = vld [vmem:[%s4 + $0x3] sm:$0x1]
    %2031 = vset.pattern.permute.xlu0 35
    %2032 = vperm.xlu0 %2031, %v1711
    %v2033 = vpop.permute.xlu0 %2032
    %2035 = vset.pattern.permute.xlu0 35
    %2036 = vperm.xlu0 %2035, %v1712
    %v2037 = vpop.permute.xlu0 %2036
    %2039 = vset.pattern.permute.xlu0 35
    %2040 = vperm.xlu0 %2039, %v1713
    %v2041 = vpop.permute.xlu0 %2040
    %2043 = vset.pattern.permute.xlu0 35
    %2044 = vperm.xlu0 %2043, %v1714
    %v2045 = vpop.permute.xlu0 %2044
    %2047 = vset.pattern.permute.xlu0 35
    %2048 = vperm.xlu0 %2047, %v1715
    %v2049 = vpop.permute.xlu0 %2048
    %2051 = vset.pattern.permute.xlu0 35
    %2052 = vperm.xlu0 %2051, %v1716
    %v2053 = vpop.permute.xlu0 %2052
    %2055 = vset.pattern.permute.xlu0 35
    %2056 = vperm.xlu0 %2055, %v1717
    %v2057 = vpop.permute.xlu0 %2056
    %2059 = vset.pattern.permute.xlu0 35
    %2060 = vperm.xlu0 %2059, %v1718
    %v2061 = vpop.permute.xlu0 %2060
    %2063 = vset.pattern.permute.xlu0 35
    %2064 = vperm.xlu0 %2063, %v1719
    %v2065 = vpop.permute.xlu0 %2064
    %2067 = vset.pattern.permute.xlu0 35
    %2068 = vperm.xlu0 %2067, %v1720
    %v2069 = vpop.permute.xlu0 %2068
    %2071 = vset.pattern.permute.xlu0 35
    %2072 = vperm.xlu0 %2071, %v1721
    %v2073 = vpop.permute.xlu0 %2072
    %2075 = vset.pattern.permute.xlu0 35
    %2076 = vperm.xlu0 %2075, %v1722
    %v2077 = vpop.permute.xlu0 %2076
    %2079 = vset.pattern.permute.xlu0 35
    %2080 = vperm.xlu0 %2079, %v1723
    %v2081 = vpop.permute.xlu0 %2080
    %2083 = vset.pattern.permute.xlu0 35
    %2084 = vperm.xlu0 %2083, %v1724
    %v2085 = vpop.permute.xlu0 %2084
    %2087 = vset.pattern.permute.xlu0 35
    %2088 = vperm.xlu0 %2087, %v1725
    %v2089 = vpop.permute.xlu0 %2088
    %2091 = vset.pattern.permute.xlu0 35
    %2092 = vperm.xlu0 %2091, %v1726
    %v2093 = vpop.permute.xlu0 %2092
    %v2095 = vlaneseq
    %v2096 = vshrl.u32 %v2095, 7
    %v2097 = vsub.s32 0, %v2096
    %v2098 = vrot.slane %v2030, %v2097
    %v2099 = vmul.f32 %v2033, %v2098
    %v2100 = vmul.f32 %v2037, %v2098
    %v2101 = vmul.f32 %v2041, %v2098
    %v2102 = vmul.f32 %v2045, %v2098
    %v2103 = vmul.f32 %v2049, %v2098
    %v2104 = vmul.f32 %v2053, %v2098
    %v2105 = vmul.f32 %v2057, %v2098
    %v2106 = vmul.f32 %v2061, %v2098
    %v2107 = vmul.f32 %v2065, %v2098
    %v2108 = vmul.f32 %v2069, %v2098
    %v2109 = vmul.f32 %v2073, %v2098
    %v2110 = vmul.f32 %v2077, %v2098
    %v2111 = vmul.f32 %v2081, %v2098
    %v2112 = vmul.f32 %v2085, %v2098
    %v2113 = vmul.f32 %v2089, %v2098
    %v2114 = vmul.f32 %v2093, %v2098
    %v2115 = vadd.f32 %v2014, %v2099
    %v2116 = vadd.f32 %v2015, %v2100
    %v2117 = vadd.f32 %v2016, %v2101
    %v2118 = vadd.f32 %v2017, %v2102
    %v2119 = vadd.f32 %v2018, %v2103
    %v2120 = vadd.f32 %v2019, %v2104
    %v2121 = vadd.f32 %v2020, %v2105
    %v2122 = vadd.f32 %v2021, %v2106
    %v2123 = vadd.f32 %v2022, %v2107
    %v2124 = vadd.f32 %v2023, %v2108
    %v2125 = vadd.f32 %v2024, %v2109
    %v2126 = vadd.f32 %v2025, %v2110
    %v2127 = vadd.f32 %v2026, %v2111
    %v2128 = vadd.f32 %v2027, %v2112
    %v2129 = vadd.f32 %v2028, %v2113
    %v2130 = vadd.f32 %v2029, %v2114
    %v2131 = vmul.f32 %v1631, %v2115
    %v2132 = vmul.f32 %v1632, %v2116
    %v2133 = vmul.f32 %v1633, %v2117
    %v2134 = vmul.f32 %v1634, %v2118
    %v2135 = vmul.f32 %v1635, %v2119
    %v2136 = vmul.f32 %v1636, %v2120
    %v2137 = vmul.f32 %v1637, %v2121
    %v2138 = vmul.f32 %v1638, %v2122
    %v2139 = vmul.f32 %v1639, %v2123
    %v2140 = vmul.f32 %v1640, %v2124
    %v2141 = vmul.f32 %v1641, %v2125
    %v2142 = vmul.f32 %v1642, %v2126
    %v2143 = vmul.f32 %v1643, %v2127
    %v2144 = vmul.f32 %v1644, %v2128
    %v2145 = vmul.f32 %v1645, %v2129
    %v2146 = vmul.f32 %v1646, %v2130
    %vm2147 = vcmp.gt.f32.partialorder %v2131, 0.0
    %vm2148 = vcmp.gt.f32.partialorder %v2132, 0.0
    %vm2149 = vcmp.gt.f32.partialorder %v2133, 0.0
    %vm2150 = vcmp.gt.f32.partialorder %v2134, 0.0
    %vm2151 = vcmp.gt.f32.partialorder %v2135, 0.0
    %vm2152 = vcmp.gt.f32.partialorder %v2136, 0.0
    %vm2153 = vcmp.gt.f32.partialorder %v2137, 0.0
    %vm2154 = vcmp.gt.f32.partialorder %v2138, 0.0
    %vm2155 = vcmp.gt.f32.partialorder %v2139, 0.0
    %vm2156 = vcmp.gt.f32.partialorder %v2140, 0.0
    %vm2157 = vcmp.gt.f32.partialorder %v2141, 0.0
    %vm2158 = vcmp.gt.f32.partialorder %v2142, 0.0
    %vm2159 = vcmp.gt.f32.partialorder %v2143, 0.0
    %vm2160 = vcmp.gt.f32.partialorder %v2144, 0.0
    %vm2161 = vcmp.gt.f32.partialorder %v2145, 0.0
    %vm2162 = vcmp.gt.f32.partialorder %v2146, 0.0
    %v2163 = vmul.f32 %v2131, 1.442695
    %v2164 = vpow.pop %v2163
    %v2165 = vmul.f32 %v2132, 1.442695
    %v2166 = vpow.pop %v2165
    %v2167 = vmul.f32 %v2133, 1.442695
    %v2168 = vpow.pop %v2167
    %v2169 = vmul.f32 %v2134, 1.442695
    %v2170 = vpow.pop %v2169
    %v2171 = vmul.f32 %v2135, 1.442695
    %v2172 = vpow.pop %v2171
    %v2173 = vmul.f32 %v2136, 1.442695
    %v2174 = vpow.pop %v2173
    %v2175 = vmul.f32 %v2137, 1.442695
    %v2176 = vpow.pop %v2175
    %v2177 = vmul.f32 %v2138, 1.442695
    %v2178 = vpow.pop %v2177
    %v2179 = vmul.f32 %v2139, 1.442695
    %v2180 = vpow.pop %v2179
    %v2181 = vmul.f32 %v2140, 1.442695
    %v2182 = vpow.pop %v2181
    %v2183 = vmul.f32 %v2141, 1.442695
    %v2184 = vpow.pop %v2183
    %v2185 = vmul.f32 %v2142, 1.442695
    %v2186 = vpow.pop %v2185
    %v2187 = vmul.f32 %v2143, 1.442695
    %v2188 = vpow.pop %v2187
    %v2189 = vmul.f32 %v2144, 1.442695
    %v2190 = vpow.pop %v2189
    %v2191 = vmul.f32 %v2145, 1.442695
    %v2192 = vpow.pop %v2191
    %v2193 = vmul.f32 %v2146, 1.442695
    %v2194 = vpow.pop %v2193
    %v2195 = vsub.f32 %v2164, 1.0
    %v2196 = vsub.f32 %v2166, 1.0
    %v2197 = vsub.f32 %v2168, 1.0
    %v2198 = vsub.f32 %v2170, 1.0
    %v2199 = vsub.f32 %v2172, 1.0
    %v2200 = vsub.f32 %v2174, 1.0
    %v2201 = vsub.f32 %v2176, 1.0
    %v2202 = vsub.f32 %v2178, 1.0
    %v2203 = vsub.f32 %v2180, 1.0
    %v2204 = vsub.f32 %v2182, 1.0
    %v2205 = vsub.f32 %v2184, 1.0
    %v2206 = vsub.f32 %v2186, 1.0
    %v2207 = vsub.f32 %v2188, 1.0
    %v2208 = vsub.f32 %v2190, 1.0
    %v2209 = vsub.f32 %v2192, 1.0
    %v2210 = vsub.f32 %v2194, 1.0
    %v2211 = vsel %vm2147, %v2131, %v2195
    %v2212 = vsel %vm2148, %v2132, %v2196
    %v2213 = vsel %vm2149, %v2133, %v2197
    %v2214 = vsel %vm2150, %v2134, %v2198
    %v2215 = vsel %vm2151, %v2135, %v2199
    %v2216 = vsel %vm2152, %v2136, %v2200
    %v2217 = vsel %vm2153, %v2137, %v2201
    %v2218 = vsel %vm2154, %v2138, %v2202
    %v2219 = vsel %vm2155, %v2139, %v2203
    %v2220 = vsel %vm2156, %v2140, %v2204
    %v2221 = vsel %vm2157, %v2141, %v2205
    %v2222 = vsel %vm2158, %v2142, %v2206
    %v2223 = vsel %vm2159, %v2143, %v2207
    %v2224 = vsel %vm2160, %v2144, %v2208
    %v2225 = vsel %vm2161, %v2145, %v2209
    %v2226 = vsel %vm2162, %v2146, %v2210
    %vm2227 = vcmask 261120
    %2228 = vst.msk [vmem:[%s6] sm:$0xff] %vm2227, %v2211
    %2229 = vst.msk [vmem:[%s6 + $0x8] sm:$0xff] %vm2227, %v2212
    %2230 = vst.msk [vmem:[%s6 + $0x10] sm:$0xff] %vm2227, %v2213
    %2231 = vst.msk [vmem:[%s6 + $0x18] sm:$0xff] %vm2227, %v2214
    %2232 = vst.msk [vmem:[%s6 + $0x20] sm:$0xff] %vm2227, %v2215
    %2233 = vst.msk [vmem:[%s6 + $0x28] sm:$0xff] %vm2227, %v2216
    %2234 = vst.msk [vmem:[%s6 + $0x30] sm:$0xff] %vm2227, %v2217
    %2235 = vst.msk [vmem:[%s6 + $0x38] sm:$0xff] %vm2227, %v2218
    %2236 = vst.msk [vmem:[%s6 + $0x40] sm:$0xff] %vm2227, %v2219
    %2237 = vst.msk [vmem:[%s6 + $0x48] sm:$0xff] %vm2227, %v2220
    %2238 = vst.msk [vmem:[%s6 + $0x50] sm:$0xff] %vm2227, %v2221
    %2239 = vst.msk [vmem:[%s6 + $0x58] sm:$0xff] %vm2227, %v2222
    %2240 = vst.msk [vmem:[%s6 + $0x60] sm:$0xff] %vm2227, %v2223
    %2241 = vst.msk [vmem:[%s6 + $0x68] sm:$0xff] %vm2227, %v2224
    %2242 = vst.msk [vmem:[%s6 + $0x70] sm:$0xff] %vm2227, %v2225
    %2243 = vst.msk [vmem:[%s6 + $0x78] sm:$0xff] %vm2227, %v2226
  $region33: #{spgat_forward.2} parent=0 // pred_fallthru
    _
  // Predicated region
  $region34: #{spgat_forward.2} parent=0 // pred_check
    _
  $region35: #{spgat_forward.2} parent=0 // pred_check_branch
    %2245 = sbr.rel (0) target = $region37
  $region36: #{spgat_forward.2} parent=0 // pred_region
    _
  $region37: #{spgat_forward.2} parent=0 // pred_fallthru
    _
  // Predicated region
  $region38: #{spgat_forward.2} parent=0 // pred_check
    _
  $region39: #{spgat_forward.2} parent=0 // pred_check_branch
    %2247 = sbr.rel (0) target = $region41
  $region40: #{spgat_forward.2} parent=0 // pred_region
    _
  $region41: #{spgat_forward.2} parent=0 // pred_fallthru
    _

</llo_original>
